<compile_context>
chip_gen: v7x
topology: tpu7x:2x2x1
jax: 0.10.0
libtpu: 0.0.40
codegen_flags: <defaults>
</compile_context>

<pallas_src>
import functools

import jax
import jax.numpy as jnp
from jax.experimental import pallas as pl
from jax.experimental.pallas import tpu as pltpu

LN_EPS = 1e-5  # torch.nn.LayerNorm default


def _layernorm(v, gamma, beta):
    mu = jnp.mean(v, axis=-1, keepdims=True)
    var = jnp.mean(jnp.square(v - mu), axis=-1, keepdims=True)
    return (v - mu) * jax.lax.rsqrt(var + LN_EPS) * gamma + beta


def make_transformer_kernel(heads, dim_head, bt, n):
    """Fully fused transformer stack; grid = (batch_tiles, depth)."""
    inner = heads * dim_head

    def kernel(x_ref,
               ln1g_ref, ln1b_ref, wqkv_ref, wo_ref, bo_ref,
               ln2g_ref, ln2b_ref, w1_ref, b1_ref, w2_ref, b2_ref,
               lng_ref, lnb_ref,
               o_ref):
        layer = pl.program_id(1)
        last = pl.num_programs(1) - 1
        rows = bt * n

        # Load x from HBM only at the first layer; afterwards the activation
        # slab stays resident in the (VMEM-resident) output block.
        @pl.when(layer == 0)
        def _():
            o_ref[...] = x_ref[...]

        x = o_ref[...].reshape(rows, -1)                    # (Bt*N, D) f32
        d = x.shape[-1]

        # ---- Attention branch (PreNorm); softmax scale pre-folded into wqkv.
        xn = _layernorm(x, ln1g_ref[0], ln1b_ref[0])
        qkv = jnp.dot(xn.astype(jnp.bfloat16), wqkv_ref[0],
                      preferred_element_type=jnp.float32)   # (rows, 3*inner)

        def heads_first(t):  # (rows, inner) -> (bt*heads, n, dim_head) bf16
            t = t.reshape(bt, n, heads, dim_head)
            t = jnp.transpose(t, (0, 2, 1, 3))
            return t.reshape(bt * heads, n, dim_head).astype(jnp.bfloat16)

        q = heads_first(qkv[:, 0 * inner:1 * inner])
        k = heads_first(qkv[:, 1 * inner:2 * inner])
        v = heads_first(qkv[:, 2 * inner:3 * inner])

        # Batched MXU matmuls over (batch*heads); attention only mixes tokens
        # within each batch element.
        s = jnp.einsum("bqd,bkd->bqk", q, k,
                       preferred_element_type=jnp.float32)  # f32 logits
        s = s - jnp.max(s, axis=-1, keepdims=True)
        e = jnp.exp(s)
        inv = pl.reciprocal(jnp.sum(e, axis=-1, keepdims=True), approx=True)
        p = (e * inv).astype(jnp.bfloat16)
        oh = jnp.einsum("bqk,bkd->bqd", p, v,
                        preferred_element_type=jnp.float32)  # (bt*heads,n,dh)

        oh = oh.reshape(bt, heads, n, dim_head)
        oh = jnp.transpose(oh, (0, 2, 1, 3)).reshape(rows, inner)

        attn_out = jnp.dot(oh.astype(jnp.bfloat16), wo_ref[0],
                           preferred_element_type=jnp.float32) + bo_ref[0]
        x = x + attn_out                                     # residual

        # ---- FeedForward branch (PreNorm) ----
        xn2 = _layernorm(x, ln2g_ref[0], ln2b_ref[0])
        h1 = jnp.dot(xn2.astype(jnp.bfloat16), w1_ref[0],
                     preferred_element_type=jnp.float32) + b1_ref[0]
        # TODO(synk): torch nn.GELU() is exact erf-GELU; tanh approximation
        # used here (erf has no guaranteed Mosaic lowering); deviation ~1e-3.
        h1 = jax.nn.gelu(h1, approximate=True)
        ff = jnp.dot(h1.astype(jnp.bfloat16), w2_ref[0],
                     preferred_element_type=jnp.float32) + b2_ref[0]
        x = x + ff                                           # residual

        # Running activation written back into the resident output slab every
        # layer; final LayerNorm folded into the last layer's epilogue.
        @pl.when(layer < last)
        def _():
            o_ref[...] = x.reshape(bt, n, d)

        @pl.when(layer == last)
        def _():
            o_ref[...] = _layernorm(x, lng_ref[...], lnb_ref[...]).reshape(bt, n, d)

    return kernel


def _choose_batch_tile(B, N, D, inner, mlp_dim, heads, vmem_limit):
    """Largest batch tile whose working set fits comfortably in VMEM.

    Bigger Bt amortizes the per-layer weight DMA over more rows and fills the
    MXU M dimension (Bt*N >= 256 saturates v6e/v7x, >=128 on v5e).
    """
    # bf16 weights, double-buffered across the depth axis.
    w_bytes = 2 * 2 * (D * 3 * inner + inner * D + D * mlp_dim + mlp_dim * D)

    def estimate(bt):
        rows = bt * N
        act = 3 * rows * D * 4                       # resident out slab + x block
        inter = rows * (3 * inner + mlp_dim + inner) * 4
        scores = bt * heads * N * N * 4
        return act + inter + scores + w_bytes

    for bt in range(B, 0, -1):
        if B % bt == 0 and estimate(bt) <= int(0.6 * vmem_limit):
            return bt
    return 1


def transformer_forward(x, params, heads, dim_head, batch_tile=None):
    """x: (B, N, D) float32.  Single fused pallas_call, grid (B//Bt, depth)."""
    B, N, D = x.shape
    layers = params["layers"]
    depth = len(layers)
    inner = heads * dim_head
    mlp_dim = layers[0][7].shape[1]
    scale = dim_head ** -0.5

    # Per-generation VMEM budget: leave headroom below physical capacity
    # (v7x: 64 MiB/TC -> 48 MiB limit; v5e/v6e: 128 MiB -> 100 MiB limit).
    try:
        phys_vmem = pltpu.get_tpu_info().vmem_capacity_bytes
    except Exception:
        phys_vmem = 64 * 1024 * 1024  # conservative (v7x per-TC) fallback
    vmem_limit = int(min(phys_vmem - 16 * 1024 * 1024, 100 * 1024 * 1024))

    if batch_tile is None:
        batch_tile = _choose_batch_tile(B, N, D, inner, mlp_dim, heads, vmem_limit)
    Bt = batch_tile
    assert B % Bt == 0, "batch_tile must divide batch"

    # Deeper weight prefetch only where VMEM is plentiful (v5e/v6e) and the
    # depth axis is long enough for it to matter.
    wt_buffers = 3 if (phys_vmem >= 96 * 1024 * 1024 and depth >= 3) else 2

    # Stack per-layer params along a leading depth axis so the auto-pipeline
    # streams (multi-buffers) them while the activation stays in VMEM.
    # Matmul weights bf16 (MXU operands, half the DMA bytes); LN/bias f32.
    def stacked(idx, dtype=jnp.float32):
        return jnp.stack([layer[idx] for layer in layers]).astype(dtype)

    ln1g, ln1b = stacked(0), stacked(1)          # (depth, 1, D)
    # Softmax scale folded into the q columns of wqkv (removes an (R, inner)
    # VPU multiply per layer inside the kernel).
    wqkv = jnp.stack([
        jnp.concatenate([layer[2][:, :inner] * scale, layer[2][:, inner:]], axis=1)
        for layer in layers]).astype(jnp.bfloat16)           # (depth, D, 3*inner)
    wo = stacked(3, jnp.bfloat16)                # (depth, inner, D)
    bo = stacked(4)                              # (depth, 1, D)
    ln2g, ln2b = stacked(5), stacked(6)          # (depth, 1, D)
    w1 = stacked(7, jnp.bfloat16)                # (depth, D, mlp)
    b1 = stacked(8)                              # (depth, 1, mlp)
    w2 = stacked(9, jnp.bfloat16)                # (depth, mlp, D)
    b2 = stacked(10)                             # (depth, 1, D)
    layer_params = (ln1g, ln1b, wqkv, wo, bo, ln2g, ln2b, w1, b1, w2, b2)

    x_spec = pl.BlockSpec((Bt, N, D), lambda b, l: (b, 0, 0))

    def layer_spec(p, buffers=2):   # depth-indexed weight block
        bshape = (1,) + p.shape[1:]
        if buffers > 2:
            return pl.BlockSpec(bshape, lambda b, l: (l, 0, 0),
                                pipeline_mode=pl.Buffered(buffers))
        return pl.BlockSpec(bshape, lambda b, l: (l, 0, 0))

    def final_spec(p):              # final-LN params, replicated
        return pl.BlockSpec(p.shape, lambda b, l: (0, 0))

    in_specs = [x_spec,
                layer_spec(ln1g), layer_spec(ln1b),
                layer_spec(wqkv, wt_buffers),
                layer_spec(wo), layer_spec(bo),
                layer_spec(ln2g), layer_spec(ln2b),
                layer_spec(w1, wt_buffers), layer_spec(b1),
                layer_spec(w2, wt_buffers), layer_spec(b2),
                final_spec(params["ln_g"]), final_spec(params["ln_b"])]

    grid_spec = pltpu.PrefetchScalarGridSpec(
        num_scalar_prefetch=0,
        grid=(B // Bt, depth),                    # depth is the inner axis
        in_specs=in_specs,
        out_specs=x_spec,                         # resident across depth axis
    )

    kernel = make_transformer_kernel(heads, dim_head, Bt, N)
    return pl.pallas_call(
        kernel,
        out_shape=jax.ShapeDtypeStruct((B, N, D), jnp.float32),
        grid_spec=grid_spec,
        input_output_aliases={0: 0},              # update x in place in HBM
        compiler_params=pltpu.CompilerParams(
            dimension_semantics=("parallel", "arbitrary"),
            vmem_limit_bytes=vmem_limit,
        ),
    )(x, *layer_params, params["ln_g"], params["ln_b"])


# ---------------- parameter init (deterministic, synthetic) ----------------

def init_params(key, dim, depth, heads, dim_head, mlp_dim):
    inner = heads * dim_head
    layers = []
    for _ in range(depth):
        key, k0, k1, k2, k3 = jax.random.split(key, 5)
        ln1_g = jnp.ones((1, dim), jnp.float32)
        ln1_b = jnp.zeros((1, dim), jnp.float32)
        wqkv = (jax.random.normal(k0, (dim, 3 * inner)) * 0.05).astype(jnp.float32)
        wo = (jax.random.normal(k1, (inner, dim)) * 0.05).astype(jnp.float32)
        bo = jnp.zeros((1, dim), jnp.float32)
        ln2_g = jnp.ones((1, dim), jnp.float32)
        ln2_b = jnp.zeros((1, dim), jnp.float32)
        w1 = (jax.random.normal(k2, (dim, mlp_dim)) * 0.05).astype(jnp.float32)
        b1 = jnp.zeros((1, mlp_dim), jnp.float32)
        w2 = (jax.random.normal(k3, (mlp_dim, dim)) * 0.05).astype(jnp.float32)
        b2 = jnp.zeros((1, dim), jnp.float32)
        layers.append((ln1_g, ln1_b, wqkv, wo, bo, ln2_g, ln2_b, w1, b1, w2, b2))
    return {
        "layers": layers,
        "ln_g": jnp.ones((1, dim), jnp.float32),
        "ln_b": jnp.zeros((1, dim), jnp.float32),
    }


# ---------------- pure-JAX reference (same math, f32) ----------------

def reference_forward(x, params, heads, dim_head):
    scale = dim_head ** -0.5
    inner = heads * dim_head
    for (ln1_g, ln1_b, wqkv, wo, bo, ln2_g, ln2_b, w1, b1, w2, b2) in params["layers"]:
        xn = _layernorm(x, ln1_g, ln1_b)
        qkv = xn @ wqkv
        q, k, v = jnp.split(qkv, 3, axis=-1)
        B, N, _ = x.shape
        q = q.reshape(B, N, heads, dim_head).transpose(0, 2, 1, 3)
        k = k.reshape(B, N, heads, dim_head).transpose(0, 2, 1, 3)
        v = v.reshape(B, N, heads, dim_head).transpose(0, 2, 1, 3)
        dots = jnp.einsum("bhid,bhjd->bhij", q, k) * scale
        attn = jax.nn.softmax(dots, axis=-1)
        out = jnp.einsum("bhij,bhjd->bhid", attn, v)
        out = out.transpose(0, 2, 1, 3).reshape(B, N, inner)
        x = x + (out @ wo + bo)
        xn2 = _layernorm(x, ln2_g, ln2_b)
        x = x + (jax.nn.gelu(xn2 @ w1 + b1, approximate=True) @ w2 + b2)
    return _layernorm(x, params["ln_g"], params["ln_b"])


if __name__ == "__main__":
    # small shapes consistent with the module's forward: x is (batch, tokens, dim)
    B, N = 2, 8
    dim, depth, heads, dim_head, mlp_dim = 32, 2, 4, 8, 64

    key = jax.random.PRNGKey(0)
    key, xkey, pkey = jax.random.split(key, 3)
    x = jax.random.normal(xkey, (B, N, dim), dtype=jnp.float32)
    params = init_params(pkey, dim, depth, heads, dim_head, mlp_dim)

    fwd = jax.jit(functools.partial(transformer_forward, heads=heads, dim_head=dim_head))
    y = fwd(x, params)
    y = jax.block_until_ready(y)

    y_ref = reference_forward(x, params, heads, dim_head)
    assert y.shape == (B, N, dim)
    # bf16 MXU operands (incl. scale folded into wqkv) + approximate EUP
    # reciprocal vs. a pure-f32 reference -> loose tolerance.
    assert jnp.allclose(y, y_ref, atol=3e-2, rtol=3e-2), "mismatch vs JAX reference"

    print("KERNEL_OK")
</pallas_src>

<mosaic_0001>
module attributes {stable_mosaic.version = 11 : i64} {
  func.func @kernel(%arg0: i32, %arg1: i32, %arg2: memref<2x8x32xf32, #tpu.memory_space<vmem>>, %arg3: memref<1x1x32xf32, #tpu.memory_space<vmem>>, %arg4: memref<1x1x32xf32, #tpu.memory_space<vmem>>, %arg5: memref<1x32x96xbf16, #tpu.memory_space<vmem>>, %arg6: memref<1x32x32xbf16, #tpu.memory_space<vmem>>, %arg7: memref<1x1x32xf32, #tpu.memory_space<vmem>>, %arg8: memref<1x1x32xf32, #tpu.memory_space<vmem>>, %arg9: memref<1x1x32xf32, #tpu.memory_space<vmem>>, %arg10: memref<1x32x64xbf16, #tpu.memory_space<vmem>>, %arg11: memref<1x1x64xf32, #tpu.memory_space<vmem>>, %arg12: memref<1x64x32xbf16, #tpu.memory_space<vmem>>, %arg13: memref<1x1x32xf32, #tpu.memory_space<vmem>>, %arg14: memref<1x32xf32, #tpu.memory_space<vmem>>, %arg15: memref<1x32xf32, #tpu.memory_space<vmem>>, %arg16: memref<2x8x32xf32, #tpu.memory_space<vmem>>) attributes {dimension_semantics = [#tpu.dimension_semantics<parallel>, #tpu.dimension_semantics<arbitrary>], iteration_bounds = array<i64: 1, 2>, scalar_prefetch = 0 : i64, scratch_operands = 0 : i64, tpu.core_type = #tpu.core_type<tc>, window_params = [{transform_indices = @transform_0, window_bounds = array<i64: 2, 8, 32>}, {transform_indices = @transform_1, window_bounds = array<i64: 1, 1, 32>}, {transform_indices = @transform_2, window_bounds = array<i64: 1, 1, 32>}, {transform_indices = @transform_3, window_bounds = array<i64: 1, 32, 96>}, {transform_indices = @transform_4, window_bounds = array<i64: 1, 32, 32>}, {transform_indices = @transform_5, window_bounds = array<i64: 1, 1, 32>}, {transform_indices = @transform_6, window_bounds = array<i64: 1, 1, 32>}, {transform_indices = @transform_7, window_bounds = array<i64: 1, 1, 32>}, {transform_indices = @transform_8, window_bounds = array<i64: 1, 32, 64>}, {transform_indices = @transform_9, window_bounds = array<i64: 1, 1, 64>}, {transform_indices = @transform_10, window_bounds = array<i64: 1, 64, 32>}, {transform_indices = @transform_11, window_bounds = array<i64: 1, 1, 32>}, {pipeline_mode = #tpu.pipeline_mode<synchronous>, transform_indices = @transform_12, window_bounds = array<i64: 1, 32>}, {pipeline_mode = #tpu.pipeline_mode<synchronous>, transform_indices = @transform_13, window_bounds = array<i64: 1, 32>}, {transform_indices = @transform_14, window_bounds = array<i64: 2, 8, 32>}]} {
    %c0_i32 = arith.constant 0 : i32
    %0 = arith.cmpi eq, %arg1, %c0_i32 : i32
    %1 = arith.extui %0 : i1 to i32
    %c0_i32_0 = arith.constant 0 : i32
    %2 = arith.cmpi ne, %1, %c0_i32_0 : i32
    scf.if %2 {
      %c0_60 = arith.constant 0 : index
      %c0_61 = arith.constant 0 : index
      %c0_62 = arith.constant 0 : index
      %137 = vector.load %arg2[%c0_60, %c0_61, %c0_62] : memref<2x8x32xf32, #tpu.memory_space<vmem>>, vector<2x8x32xf32>
      %c0_63 = arith.constant 0 : index
      %c0_64 = arith.constant 0 : index
      %c0_65 = arith.constant 0 : index
      %138 = vector.load %arg16[%c0_63, %c0_64, %c0_65] : memref<2x8x32xf32, #tpu.memory_space<vmem>>, vector<2x8x32xf32>
      tpu.vector_store %arg16[%c0_63, %c0_64, %c0_65], %137 {strides = array<i32>} : memref<2x8x32xf32, #tpu.memory_space<vmem>>, vector<2x8x32xf32>,
    } else {
    }
    %c0 = arith.constant 0 : index
    %c0_1 = arith.constant 0 : index
    %c0_2 = arith.constant 0 : index
    %3 = vector.load %arg16[%c0, %c0_1, %c0_2] : memref<2x8x32xf32, #tpu.memory_space<vmem>>, vector<2x8x32xf32>
    %4 = vector.shape_cast %3 : vector<2x8x32xf32> to vector<16x32xf32>
    %c0_3 = arith.constant 0 : index
    %c0_4 = arith.constant 0 : index
    %c0_5 = arith.constant 0 : index
    %5 = vector.load %arg3[%c0_3, %c0_4, %c0_5] : memref<1x1x32xf32, #tpu.memory_space<vmem>>, vector<1x1x32xf32>
    %6 = vector.shape_cast %5 : vector<1x1x32xf32> to vector<1x32xf32>
    %c0_6 = arith.constant 0 : index
    %c0_7 = arith.constant 0 : index
    %c0_8 = arith.constant 0 : index
    %7 = vector.load %arg4[%c0_6, %c0_7, %c0_8] : memref<1x1x32xf32, #tpu.memory_space<vmem>>, vector<1x1x32xf32>
    %8 = vector.shape_cast %7 : vector<1x1x32xf32> to vector<1x32xf32>
    %cst = arith.constant dense<0.000000e+00> : vector<16xf32>
    %9 = vector.multi_reduction <add>, %4, %cst [1] : vector<16x32xf32> to vector<16xf32>
    %10 = vector.shape_cast %9 : vector<16xf32> to vector<16x1xf32>
    %cst_9 = arith.constant 3.200000e+01 : f32
    %11 = vector.broadcast %cst_9 : f32 to vector<16x1xf32>
    %12 = arith.divf %10, %11 : vector<16x1xf32>
    %13 = vector.broadcast %12 : vector<16x1xf32> to vector<16x32xf32>
    %14 = arith.subf %4, %13 : vector<16x32xf32>
    %15 = arith.mulf %14, %14 : vector<16x32xf32>
    %cst_10 = arith.constant dense<0.000000e+00> : vector<16xf32>
    %16 = vector.multi_reduction <add>, %15, %cst_10 [1] : vector<16x32xf32> to vector<16xf32>
    %17 = vector.shape_cast %16 : vector<16xf32> to vector<16x1xf32>
    %cst_11 = arith.constant 3.200000e+01 : f32
    %18 = vector.broadcast %cst_11 : f32 to vector<16x1xf32>
    %19 = arith.divf %17, %18 : vector<16x1xf32>
    %20 = vector.broadcast %12 : vector<16x1xf32> to vector<16x32xf32>
    %21 = arith.subf %4, %20 : vector<16x32xf32>
    %cst_12 = arith.constant 9.99999974E-6 : f32
    %22 = vector.broadcast %cst_12 : f32 to vector<16x1xf32>
    %23 = arith.addf %19, %22 : vector<16x1xf32>
    %24 = math.rsqrt %23 : vector<16x1xf32>
    %25 = vector.broadcast %24 : vector<16x1xf32> to vector<16x32xf32>
    %26 = arith.mulf %21, %25 : vector<16x32xf32>
    %27 = vector.broadcast %6 : vector<1x32xf32> to vector<16x32xf32>
    %28 = arith.mulf %26, %27 : vector<16x32xf32>
    %29 = vector.broadcast %8 : vector<1x32xf32> to vector<16x32xf32>
    %30 = arith.addf %28, %29 : vector<16x32xf32>
    %31 = arith.truncf %30 : vector<16x32xf32> to vector<16x32xbf16>
    %c0_13 = arith.constant 0 : index
    %c0_14 = arith.constant 0 : index
    %c0_15 = arith.constant 0 : index
    %32 = vector.load %arg5[%c0_13, %c0_14, %c0_15] : memref<1x32x96xbf16, #tpu.memory_space<vmem>>, vector<1x32x96xbf16>
    %33 = vector.shape_cast %32 : vector<1x32x96xbf16> to vector<32x96xbf16>
    %cst_16 = arith.constant dense<0.000000e+00> : vector<16x96xf32>
    %34 = tpu.matmul %31, %33, %cst_16 {dimension_numbers = #tpu.dot_dimension_numbers<[1], [0], [0], [1], [0, 0, 1, 1], [], []>} : vector<16x32xbf16>, vector<32x96xbf16>, vector<16x96xf32> -> vector<16x96xf32>
    %35 = vector.extract_strided_slice %34 {offsets = [0, 0], sizes = [16, 32], strides = [1, 1]} : vector<16x96xf32> to vector<16x32xf32>
    %36 = vector.shape_cast %35 : vector<16x32xf32> to vector<2x8x4x8xf32>
    %37 = tpu.transpose %36, [0, 2, 1, 3] : vector<2x8x4x8xf32> -> vector<2x4x8x8xf32>
    %38 = vector.shape_cast %37 : vector<2x4x8x8xf32> to vector<8x8x8xf32>
    %39 = arith.truncf %38 : vector<8x8x8xf32> to vector<8x8x8xbf16>
    %40 = vector.extract_strided_slice %34 {offsets = [0, 32], sizes = [16, 32], strides = [1, 1]} : vector<16x96xf32> to vector<16x32xf32>
    %41 = vector.shape_cast %40 : vector<16x32xf32> to vector<2x8x4x8xf32>
    %42 = tpu.transpose %41, [0, 2, 1, 3] : vector<2x8x4x8xf32> -> vector<2x4x8x8xf32>
    %43 = vector.shape_cast %42 : vector<2x4x8x8xf32> to vector<8x8x8xf32>
    %44 = arith.truncf %43 : vector<8x8x8xf32> to vector<8x8x8xbf16>
    %45 = vector.extract_strided_slice %34 {offsets = [0, 64], sizes = [16, 32], strides = [1, 1]} : vector<16x96xf32> to vector<16x32xf32>
    %46 = vector.shape_cast %45 : vector<16x32xf32> to vector<2x8x4x8xf32>
    %47 = tpu.transpose %46, [0, 2, 1, 3] : vector<2x8x4x8xf32> -> vector<2x4x8x8xf32>
    %48 = vector.shape_cast %47 : vector<2x4x8x8xf32> to vector<8x8x8xf32>
    %49 = arith.truncf %48 : vector<8x8x8xf32> to vector<8x8x8xbf16>
    "tpu.trace_start"() <{level = 10 : i32, message = "bqd,bkd->bqk"}> : () -> ()
    %cst_17 = arith.constant dense<0.000000e+00> : vector<8x8x8xf32>
    %50 = tpu.matmul %39, %44, %cst_17 {dimension_numbers = #tpu.dot_dimension_numbers<[2], [2], [1], [1], [0, 0, 0, 1, 1, 1], [0], [0]>} : vector<8x8x8xbf16>, vector<8x8x8xbf16>, vector<8x8x8xf32> -> vector<8x8x8xf32>
    "tpu.trace_stop"() : () -> ()
    %cst_18 = arith.constant dense<0xFF800000> : vector<8x8xf32>
    %51 = vector.multi_reduction <maximumf>, %50, %cst_18 [2] : vector<8x8x8xf32> to vector<8x8xf32>
    %52 = vector.shape_cast %51 : vector<8x8xf32> to vector<8x8x1xf32>
    %53 = vector.broadcast %52 : vector<8x8x1xf32> to vector<8x8x8xf32>
    %54 = arith.subf %50, %53 : vector<8x8x8xf32>
    %55 = math.exp %54 : vector<8x8x8xf32>
    %cst_19 = arith.constant dense<0.000000e+00> : vector<8x8xf32>
    %56 = vector.multi_reduction <add>, %55, %cst_19 [2] : vector<8x8x8xf32> to vector<8x8xf32>
    %57 = vector.shape_cast %56 : vector<8x8xf32> to vector<8x8x1xf32>
    %58 = tpu.reciprocal %57 {approx = true} : vector<8x8x1xf32> -> vector<8x8x1xf32>
    %59 = vector.broadcast %58 : vector<8x8x1xf32> to vector<8x8x8xf32>
    %60 = arith.mulf %55, %59 : vector<8x8x8xf32>
    %61 = arith.truncf %60 : vector<8x8x8xf32> to vector<8x8x8xbf16>
    "tpu.trace_start"() <{level = 10 : i32, message = "bqk,bkd->bqd"}> : () -> ()
    %cst_20 = arith.constant dense<0.000000e+00> : vector<8x8x8xf32>
    %62 = tpu.matmul %61, %49, %cst_20 {dimension_numbers = #tpu.dot_dimension_numbers<[2], [1], [1], [2], [0, 0, 0, 1, 1, 2], [0], [0]>} : vector<8x8x8xbf16>, vector<8x8x8xbf16>, vector<8x8x8xf32> -> vector<8x8x8xf32>
    "tpu.trace_stop"() : () -> ()
    %63 = vector.shape_cast %62 : vector<8x8x8xf32> to vector<2x4x8x8xf32>
    %64 = tpu.transpose %63, [0, 2, 1, 3] : vector<2x4x8x8xf32> -> vector<2x8x4x8xf32>
    %65 = vector.shape_cast %64 : vector<2x8x4x8xf32> to vector<16x32xf32>
    %66 = arith.truncf %65 : vector<16x32xf32> to vector<16x32xbf16>
    %c0_21 = arith.constant 0 : index
    %c0_22 = arith.constant 0 : index
    %c0_23 = arith.constant 0 : index
    %67 = vector.load %arg6[%c0_21, %c0_22, %c0_23] : memref<1x32x32xbf16, #tpu.memory_space<vmem>>, vector<1x32x32xbf16>
    %68 = vector.shape_cast %67 : vector<1x32x32xbf16> to vector<32x32xbf16>
    %cst_24 = arith.constant dense<0.000000e+00> : vector<16x32xf32>
    %69 = tpu.matmul %66, %68, %cst_24 {dimension_numbers = #tpu.dot_dimension_numbers<[1], [0], [0], [1], [0, 0, 1, 1], [], []>} : vector<16x32xbf16>, vector<32x32xbf16>, vector<16x32xf32> -> vector<16x32xf32>
    %c0_25 = arith.constant 0 : index
    %c0_26 = arith.constant 0 : index
    %c0_27 = arith.constant 0 : index
    %70 = vector.load %arg7[%c0_25, %c0_26, %c0_27] : memref<1x1x32xf32, #tpu.memory_space<vmem>>, vector<1x1x32xf32>
    %71 = vector.shape_cast %70 : vector<1x1x32xf32> to vector<1x32xf32>
    %72 = vector.broadcast %71 : vector<1x32xf32> to vector<16x32xf32>
    %73 = arith.addf %69, %72 : vector<16x32xf32>
    %74 = arith.addf %4, %73 : vector<16x32xf32>
    %c0_28 = arith.constant 0 : index
    %c0_29 = arith.constant 0 : index
    %c0_30 = arith.constant 0 : index
    %75 = vector.load %arg8[%c0_28, %c0_29, %c0_30] : memref<1x1x32xf32, #tpu.memory_space<vmem>>, vector<1x1x32xf32>
    %76 = vector.shape_cast %75 : vector<1x1x32xf32> to vector<1x32xf32>
    %c0_31 = arith.constant 0 : index
    %c0_32 = arith.constant 0 : index
    %c0_33 = arith.constant 0 : index
    %77 = vector.load %arg9[%c0_31, %c0_32, %c0_33] : memref<1x1x32xf32, #tpu.memory_space<vmem>>, vector<1x1x32xf32>
    %78 = vector.shape_cast %77 : vector<1x1x32xf32> to vector<1x32xf32>
    %cst_34 = arith.constant dense<0.000000e+00> : vector<16xf32>
    %79 = vector.multi_reduction <add>, %74, %cst_34 [1] : vector<16x32xf32> to vector<16xf32>
    %80 = vector.shape_cast %79 : vector<16xf32> to vector<16x1xf32>
    %cst_35 = arith.constant 3.200000e+01 : f32
    %81 = vector.broadcast %cst_35 : f32 to vector<16x1xf32>
    %82 = arith.divf %80, %81 : vector<16x1xf32>
    %83 = vector.broadcast %82 : vector<16x1xf32> to vector<16x32xf32>
    %84 = arith.subf %74, %83 : vector<16x32xf32>
    %85 = arith.mulf %84, %84 : vector<16x32xf32>
    %cst_36 = arith.constant dense<0.000000e+00> : vector<16xf32>
    %86 = vector.multi_reduction <add>, %85, %cst_36 [1] : vector<16x32xf32> to vector<16xf32>
    %87 = vector.shape_cast %86 : vector<16xf32> to vector<16x1xf32>
    %cst_37 = arith.constant 3.200000e+01 : f32
    %88 = vector.broadcast %cst_37 : f32 to vector<16x1xf32>
    %89 = arith.divf %87, %88 : vector<16x1xf32>
    %90 = vector.broadcast %82 : vector<16x1xf32> to vector<16x32xf32>
    %91 = arith.subf %74, %90 : vector<16x32xf32>
    %cst_38 = arith.constant 9.99999974E-6 : f32
    %92 = vector.broadcast %cst_38 : f32 to vector<16x1xf32>
    %93 = arith.addf %89, %92 : vector<16x1xf32>
    %94 = math.rsqrt %93 : vector<16x1xf32>
    %95 = vector.broadcast %94 : vector<16x1xf32> to vector<16x32xf32>
    %96 = arith.mulf %91, %95 : vector<16x32xf32>
    %97 = vector.broadcast %76 : vector<1x32xf32> to vector<16x32xf32>
    %98 = arith.mulf %96, %97 : vector<16x32xf32>
    %99 = vector.broadcast %78 : vector<1x32xf32> to vector<16x32xf32>
    %100 = arith.addf %98, %99 : vector<16x32xf32>
    %101 = arith.truncf %100 : vector<16x32xf32> to vector<16x32xbf16>
    %c0_39 = arith.constant 0 : index
    %c0_40 = arith.constant 0 : index
    %c0_41 = arith.constant 0 : index
    %102 = vector.load %arg10[%c0_39, %c0_40, %c0_41] : memref<1x32x64xbf16, #tpu.memory_space<vmem>>, vector<1x32x64xbf16>
    %103 = vector.shape_cast %102 : vector<1x32x64xbf16> to vector<32x64xbf16>
    %cst_42 = arith.constant dense<0.000000e+00> : vector<16x64xf32>
    %104 = tpu.matmul %101, %103, %cst_42 {dimension_numbers = #tpu.dot_dimension_numbers<[1], [0], [0], [1], [0, 0, 1, 1], [], []>} : vector<16x32xbf16>, vector<32x64xbf16>, vector<16x64xf32> -> vector<16x64xf32>
    %c0_43 = arith.constant 0 : index
    %c0_44 = arith.constant 0 : index
    %c0_45 = arith.constant 0 : index
    %105 = vector.load %arg11[%c0_43, %c0_44, %c0_45] : memref<1x1x64xf32, #tpu.memory_space<vmem>>, vector<1x1x64xf32>
    %106 = vector.shape_cast %105 : vector<1x1x64xf32> to vector<1x64xf32>
    %107 = vector.broadcast %106 : vector<1x64xf32> to vector<16x64xf32>
    %108 = arith.addf %104, %107 : vector<16x64xf32>
    %109 = arith.mulf %108, %108 : vector<16x64xf32>
    %110 = arith.mulf %108, %109 : vector<16x64xf32>
    %cst_46 = arith.constant 4.471500e-02 : f32
    %111 = vector.broadcast %cst_46 : f32 to vector<16x64xf32>
    %112 = arith.mulf %111, %110 : vector<16x64xf32>
    %113 = arith.addf %108, %112 : vector<16x64xf32>
    %cst_47 = arith.constant 0.797884583 : f32
    %114 = vector.broadcast %cst_47 : f32 to vector<16x64xf32>
    %115 = arith.mulf %114, %113 : vector<16x64xf32>
    %116 = math.tanh %115 : vector<16x64xf32>
    %cst_48 = arith.constant 1.000000e+00 : f32
    %117 = vector.broadcast %cst_48 : f32 to vector<16x64xf32>
    %118 = arith.addf %117, %116 : vector<16x64xf32>
    %cst_49 = arith.constant 5.000000e-01 : f32
    %119 = vector.broadcast %cst_49 : f32 to vector<16x64xf32>
    %120 = arith.mulf %119, %118 : vector<16x64xf32>
    %121 = arith.mulf %108, %120 : vector<16x64xf32>
    %122 = arith.truncf %121 : vector<16x64xf32> to vector<16x64xbf16>
    %c0_50 = arith.constant 0 : index
    %c0_51 = arith.constant 0 : index
    %c0_52 = arith.constant 0 : index
    %123 = vector.load %arg12[%c0_50, %c0_51, %c0_52] : memref<1x64x32xbf16, #tpu.memory_space<vmem>>, vector<1x64x32xbf16>
    %124 = vector.shape_cast %123 : vector<1x64x32xbf16> to vector<64x32xbf16>
    %cst_53 = arith.constant dense<0.000000e+00> : vector<16x32xf32>
    %125 = tpu.matmul %122, %124, %cst_53 {dimension_numbers = #tpu.dot_dimension_numbers<[1], [0], [0], [1], [0, 0, 1, 1], [], []>} : vector<16x64xbf16>, vector<64x32xbf16>, vector<16x32xf32> -> vector<16x32xf32>
    %c0_54 = arith.constant 0 : index
    %c0_55 = arith.constant 0 : index
    %c0_56 = arith.constant 0 : index
    %126 = vector.load %arg13[%c0_54, %c0_55, %c0_56] : memref<1x1x32xf32, #tpu.memory_space<vmem>>, vector<1x1x32xf32>
    %127 = vector.shape_cast %126 : vector<1x1x32xf32> to vector<1x32xf32>
    %128 = vector.broadcast %127 : vector<1x32xf32> to vector<16x32xf32>
    %129 = arith.addf %125, %128 : vector<16x32xf32>
    %130 = arith.addf %74, %129 : vector<16x32xf32>
    %c1_i32 = arith.constant 1 : i32
    %131 = arith.cmpi slt, %arg1, %c1_i32 : i32
    %132 = arith.extui %131 : i1 to i32
    %c0_i32_57 = arith.constant 0 : i32
    %133 = arith.cmpi ne, %132, %c0_i32_57 : i32
    scf.if %133 {
      %137 = vector.shape_cast %130 : vector<16x32xf32> to vector<2x8x32xf32>
      %c0_60 = arith.constant 0 : index
      %c0_61 = arith.constant 0 : index
      %c0_62 = arith.constant 0 : index
      %138 = vector.load %arg16[%c0_60, %c0_61, %c0_62] : memref<2x8x32xf32, #tpu.memory_space<vmem>>, vector<2x8x32xf32>
      tpu.vector_store %arg16[%c0_60, %c0_61, %c0_62], %137 {strides = array<i32>} : memref<2x8x32xf32, #tpu.memory_space<vmem>>, vector<2x8x32xf32>,
    } else {
    }
    %c1_i32_58 = arith.constant 1 : i32
    %134 = arith.cmpi eq, %arg1, %c1_i32_58 : i32
    %135 = arith.extui %134 : i1 to i32
    %c0_i32_59 = arith.constant 0 : i32
    %136 = arith.cmpi ne, %135, %c0_i32_59 : i32
    scf.if %136 {
      %c0_60 = arith.constant 0 : index
      %c0_61 = arith.constant 0 : index
      %137 = vector.load %arg14[%c0_60, %c0_61] : memref<1x32xf32, #tpu.memory_space<vmem>>, vector<1x32xf32>
      %c0_62 = arith.constant 0 : index
      %c0_63 = arith.constant 0 : index
      %138 = vector.load %arg15[%c0_62, %c0_63] : memref<1x32xf32, #tpu.memory_space<vmem>>, vector<1x32xf32>
      %cst_64 = arith.constant dense<0.000000e+00> : vector<16xf32>
      %139 = vector.multi_reduction <add>, %130, %cst_64 [1] : vector<16x32xf32> to vector<16xf32>
      %140 = vector.shape_cast %139 : vector<16xf32> to vector<16x1xf32>
      %cst_65 = arith.constant 3.200000e+01 : f32
      %141 = vector.broadcast %cst_65 : f32 to vector<16x1xf32>
      %142 = arith.divf %140, %141 : vector<16x1xf32>
      %143 = vector.broadcast %142 : vector<16x1xf32> to vector<16x32xf32>
      %144 = arith.subf %130, %143 : vector<16x32xf32>
      %145 = arith.mulf %144, %144 : vector<16x32xf32>
      %cst_66 = arith.constant dense<0.000000e+00> : vector<16xf32>
      %146 = vector.multi_reduction <add>, %145, %cst_66 [1] : vector<16x32xf32> to vector<16xf32>
      %147 = vector.shape_cast %146 : vector<16xf32> to vector<16x1xf32>
      %cst_67 = arith.constant 3.200000e+01 : f32
      %148 = vector.broadcast %cst_67 : f32 to vector<16x1xf32>
      %149 = arith.divf %147, %148 : vector<16x1xf32>
      %150 = vector.broadcast %142 : vector<16x1xf32> to vector<16x32xf32>
      %151 = arith.subf %130, %150 : vector<16x32xf32>
      %cst_68 = arith.constant 9.99999974E-6 : f32
      %152 = vector.broadcast %cst_68 : f32 to vector<16x1xf32>
      %153 = arith.addf %149, %152 : vector<16x1xf32>
      %154 = math.rsqrt %153 : vector<16x1xf32>
      %155 = vector.broadcast %154 : vector<16x1xf32> to vector<16x32xf32>
      %156 = arith.mulf %151, %155 : vector<16x32xf32>
      %157 = vector.broadcast %137 : vector<1x32xf32> to vector<16x32xf32>
      %158 = arith.mulf %156, %157 : vector<16x32xf32>
      %159 = vector.broadcast %138 : vector<1x32xf32> to vector<16x32xf32>
      %160 = arith.addf %158, %159 : vector<16x32xf32>
      %161 = vector.shape_cast %160 : vector<16x32xf32> to vector<2x8x32xf32>
      %c0_69 = arith.constant 0 : index
      %c0_70 = arith.constant 0 : index
      %c0_71 = arith.constant 0 : index
      %162 = vector.load %arg16[%c0_69, %c0_70, %c0_71] : memref<2x8x32xf32, #tpu.memory_space<vmem>>, vector<2x8x32xf32>
      tpu.vector_store %arg16[%c0_69, %c0_70, %c0_71], %161 {strides = array<i32>} : memref<2x8x32xf32, #tpu.memory_space<vmem>>, vector<2x8x32xf32>,
    } else {
    }
    return
  }
  func.func @transform_0(%arg0: i32, %arg1: i32) -> (i32, i32, i32) {
    %c0_i32 = arith.constant 0 : i32
    %c0_i32_0 = arith.constant 0 : i32
    %c0_i32_1 = arith.constant 0 : i32
    return %arg0, %c0_i32, %c0_i32_0 : i32, i32, i32
  }
  func.func @transform_1(%arg0: i32, %arg1: i32) -> (i32, i32, i32) {
    %c0_i32 = arith.constant 0 : i32
    %c0_i32_0 = arith.constant 0 : i32
    %c0_i32_1 = arith.constant 0 : i32
    return %arg1, %c0_i32, %c0_i32_0 : i32, i32, i32
  }
  func.func @transform_2(%arg0: i32, %arg1: i32) -> (i32, i32, i32) {
    %c0_i32 = arith.constant 0 : i32
    %c0_i32_0 = arith.constant 0 : i32
    %c0_i32_1 = arith.constant 0 : i32
    return %arg1, %c0_i32, %c0_i32_0 : i32, i32, i32
  }
  func.func @transform_3(%arg0: i32, %arg1: i32) -> (i32, i32, i32) {
    %c0_i32 = arith.constant 0 : i32
    %c0_i32_0 = arith.constant 0 : i32
    %c0_i32_1 = arith.constant 0 : i32
    return %arg1, %c0_i32, %c0_i32_0 : i32, i32, i32
  }
  func.func @transform_4(%arg0: i32, %arg1: i32) -> (i32, i32, i32) {
    %c0_i32 = arith.constant 0 : i32
    %c0_i32_0 = arith.constant 0 : i32
    %c0_i32_1 = arith.constant 0 : i32
    return %arg1, %c0_i32, %c0_i32_0 : i32, i32, i32
  }
  func.func @transform_5(%arg0: i32, %arg1: i32) -> (i32, i32, i32) {
    %c0_i32 = arith.constant 0 : i32
    %c0_i32_0 = arith.constant 0 : i32
    %c0_i32_1 = arith.constant 0 : i32
    return %arg1, %c0_i32, %c0_i32_0 : i32, i32, i32
  }
  func.func @transform_6(%arg0: i32, %arg1: i32) -> (i32, i32, i32) {
    %c0_i32 = arith.constant 0 : i32
    %c0_i32_0 = arith.constant 0 : i32
    %c0_i32_1 = arith.constant 0 : i32
    return %arg1, %c0_i32, %c0_i32_0 : i32, i32, i32
  }
  func.func @transform_7(%arg0: i32, %arg1: i32) -> (i32, i32, i32) {
    %c0_i32 = arith.constant 0 : i32
    %c0_i32_0 = arith.constant 0 : i32
    %c0_i32_1 = arith.constant 0 : i32
    return %arg1, %c0_i32, %c0_i32_0 : i32, i32, i32
  }
  func.func @transform_8(%arg0: i32, %arg1: i32) -> (i32, i32, i32) {
    %c0_i32 = arith.constant 0 : i32
    %c0_i32_0 = arith.constant 0 : i32
    %c0_i32_1 = arith.constant 0 : i32
    return %arg1, %c0_i32, %c0_i32_0 : i32, i32, i32
  }
  func.func @transform_9(%arg0: i32, %arg1: i32) -> (i32, i32, i32) {
    %c0_i32 = arith.constant 0 : i32
    %c0_i32_0 = arith.constant 0 : i32
    %c0_i32_1 = arith.constant 0 : i32
    return %arg1, %c0_i32, %c0_i32_0 : i32, i32, i32
  }
  func.func @transform_10(%arg0: i32, %arg1: i32) -> (i32, i32, i32) {
    %c0_i32 = arith.constant 0 : i32
    %c0_i32_0 = arith.constant 0 : i32
    %c0_i32_1 = arith.constant 0 : i32
    return %arg1, %c0_i32, %c0_i32_0 : i32, i32, i32
  }
  func.func @transform_11(%arg0: i32, %arg1: i32) -> (i32, i32, i32) {
    %c0_i32 = arith.constant 0 : i32
    %c0_i32_0 = arith.constant 0 : i32
    %c0_i32_1 = arith.constant 0 : i32
    return %arg1, %c0_i32, %c0_i32_0 : i32, i32, i32
  }
  func.func @transform_12(%arg0: i32, %arg1: i32) -> (i32, i32) {
    %c0_i32 = arith.constant 0 : i32
    %c0_i32_0 = arith.constant 0 : i32
    %c0_i32_1 = arith.constant 0 : i32
    return %c0_i32, %c0_i32_0 : i32, i32
  }
  func.func @transform_13(%arg0: i32, %arg1: i32) -> (i32, i32) {
    %c0_i32 = arith.constant 0 : i32
    %c0_i32_0 = arith.constant 0 : i32
    %c0_i32_1 = arith.constant 0 : i32
    return %c0_i32, %c0_i32_0 : i32, i32
  }
  func.func @transform_14(%arg0: i32, %arg1: i32) -> (i32, i32, i32) {
    %c0_i32 = arith.constant 0 : i32
    %c0_i32_0 = arith.constant 0 : i32
    %c0_i32_1 = arith.constant 0 : i32
    return %arg0, %c0_i32, %c0_i32_0 : i32, i32, i32
  }
}

</mosaic_0001>

<llo_original>
// kernel: transformer_forward.1
$region0: #{transformer_forward.1}
  #allocation0 [shape = 'u32[]', space=smem, size = 0x4, offset = 0x4, fixed_abs, tag = 'smem constant byte address 0x4 - core index']
  #allocation1 [shape = 'u32[144,128]{1,0:T(1,128)}', space=vmem, size = 0x12000, scoped, tag = 'internal scratch']
  %s0 = inlined_call_operand.hbm [shape: f32[2,8,32], index: 0, kind: input, shape index: {}, may-alias: {0,14}]
  %s1 = inlined_call_operand.vmem [shape: f32[2,1,32], index: 1, kind: input, shape index: {}]
  %s2 = inlined_call_operand.vmem [shape: f32[2,1,32], index: 2, kind: input, shape index: {}]
  %s3 = inlined_call_operand.vmem [shape: bf16[2,32,96], index: 3, kind: input, shape index: {}]
  %s4 = inlined_call_operand.vmem [shape: bf16[2,32,32], index: 4, kind: input, shape index: {}]
  %s5 = inlined_call_operand.vmem [shape: f32[2,1,32], index: 5, kind: input, shape index: {}]
  %s6 = inlined_call_operand.vmem [shape: f32[2,1,32], index: 6, kind: input, shape index: {}]
  %s7 = inlined_call_operand.vmem [shape: f32[2,1,32], index: 7, kind: input, shape index: {}]
  %s8 = inlined_call_operand.vmem [shape: bf16[2,32,64], index: 8, kind: input, shape index: {}]
  %s9 = inlined_call_operand.vmem [shape: f32[2,1,64], index: 9, kind: input, shape index: {}]
  %s10 = inlined_call_operand.vmem [shape: bf16[2,64,32], index: 10, kind: input, shape index: {}]
  %s11 = inlined_call_operand.vmem [shape: f32[2,1,32], index: 11, kind: input, shape index: {}]
  %s12 = inlined_call_operand.vmem [shape: f32[1,32], index: 12, kind: input, shape index: {}]
  %s13 = inlined_call_operand.vmem [shape: f32[1,32], index: 13, kind: input, shape index: {}]
  %s14 = inlined_call_operand.hbm [shape: f32[2,8,32], index: 14, kind: output, shape index: {}, may-alias: {0,14}]
  %s15 = sld [smem:[#allocation0]]
  $region105: #{transformer_forward.1} parent=0
    _
  %s17 = ssub.s32 1, %s15
  %s18 = scalar_select 0, %s17, %s15
  $region1: #{transformer_forward.1} parent=0
    #allocation2 [shape = 'u8[8192]{0}', space=vmem, size = 0x2000, scoped, tag = 'input window, operand 0, single buffered']
    #allocation3 [shape = 's32[2]{0}', space=sflag, size = 0x8, scoped, tag = 'scoped memory for transformer_forward.1']
    #allocation4 [shape = 's32[2]{0}', space=sflag, size = 0x8, scoped, tag = 'scoped memory for transformer_forward.1']
    #allocation5 [shape = 'u8[8192]{0}', space=vmem, size = 0x2000, scoped, tag = 'output window, operand 0, single buffered']
    %19 = vsyncpa [#allocation3], 0
    %20 = vsyncpa [#allocation4], 0
    loop: start=0, step=1, limit=4
    $region2: #{transformer_forward.1} parent=1 // loop_pre_header
      _
    $region3: #{transformer_forward.1} parent=1 // loop_header
      %s22 = sphi 0, %s26
      %p23 = scmp.ge.s32.totalorder %s22, 4
      %s29 = sphi 0, %s41
      %s30 = sphi 0, %s37
      %s31 = sphi 0, %s29
      %s32 = sphi 0, %s30
      %s33 = sphi 0, %s31
      %s34 = sphi 0, %s32
      %s44 = sphi 0, %s46
      %s47 = sphi 0, %s44
      %s48 = sphi 0, %s47
      %s64 = sphi 0, %s48
      %s70 = sphi 0, %s72
      %s73 = sphi 0, %s70
      %s74 = sphi 0, %s73
      %s90 = sphi 0, %s74
      %s96 = sphi 0, %s98
      %s99 = sphi 0, %s96
      %s100 = sphi 0, %s99
      %s116 = sphi 0, %s100
      %s122 = sphi 0, %s124
      %s125 = sphi 0, %s122
      %s126 = sphi 0, %s125
      %s142 = sphi 0, %s126
      %s148 = sphi 0, %s150
      %s151 = sphi 0, %s148
      %s152 = sphi 0, %s151
      %s168 = sphi 0, %s152
      %s174 = sphi 0, %s176
      %s177 = sphi 0, %s174
      %s178 = sphi 0, %s177
      %s194 = sphi 0, %s178
      %s200 = sphi 0, %s202
      %s203 = sphi 0, %s200
      %s204 = sphi 0, %s203
      %s220 = sphi 0, %s204
      %s226 = sphi 0, %s228
      %s229 = sphi 0, %s226
      %s230 = sphi 0, %s229
      %s246 = sphi 0, %s230
      %s252 = sphi 0, %s254
      %s255 = sphi 0, %s252
      %s256 = sphi 0, %s255
      %s272 = sphi 0, %s256
      %s278 = sphi 0, %s280
      %s281 = sphi 0, %s278
      %s282 = sphi 0, %s281
      %s298 = sphi 0, %s282
      %s304 = sphi 0, %s306
      %s307 = sphi 0, %s304
      %s308 = sphi 0, %s307
      %s324 = sphi 0, %s308
      %s330 = sphi 0, %s332
      %s333 = sphi 0, %s330
      %s334 = sphi 0, %s333
      %s350 = sphi 0, %s334
      %s354 = sphi 0, %s354
      %s356 = sphi 0, %s354
      %s357 = sphi 0, %s356
      %s371 = sphi 0, %s357
      %s375 = sphi 0, %s375
      %s377 = sphi 0, %s375
      %s378 = sphi 0, %s377
      %s392 = sphi 0, %s378
      %s398 = sphi 0, %s400
      %s401 = sphi 0, %s398
      %s402 = sphi 0, %s401
      %s418 = sphi 0, %s402
    $region4: #{transformer_forward.1} parent=1 // loop_header_branch
      %25 = sbr.rel (%p23) target = $region8
    $region5: #{transformer_forward.1} parent=1 // loop_body
      %s27 = ssub.s32 %s22, 1
      %s28 = ssub.s32 %s22, 2
      %s35 = sadd.s32 1, %s30
      %p36 = scmp.ge.s32.totalorder %s35, 2
      %s37 = scalar_select %p36, 0, %s35
      %s38 = sadd.s32 1, %s29
      %s39 = scalar_select %p36, %s38, %s29
      %p40 = scmp.ge.s32.totalorder %s39, 1
      %s41 = scalar_select %p40, 0, %s39
      %s42 = ssub.s32 %s29, %s41
      %p43 = scmp.eq.s32.totalorder %s42, 0
      %s45 = sadd.s32 %s44, 1
      %s46 = scalar_select %p43, %s44, %s45
      %p49 = pneg %p43
      %p50 = scmp.eq.s32.totalorder %s22, 1
      %p51 = por %p49, %p50
      %p52 = scmp.ne.s32.totalorder %s44, %s47
      %p53 = scmp.eq.s32.totalorder %s22, 0
      %p54 = por %p52, %p53
      %p55 = scmp.ne.s32.totalorder %s44, %s47
      %p56 = scmp.eq.s32.totalorder %s27, 1
      %p57 = por %p55, %p56
      %p58 = scmp.ne.s32.totalorder %s47, %s48
      %p59 = scmp.eq.s32.totalorder %s27, 0
      %p60 = por %p58, %p59
      %p61 = scmp.ne.s32.totalorder %s47, %s48
      %p62 = scmp.eq.s32.totalorder %s28, 1
      %p63 = por %p61, %p62
      %p65 = scmp.ne.s32.totalorder %s48, %s64
      %p66 = scmp.eq.s32.totalorder %s28, 0
      %p67 = por %p65, %p66
      %s68 = ssub.s32 %s30, %s37
      %p69 = scmp.eq.s32.totalorder %s68, 0
      %s71 = sadd.s32 %s70, 1
      %s72 = scalar_select %p69, %s70, %s71
      %p75 = pneg %p69
      %p76 = scmp.eq.s32.totalorder %s22, 1
      %p77 = por %p75, %p76
      %p78 = scmp.ne.s32.totalorder %s70, %s73
      %p79 = scmp.eq.s32.totalorder %s22, 0
      %p80 = por %p78, %p79
      %p81 = scmp.ne.s32.totalorder %s70, %s73
      %p82 = scmp.eq.s32.totalorder %s27, 1
      %p83 = por %p81, %p82
      %p84 = scmp.ne.s32.totalorder %s73, %s74
      %p85 = scmp.eq.s32.totalorder %s27, 0
      %p86 = por %p84, %p85
      %p87 = scmp.ne.s32.totalorder %s73, %s74
      %p88 = scmp.eq.s32.totalorder %s28, 1
      %p89 = por %p87, %p88
      %p91 = scmp.ne.s32.totalorder %s74, %s90
      %p92 = scmp.eq.s32.totalorder %s28, 0
      %p93 = por %p91, %p92
      %s94 = ssub.s32 %s30, %s37
      %p95 = scmp.eq.s32.totalorder %s94, 0
      %s97 = sadd.s32 %s96, 1
      %s98 = scalar_select %p95, %s96, %s97
      %p101 = pneg %p95
      %p102 = scmp.eq.s32.totalorder %s22, 1
      %p103 = por %p101, %p102
      %p104 = scmp.ne.s32.totalorder %s96, %s99
      %p105 = scmp.eq.s32.totalorder %s22, 0
      %p106 = por %p104, %p105
      %p107 = scmp.ne.s32.totalorder %s96, %s99
      %p108 = scmp.eq.s32.totalorder %s27, 1
      %p109 = por %p107, %p108
      %p110 = scmp.ne.s32.totalorder %s99, %s100
      %p111 = scmp.eq.s32.totalorder %s27, 0
      %p112 = por %p110, %p111
      %p113 = scmp.ne.s32.totalorder %s99, %s100
      %p114 = scmp.eq.s32.totalorder %s28, 1
      %p115 = por %p113, %p114
      %p117 = scmp.ne.s32.totalorder %s100, %s116
      %p118 = scmp.eq.s32.totalorder %s28, 0
      %p119 = por %p117, %p118
      %s120 = ssub.s32 %s30, %s37
      %p121 = scmp.eq.s32.totalorder %s120, 0
      %s123 = sadd.s32 %s122, 1
      %s124 = scalar_select %p121, %s122, %s123
      %p127 = pneg %p121
      %p128 = scmp.eq.s32.totalorder %s22, 1
      %p129 = por %p127, %p128
      %p130 = scmp.ne.s32.totalorder %s122, %s125
      %p131 = scmp.eq.s32.totalorder %s22, 0
      %p132 = por %p130, %p131
      %p133 = scmp.ne.s32.totalorder %s122, %s125
      %p134 = scmp.eq.s32.totalorder %s27, 1
      %p135 = por %p133, %p134
      %p136 = scmp.ne.s32.totalorder %s125, %s126
      %p137 = scmp.eq.s32.totalorder %s27, 0
      %p138 = por %p136, %p137
      %p139 = scmp.ne.s32.totalorder %s125, %s126
      %p140 = scmp.eq.s32.totalorder %s28, 1
      %p141 = por %p139, %p140
      %p143 = scmp.ne.s32.totalorder %s126, %s142
      %p144 = scmp.eq.s32.totalorder %s28, 0
      %p145 = por %p143, %p144
      %s146 = ssub.s32 %s30, %s37
      %p147 = scmp.eq.s32.totalorder %s146, 0
      %s149 = sadd.s32 %s148, 1
      %s150 = scalar_select %p147, %s148, %s149
      %p153 = pneg %p147
      %p154 = scmp.eq.s32.totalorder %s22, 1
      %p155 = por %p153, %p154
      %p156 = scmp.ne.s32.totalorder %s148, %s151
      %p157 = scmp.eq.s32.totalorder %s22, 0
      %p158 = por %p156, %p157
      %p159 = scmp.ne.s32.totalorder %s148, %s151
      %p160 = scmp.eq.s32.totalorder %s27, 1
      %p161 = por %p159, %p160
      %p162 = scmp.ne.s32.totalorder %s151, %s152
      %p163 = scmp.eq.s32.totalorder %s27, 0
      %p164 = por %p162, %p163
      %p165 = scmp.ne.s32.totalorder %s151, %s152
      %p166 = scmp.eq.s32.totalorder %s28, 1
      %p167 = por %p165, %p166
      %p169 = scmp.ne.s32.totalorder %s152, %s168
      %p170 = scmp.eq.s32.totalorder %s28, 0
      %p171 = por %p169, %p170
      %s172 = ssub.s32 %s30, %s37
      %p173 = scmp.eq.s32.totalorder %s172, 0
      %s175 = sadd.s32 %s174, 1
      %s176 = scalar_select %p173, %s174, %s175
      %p179 = pneg %p173
      %p180 = scmp.eq.s32.totalorder %s22, 1
      %p181 = por %p179, %p180
      %p182 = scmp.ne.s32.totalorder %s174, %s177
      %p183 = scmp.eq.s32.totalorder %s22, 0
      %p184 = por %p182, %p183
      %p185 = scmp.ne.s32.totalorder %s174, %s177
      %p186 = scmp.eq.s32.totalorder %s27, 1
      %p187 = por %p185, %p186
      %p188 = scmp.ne.s32.totalorder %s177, %s178
      %p189 = scmp.eq.s32.totalorder %s27, 0
      %p190 = por %p188, %p189
      %p191 = scmp.ne.s32.totalorder %s177, %s178
      %p192 = scmp.eq.s32.totalorder %s28, 1
      %p193 = por %p191, %p192
      %p195 = scmp.ne.s32.totalorder %s178, %s194
      %p196 = scmp.eq.s32.totalorder %s28, 0
      %p197 = por %p195, %p196
      %s198 = ssub.s32 %s30, %s37
      %p199 = scmp.eq.s32.totalorder %s198, 0
      %s201 = sadd.s32 %s200, 1
      %s202 = scalar_select %p199, %s200, %s201
      %p205 = pneg %p199
      %p206 = scmp.eq.s32.totalorder %s22, 1
      %p207 = por %p205, %p206
      %p208 = scmp.ne.s32.totalorder %s200, %s203
      %p209 = scmp.eq.s32.totalorder %s22, 0
      %p210 = por %p208, %p209
      %p211 = scmp.ne.s32.totalorder %s200, %s203
      %p212 = scmp.eq.s32.totalorder %s27, 1
      %p213 = por %p211, %p212
      %p214 = scmp.ne.s32.totalorder %s203, %s204
      %p215 = scmp.eq.s32.totalorder %s27, 0
      %p216 = por %p214, %p215
      %p217 = scmp.ne.s32.totalorder %s203, %s204
      %p218 = scmp.eq.s32.totalorder %s28, 1
      %p219 = por %p217, %p218
      %p221 = scmp.ne.s32.totalorder %s204, %s220
      %p222 = scmp.eq.s32.totalorder %s28, 0
      %p223 = por %p221, %p222
      %s224 = ssub.s32 %s30, %s37
      %p225 = scmp.eq.s32.totalorder %s224, 0
      %s227 = sadd.s32 %s226, 1
      %s228 = scalar_select %p225, %s226, %s227
      %p231 = pneg %p225
      %p232 = scmp.eq.s32.totalorder %s22, 1
      %p233 = por %p231, %p232
      %p234 = scmp.ne.s32.totalorder %s226, %s229
      %p235 = scmp.eq.s32.totalorder %s22, 0
      %p236 = por %p234, %p235
      %p237 = scmp.ne.s32.totalorder %s226, %s229
      %p238 = scmp.eq.s32.totalorder %s27, 1
      %p239 = por %p237, %p238
      %p240 = scmp.ne.s32.totalorder %s229, %s230
      %p241 = scmp.eq.s32.totalorder %s27, 0
      %p242 = por %p240, %p241
      %p243 = scmp.ne.s32.totalorder %s229, %s230
      %p244 = scmp.eq.s32.totalorder %s28, 1
      %p245 = por %p243, %p244
      %p247 = scmp.ne.s32.totalorder %s230, %s246
      %p248 = scmp.eq.s32.totalorder %s28, 0
      %p249 = por %p247, %p248
      %s250 = ssub.s32 %s30, %s37
      %p251 = scmp.eq.s32.totalorder %s250, 0
      %s253 = sadd.s32 %s252, 1
      %s254 = scalar_select %p251, %s252, %s253
      %p257 = pneg %p251
      %p258 = scmp.eq.s32.totalorder %s22, 1
      %p259 = por %p257, %p258
      %p260 = scmp.ne.s32.totalorder %s252, %s255
      %p261 = scmp.eq.s32.totalorder %s22, 0
      %p262 = por %p260, %p261
      %p263 = scmp.ne.s32.totalorder %s252, %s255
      %p264 = scmp.eq.s32.totalorder %s27, 1
      %p265 = por %p263, %p264
      %p266 = scmp.ne.s32.totalorder %s255, %s256
      %p267 = scmp.eq.s32.totalorder %s27, 0
      %p268 = por %p266, %p267
      %p269 = scmp.ne.s32.totalorder %s255, %s256
      %p270 = scmp.eq.s32.totalorder %s28, 1
      %p271 = por %p269, %p270
      %p273 = scmp.ne.s32.totalorder %s256, %s272
      %p274 = scmp.eq.s32.totalorder %s28, 0
      %p275 = por %p273, %p274
      %s276 = ssub.s32 %s30, %s37
      %p277 = scmp.eq.s32.totalorder %s276, 0
      %s279 = sadd.s32 %s278, 1
      %s280 = scalar_select %p277, %s278, %s279
      %p283 = pneg %p277
      %p284 = scmp.eq.s32.totalorder %s22, 1
      %p285 = por %p283, %p284
      %p286 = scmp.ne.s32.totalorder %s278, %s281
      %p287 = scmp.eq.s32.totalorder %s22, 0
      %p288 = por %p286, %p287
      %p289 = scmp.ne.s32.totalorder %s278, %s281
      %p290 = scmp.eq.s32.totalorder %s27, 1
      %p291 = por %p289, %p290
      %p292 = scmp.ne.s32.totalorder %s281, %s282
      %p293 = scmp.eq.s32.totalorder %s27, 0
      %p294 = por %p292, %p293
      %p295 = scmp.ne.s32.totalorder %s281, %s282
      %p296 = scmp.eq.s32.totalorder %s28, 1
      %p297 = por %p295, %p296
      %p299 = scmp.ne.s32.totalorder %s282, %s298
      %p300 = scmp.eq.s32.totalorder %s28, 0
      %p301 = por %p299, %p300
      %s302 = ssub.s32 %s30, %s37
      %p303 = scmp.eq.s32.totalorder %s302, 0
      %s305 = sadd.s32 %s304, 1
      %s306 = scalar_select %p303, %s304, %s305
      %p309 = pneg %p303
      %p310 = scmp.eq.s32.totalorder %s22, 1
      %p311 = por %p309, %p310
      %p312 = scmp.ne.s32.totalorder %s304, %s307
      %p313 = scmp.eq.s32.totalorder %s22, 0
      %p314 = por %p312, %p313
      %p315 = scmp.ne.s32.totalorder %s304, %s307
      %p316 = scmp.eq.s32.totalorder %s27, 1
      %p317 = por %p315, %p316
      %p318 = scmp.ne.s32.totalorder %s307, %s308
      %p319 = scmp.eq.s32.totalorder %s27, 0
      %p320 = por %p318, %p319
      %p321 = scmp.ne.s32.totalorder %s307, %s308
      %p322 = scmp.eq.s32.totalorder %s28, 1
      %p323 = por %p321, %p322
      %p325 = scmp.ne.s32.totalorder %s308, %s324
      %p326 = scmp.eq.s32.totalorder %s28, 0
      %p327 = por %p325, %p326
      %s328 = ssub.s32 %s30, %s37
      %p329 = scmp.eq.s32.totalorder %s328, 0
      %s331 = sadd.s32 %s330, 1
      %s332 = scalar_select %p329, %s330, %s331
      %p335 = pneg %p329
      %p336 = scmp.eq.s32.totalorder %s22, 1
      %p337 = por %p335, %p336
      %p338 = scmp.ne.s32.totalorder %s330, %s333
      %p339 = scmp.eq.s32.totalorder %s22, 0
      %p340 = por %p338, %p339
      %p341 = scmp.ne.s32.totalorder %s330, %s333
      %p342 = scmp.eq.s32.totalorder %s27, 1
      %p343 = por %p341, %p342
      %p344 = scmp.ne.s32.totalorder %s333, %s334
      %p345 = scmp.eq.s32.totalorder %s27, 0
      %p346 = por %p344, %p345
      %p347 = scmp.ne.s32.totalorder %s333, %s334
      %p348 = scmp.eq.s32.totalorder %s28, 1
      %p349 = por %p347, %p348
      %p351 = scmp.ne.s32.totalorder %s334, %s350
      %p352 = scmp.eq.s32.totalorder %s28, 0
      %p353 = por %p351, %p352
      %s355 = sadd.s32 %s354, 1
      %p358 = scmp.eq.s32.totalorder %s22, 1
      %p359 = scmp.ne.s32.totalorder %s354, %s356
      %p360 = scmp.eq.s32.totalorder %s22, 0
      %p361 = por %p359, %p360
      %p362 = scmp.ne.s32.totalorder %s354, %s356
      %p363 = scmp.eq.s32.totalorder %s27, 1
      %p364 = por %p362, %p363
      %p365 = scmp.ne.s32.totalorder %s356, %s357
      %p366 = scmp.eq.s32.totalorder %s27, 0
      %p367 = por %p365, %p366
      %p368 = scmp.ne.s32.totalorder %s356, %s357
      %p369 = scmp.eq.s32.totalorder %s28, 1
      %p370 = por %p368, %p369
      %p372 = scmp.ne.s32.totalorder %s357, %s371
      %p373 = scmp.eq.s32.totalorder %s28, 0
      %p374 = por %p372, %p373
      %s376 = sadd.s32 %s375, 1
      %p379 = scmp.eq.s32.totalorder %s22, 1
      %p380 = scmp.ne.s32.totalorder %s375, %s377
      %p381 = scmp.eq.s32.totalorder %s22, 0
      %p382 = por %p380, %p381
      %p383 = scmp.ne.s32.totalorder %s375, %s377
      %p384 = scmp.eq.s32.totalorder %s27, 1
      %p385 = por %p383, %p384
      %p386 = scmp.ne.s32.totalorder %s377, %s378
      %p387 = scmp.eq.s32.totalorder %s27, 0
      %p388 = por %p386, %p387
      %p389 = scmp.ne.s32.totalorder %s377, %s378
      %p390 = scmp.eq.s32.totalorder %s28, 1
      %p391 = por %p389, %p390
      %p393 = scmp.ne.s32.totalorder %s378, %s392
      %p394 = scmp.eq.s32.totalorder %s28, 0
      %p395 = por %p393, %p394
      %s396 = ssub.s32 %s29, %s41
      %p397 = scmp.eq.s32.totalorder %s396, 0
      %s399 = sadd.s32 %s398, 1
      %s400 = scalar_select %p397, %s398, %s399
      %p403 = pneg %p397
      %p404 = scmp.eq.s32.totalorder %s22, 1
      %p405 = por %p403, %p404
      %p406 = scmp.ne.s32.totalorder %s398, %s401
      %p407 = scmp.eq.s32.totalorder %s22, 0
      %p408 = por %p406, %p407
      %p409 = scmp.ne.s32.totalorder %s398, %s401
      %p410 = scmp.eq.s32.totalorder %s27, 1
      %p411 = por %p409, %p410
      %p412 = scmp.ne.s32.totalorder %s401, %s402
      %p413 = scmp.eq.s32.totalorder %s27, 0
      %p414 = por %p412, %p413
      %p415 = scmp.ne.s32.totalorder %s401, %s402
      %p416 = scmp.eq.s32.totalorder %s28, 1
      %p417 = por %p415, %p416
      %p419 = scmp.ne.s32.totalorder %s402, %s418
      %p420 = scmp.eq.s32.totalorder %s28, 0
      %p421 = por %p419, %p420
      %p422 = scmp.le.s32.totalorder 1, %s22
      %p423 = scmp.lt.s32.totalorder %s22, 3
      %p424 = pnand %p422, %p423
      %p425 = pneg %p424
      // Predicated region
      $region9: #{transformer_forward.1} parent=5 // pred_check
        _
      $region10: #{transformer_forward.1} parent=5 // pred_check_branch
        %427 = sbr.rel (%p424) target = $region12
      $region11: #{transformer_forward.1} parent=5 // pred_region
        %s428 = ssub.s32 %s22, 1
        // Predicated region
        $region13: #{transformer_forward.1} parent=11 // pred_check
          %p429 = pneg %p60
        $region14: #{transformer_forward.1} parent=11 // pred_check_branch
          %431 = sbr.rel (%p429) target = $region16
        $region15: #{transformer_forward.1} parent=11 // pred_region
          %s432 = smul.u32 2, %s31
          %s434 = ssub.s32 256, 256
          %435 = vsyncadd [#allocation3], %s434
          %s436 = smul.addr %s432, 128
          %s437 = scalar_lea.hbm %s0, %s436
          %s438 = sshll.u32 [#allocation2], 4
          %s439 = int_to_ptr.vmem [resolvable:$true] %s438
          %444 = dma.hbm_to_vmem [thread:$0]  %s437, 256, %s439, [#allocation3], 128, 128, 8
        $region16: #{transformer_forward.1} parent=11 // pred_fallthru
          _
        // Predicated region
        $region17: #{transformer_forward.1} parent=11 // pred_check
          %p445 = pneg %p367
        $region18: #{transformer_forward.1} parent=11 // pred_check_branch
          %447 = sbr.rel (%p445) target = $region20
        $region19: #{transformer_forward.1} parent=11 // pred_region
          _
        $region20: #{transformer_forward.1} parent=11 // pred_fallthru
          _
        // Predicated region
        $region21: #{transformer_forward.1} parent=11 // pred_check
          %p448 = pneg %p388
        $region22: #{transformer_forward.1} parent=11 // pred_check_branch
          %450 = sbr.rel (%p448) target = $region24
        $region23: #{transformer_forward.1} parent=11 // pred_region
          _
        $region24: #{transformer_forward.1} parent=11 // pred_fallthru
          _
      $region12: #{transformer_forward.1} parent=5 // pred_fallthru
        _
      %p451 = scmp.lt.s32.totalorder %s22, 2
      // Predicated region
      $region25: #{transformer_forward.1} parent=5 // pred_check
        %p452 = pneg %p451
      $region26: #{transformer_forward.1} parent=5 // pred_check_branch
        %454 = sbr.rel (%p452) target = $region28
      $region27: #{transformer_forward.1} parent=5 // pred_region
        // Predicated region
        $region29: #{transformer_forward.1} parent=27 // pred_check
          %p455 = pneg %p80
        $region30: #{transformer_forward.1} parent=27 // pred_check_branch
          %457 = sbr.rel (%p455) target = $region32
        $region31: #{transformer_forward.1} parent=27 // pred_region
          %p458 = scmp.lt.s32.totalorder %s30, 1
          %s459 = scalar_select %p458, %s30, 1
          %s460 = scalar_lea.vmem %s1, %s459
        $region32: #{transformer_forward.1} parent=27 // pred_fallthru
          _
        // Predicated region
        $region33: #{transformer_forward.1} parent=27 // pred_check
          %p461 = pneg %p106
        $region34: #{transformer_forward.1} parent=27 // pred_check_branch
          %463 = sbr.rel (%p461) target = $region36
        $region35: #{transformer_forward.1} parent=27 // pred_region
          %p464 = scmp.lt.s32.totalorder %s30, 1
          %s465 = scalar_select %p464, %s30, 1
          %s466 = scalar_lea.vmem %s2, %s465
        $region36: #{transformer_forward.1} parent=27 // pred_fallthru
          _
        // Predicated region
        $region37: #{transformer_forward.1} parent=27 // pred_check
          %p467 = pneg %p132
        $region38: #{transformer_forward.1} parent=27 // pred_check_branch
          %469 = sbr.rel (%p467) target = $region40
        $region39: #{transformer_forward.1} parent=27 // pred_region
          %p470 = scmp.lt.s32.totalorder %s30, 1
          %s471 = scalar_select %p470, %s30, 1
          %s472 = smul.addr %s471, 4
          %s473 = smul.addr %s472, 4
          %s474 = scalar_lea.vmem %s3, %s473
        $region40: #{transformer_forward.1} parent=27 // pred_fallthru
          _
        // Predicated region
        $region41: #{transformer_forward.1} parent=27 // pred_check
          %p475 = pneg %p158
        $region42: #{transformer_forward.1} parent=27 // pred_check_branch
          %477 = sbr.rel (%p475) target = $region44
        $region43: #{transformer_forward.1} parent=27 // pred_region
          %p478 = scmp.lt.s32.totalorder %s30, 1
          %s479 = scalar_select %p478, %s30, 1
          %s480 = smul.addr %s479, 4
          %s481 = smul.addr %s480, 4
          %s482 = scalar_lea.vmem %s4, %s481
        $region44: #{transformer_forward.1} parent=27 // pred_fallthru
          _
        // Predicated region
        $region45: #{transformer_forward.1} parent=27 // pred_check
          %p483 = pneg %p184
        $region46: #{transformer_forward.1} parent=27 // pred_check_branch
          %485 = sbr.rel (%p483) target = $region48
        $region47: #{transformer_forward.1} parent=27 // pred_region
          %p486 = scmp.lt.s32.totalorder %s30, 1
          %s487 = scalar_select %p486, %s30, 1
          %s488 = scalar_lea.vmem %s5, %s487
        $region48: #{transformer_forward.1} parent=27 // pred_fallthru
          _
        // Predicated region
        $region49: #{transformer_forward.1} parent=27 // pred_check
          %p489 = pneg %p210
        $region50: #{transformer_forward.1} parent=27 // pred_check_branch
          %491 = sbr.rel (%p489) target = $region52
        $region51: #{transformer_forward.1} parent=27 // pred_region
          %p492 = scmp.lt.s32.totalorder %s30, 1
          %s493 = scalar_select %p492, %s30, 1
          %s494 = scalar_lea.vmem %s6, %s493
        $region52: #{transformer_forward.1} parent=27 // pred_fallthru
          _
        // Predicated region
        $region53: #{transformer_forward.1} parent=27 // pred_check
          %p495 = pneg %p236
        $region54: #{transformer_forward.1} parent=27 // pred_check_branch
          %497 = sbr.rel (%p495) target = $region56
        $region55: #{transformer_forward.1} parent=27 // pred_region
          %p498 = scmp.lt.s32.totalorder %s30, 1
          %s499 = scalar_select %p498, %s30, 1
          %s500 = scalar_lea.vmem %s7, %s499
        $region56: #{transformer_forward.1} parent=27 // pred_fallthru
          _
        // Predicated region
        $region57: #{transformer_forward.1} parent=27 // pred_check
          %p501 = pneg %p262
        $region58: #{transformer_forward.1} parent=27 // pred_check_branch
          %503 = sbr.rel (%p501) target = $region60
        $region59: #{transformer_forward.1} parent=27 // pred_region
          %p504 = scmp.lt.s32.totalorder %s30, 1
          %s505 = scalar_select %p504, %s30, 1
          %s506 = smul.addr %s505, 4
          %s507 = smul.addr %s506, 4
          %s508 = scalar_lea.vmem %s8, %s507
        $region60: #{transformer_forward.1} parent=27 // pred_fallthru
          _
        // Predicated region
        $region61: #{transformer_forward.1} parent=27 // pred_check
          %p509 = pneg %p288
        $region62: #{transformer_forward.1} parent=27 // pred_check_branch
          %511 = sbr.rel (%p509) target = $region64
        $region63: #{transformer_forward.1} parent=27 // pred_region
          %p512 = scmp.lt.s32.totalorder %s30, 1
          %s513 = scalar_select %p512, %s30, 1
          %s514 = scalar_lea.vmem %s9, %s513
        $region64: #{transformer_forward.1} parent=27 // pred_fallthru
          _
        // Predicated region
        $region65: #{transformer_forward.1} parent=27 // pred_check
          %p515 = pneg %p314
        $region66: #{transformer_forward.1} parent=27 // pred_check_branch
          %517 = sbr.rel (%p515) target = $region68
        $region67: #{transformer_forward.1} parent=27 // pred_region
          %p518 = scmp.lt.s32.totalorder %s30, 1
          %s519 = scalar_select %p518, %s30, 1
          %s520 = smul.addr %s519, 8
          %s521 = smul.addr %s520, 4
          %s522 = scalar_lea.vmem %s10, %s521
        $region68: #{transformer_forward.1} parent=27 // pred_fallthru
          _
        // Predicated region
        $region69: #{transformer_forward.1} parent=27 // pred_check
          %p523 = pneg %p340
        $region70: #{transformer_forward.1} parent=27 // pred_check_branch
          %525 = sbr.rel (%p523) target = $region72
        $region71: #{transformer_forward.1} parent=27 // pred_region
          %p526 = scmp.lt.s32.totalorder %s30, 1
          %s527 = scalar_select %p526, %s30, 1
          %s528 = scalar_lea.vmem %s11, %s527
        $region72: #{transformer_forward.1} parent=27 // pred_fallthru
          _
      $region28: #{transformer_forward.1} parent=5 // pred_fallthru
        _
      %p529 = scmp.le.s32.totalorder 1, %s22
      %p530 = scmp.lt.s32.totalorder %s22, 3
      %p531 = pnand %p529, %p530
      %p532 = pneg %p531
      // Predicated region
      $region73: #{transformer_forward.1} parent=5 // pred_check
        _
      $region74: #{transformer_forward.1} parent=5 // pred_check_branch
        %534 = sbr.rel (%p531) target = $region76
      $region75: #{transformer_forward.1} parent=5 // pred_region
        %s535 = ssub.s32 %s22, 1
        // Predicated region
        $region77: #{transformer_forward.1} parent=75 // pred_check
          %p536 = pneg %p60
        $region78: #{transformer_forward.1} parent=75 // pred_check_branch
          %538 = sbr.rel (%p536) target = $region80
        $region79: #{transformer_forward.1} parent=75 // pred_region
          %539 = dma.done [#allocation3], 256
        $region80: #{transformer_forward.1} parent=75 // pred_fallthru
          _
        %p540 = pneg %p60
        %p541 = pneg %p57
        %p542 = scmp.lt.s32.totalorder %s32, 1
        %s543 = scalar_select %p542, %s32, 1
        %s544 = scalar_lea.vmem %s1, %s543
        %p545 = pneg %p86
        %p546 = pneg %p83
        %p547 = scmp.lt.s32.totalorder %s32, 1
        %s548 = scalar_select %p547, %s32, 1
        %s549 = scalar_lea.vmem %s2, %s548
        %p550 = pneg %p112
        %p551 = pneg %p109
        %p552 = scmp.lt.s32.totalorder %s32, 1
        %s553 = scalar_select %p552, %s32, 1
        %s554 = smul.addr %s553, 4
        %s555 = smul.addr %s554, 4
        %s556 = scalar_lea.vmem %s3, %s555
        %p557 = pneg %p138
        %p558 = pneg %p135
        %p559 = scmp.lt.s32.totalorder %s32, 1
        %s560 = scalar_select %p559, %s32, 1
        %s561 = smul.addr %s560, 4
        %s562 = smul.addr %s561, 4
        %s563 = scalar_lea.vmem %s4, %s562
        %p564 = pneg %p164
        %p565 = pneg %p161
        %p566 = scmp.lt.s32.totalorder %s32, 1
        %s567 = scalar_select %p566, %s32, 1
        %s568 = scalar_lea.vmem %s5, %s567
        %p569 = pneg %p190
        %p570 = pneg %p187
        %p571 = scmp.lt.s32.totalorder %s32, 1
        %s572 = scalar_select %p571, %s32, 1
        %s573 = scalar_lea.vmem %s6, %s572
        %p574 = pneg %p216
        %p575 = pneg %p213
        %p576 = scmp.lt.s32.totalorder %s32, 1
        %s577 = scalar_select %p576, %s32, 1
        %s578 = scalar_lea.vmem %s7, %s577
        %p579 = pneg %p242
        %p580 = pneg %p239
        %p581 = scmp.lt.s32.totalorder %s32, 1
        %s582 = scalar_select %p581, %s32, 1
        %s583 = smul.addr %s582, 4
        %s584 = smul.addr %s583, 4
        %s585 = scalar_lea.vmem %s8, %s584
        %p586 = pneg %p268
        %p587 = pneg %p265
        %p588 = scmp.lt.s32.totalorder %s32, 1
        %s589 = scalar_select %p588, %s32, 1
        %s590 = scalar_lea.vmem %s9, %s589
        %p591 = pneg %p294
        %p592 = pneg %p291
        %p593 = scmp.lt.s32.totalorder %s32, 1
        %s594 = scalar_select %p593, %s32, 1
        %s595 = smul.addr %s594, 8
        %s596 = smul.addr %s595, 4
        %s597 = scalar_lea.vmem %s10, %s596
        %p598 = pneg %p320
        %p599 = pneg %p317
        %p600 = scmp.lt.s32.totalorder %s32, 1
        %s601 = scalar_select %p600, %s32, 1
        %s602 = scalar_lea.vmem %s11, %s601
        %p603 = pneg %p346
        %p604 = pneg %p343
        %p605 = pneg %p367
        %p606 = pneg %p364
        %p607 = pneg %p388
        %p608 = pneg %p385
        %p609 = pneg %p414
        %p610 = pneg %p411
        %s611 = smul.u32 2, %s31
        %p612 = scmp.lt.s32.totalorder %s32, 1
        %s613 = scalar_select %p612, %s32, 1
        %s614 = scalar_lea.vmem %s1, %s613
        %p615 = scmp.lt.s32.totalorder %s32, 1
        %s616 = scalar_select %p615, %s32, 1
        %s617 = scalar_lea.vmem %s2, %s616
        %p618 = scmp.lt.s32.totalorder %s32, 1
        %s619 = scalar_select %p618, %s32, 1
        %s620 = smul.addr %s619, 4
        %s621 = smul.addr %s620, 4
        %s622 = scalar_lea.vmem %s3, %s621
        %p623 = scmp.lt.s32.totalorder %s32, 1
        %s624 = scalar_select %p623, %s32, 1
        %s625 = smul.addr %s624, 4
        %s626 = smul.addr %s625, 4
        %s627 = scalar_lea.vmem %s4, %s626
        %p628 = scmp.lt.s32.totalorder %s32, 1
        %s629 = scalar_select %p628, %s32, 1
        %s630 = scalar_lea.vmem %s5, %s629
        %p631 = scmp.lt.s32.totalorder %s32, 1
        %s632 = scalar_select %p631, %s32, 1
        %s633 = scalar_lea.vmem %s6, %s632
        %p634 = scmp.lt.s32.totalorder %s32, 1
        %s635 = scalar_select %p634, %s32, 1
        %s636 = scalar_lea.vmem %s7, %s635
        %p637 = scmp.lt.s32.totalorder %s32, 1
        %s638 = scalar_select %p637, %s32, 1
        %s639 = smul.addr %s638, 4
        %s640 = smul.addr %s639, 4
        %s641 = scalar_lea.vmem %s8, %s640
        %p642 = scmp.lt.s32.totalorder %s32, 1
        %s643 = scalar_select %p642, %s32, 1
        %s644 = scalar_lea.vmem %s9, %s643
        %p645 = scmp.lt.s32.totalorder %s32, 1
        %s646 = scalar_select %p645, %s32, 1
        %s647 = smul.addr %s646, 8
        %s648 = smul.addr %s647, 4
        %s649 = scalar_lea.vmem %s10, %s648
        %p650 = scmp.lt.s32.totalorder %s32, 1
        %s651 = scalar_select %p650, %s32, 1
        %s652 = scalar_lea.vmem %s11, %s651
        %s653 = smul.u32 2, %s31
        %p655 = scmp.eq.s32.totalorder %s32, 0
        // Predicated region
        $region81: #{transformer_forward.1} parent=75 // pred_check
          %p656 = pneg %p655
        $region82: #{transformer_forward.1} parent=75 // pred_check_branch
          %658 = sbr.rel (%p656) target = $region84
        $region83: #{transformer_forward.1} parent=75 // pred_region
          %v659 = vld [vmem:[#allocation2] sm:$0xff]
          %v660 = vld [vmem:[#allocation2 + $0x8] sm:$0xff]
          %vm661 = vcmask 261120
          %662 = vst.msk [vmem:[#allocation5] sm:$0xff] %vm661, %v659
          %663 = vst.msk [vmem:[#allocation5 + $0x8] sm:$0xff] %vm661, %v660
        $region84: #{transformer_forward.1} parent=75 // pred_fallthru
          _
        %v664 = vld [vmem:[#allocation5] sm:$0xff]
        %v665 = vld [vmem:[#allocation5 + $0x8] sm:$0xff]
        %v666 = vld [vmem:[%s614] sm:$0x1]
        %v667 = vld [vmem:[%s617] sm:$0x1]
        %vm668 = vcmask 261120
        %v669 = vsel %vm668, %v664, 0.0
        %670 = vadd.xlane.f32.xlu0 %v669
        %v671 = vpop.xlane.xlu0 %670
        %v672 = vsel %vm668, %v665, 0.0
        %673 = vadd.xlane.f32.xlu0 %v672
        %v674 = vpop.xlane.xlu0 %673
        %v675 = vrcp.pop 32.0
        %v676 = vmul.f32 %v671, %v675
        %v677 = vmul.f32 %v674, %v675
        %v678 = vsub.f32 %v664, %v676
        %v679 = vsub.f32 %v665, %v677
        %v680 = vmul.f32 %v678, %v678
        %v681 = vmul.f32 %v679, %v679
        %v682 = vsel %vm668, %v680, 0.0
        %683 = vadd.xlane.f32.xlu0 %v682
        %v684 = vpop.xlane.xlu0 %683
        %v685 = vsel %vm668, %v681, 0.0
        %686 = vadd.xlane.f32.xlu0 %v685
        %v687 = vpop.xlane.xlu0 %686
        %v688 = vmul.f32 %v684, %v675
        %v689 = vmul.f32 %v687, %v675
        %v690 = vadd.f32 %v688, 1e-05
        %v691 = vadd.f32 %v689, 1e-05
        %v692 = vrsqrt.pop %v690
        %v693 = vrsqrt.pop %v691
        %v694 = vmul.f32 %v678, %v692
        %v695 = vmul.f32 %v679, %v693
        %v697 = vlaneseq
        %v698 = vshrl.u32 %v697, 7
        %v699 = vsub.s32 0, %v698
        %v700 = vrot.slane %v666, %v699
        %v702 = vmul.f32 %v694, %v700
        %v703 = vmul.f32 %v695, %v700
        %v705 = vlaneseq
        %v706 = vshrl.u32 %v705, 7
        %v707 = vsub.s32 0, %v706
        %v708 = vrot.slane %v667, %v707
        %v710 = vadd.f32 %v702, %v708
        %v711 = vadd.f32 %v703, %v708
        %v712 = vpack.c.bf16 %v711, %v710
        %v713 = vld [vmem:[%s622] sm:$0xf]
        %v714 = vld [vmem:[%s622 + $0x4] sm:$0xf]
        %v715 = vld [vmem:[%s622 + $0x8] sm:$0xf]
        %v716 = vld [vmem:[%s622 + $0xc] sm:$0xf]
        %v721 = vunpack.c.l.b16 %v713
        %v722 = vunpack.c.l.b16 %v714
        %v723 = vunpack.c.l.b16 %v715
        %v724 = vunpack.c.l.b16 %v716
        %v725 = vpack.c.b16 %v722, %v721
        %v726 = vpack.c.b16 %v724, %v723
        %v730 = vsel %vm668, %v712, 0
        %732 = vmatprep.subr.bf16.mxu0 0
        %733 = vmatpush1.bf16.msra.mxu0 %v725
        %734 = vmatprep.subr.bf16.mxu0 0
        %735 = vmatpush1.bf16.msra.mxu0 %v726
        %736 = vmatprep.subr.bf16.mxu0 0
        %737 = vmatpush1.bf16.msra.mxu0 0
        %738 = vmatprep.subr.bf16.mxu0 0
        %739 = vmatpush1.bf16.msra.mxu0 0
        %740 = vmatprep.subr.bf16.mxu0 0
        %741 = vmatpush1.bf16.msra.mxu0 0
        %742 = vmatprep.subr.bf16.mxu0 0
        %743 = vmatpush1.bf16.msra.mxu0 0
        %744 = vmatprep.subr.bf16.mxu0 0
        %745 = vmatpush1.bf16.msra.mxu0 0
        %746 = vmatprep.subr.bf16.mxu0 0
        %747 = vmatpush1.bf16.msra.mxu0 0
        %748 = vmatprep.subr.bf16.mxu0 0
        %749 = vmatpush1.bf16.msra.mxu0 0
        %750 = vmatprep.subr.bf16.mxu0 0
        %751 = vmatpush1.bf16.msra.mxu0 0
        %752 = vmatprep.subr.bf16.mxu0 0
        %753 = vmatpush1.bf16.msra.mxu0 0
        %754 = vmatprep.subr.bf16.mxu0 0
        %755 = vmatpush1.bf16.msra.mxu0 0
        %756 = vmatprep.subr.bf16.mxu0 0
        %757 = vmatpush1.bf16.msra.mxu0 0
        %758 = vmatprep.subr.bf16.mxu0 0
        %759 = vmatpush1.bf16.msra.mxu0 0
        %760 = vmatprep.subr.bf16.mxu0 0
        %761 = vmatpush1.bf16.msra.mxu0 0
        %762 = vmatprep.subr.bf16.mxu0 0
        %763 = vmatpush1.bf16.msra.mxu0 0
        %764 = vmatprep.mubr.bf16.mxu0 0
        %765 = vmatmul.mubr.bf16.gmra.mrb[0].mxu0 %v730
        %v766 = vpop.f32.mrb[0].mxu0
        %v767 = vadd.f32 0.0, %v766
        %v768 = vpop.f32.mrb[0].mxu0
        %v769 = vpop.f32.mrb[0].mxu0
        %v770 = vadd.f32 0.0, %v769
        %v771 = vpop.f32.mrb[0].mxu0
        %772 = vdwg.mxu0
        %775 = vrot.lane.b32.xlu0 %v767, 120
        %v776 = vpop.permute.xlu0 %775
        %777 = vrot.lane.b32.xlu0 %v770, 120
        %v778 = vpop.permute.xlu0 %777
        %781 = vrot.lane.b32.xlu0 %v767, 112
        %v782 = vpop.permute.xlu0 %781
        %783 = vrot.lane.b32.xlu0 %v770, 112
        %v784 = vpop.permute.xlu0 %783
        %787 = vrot.lane.b32.xlu0 %v767, 104
        %v788 = vpop.permute.xlu0 %787
        %789 = vrot.lane.b32.xlu0 %v770, 104
        %v790 = vpop.permute.xlu0 %789
        %v793 = vcombine.low %v767, %v782
        %v794 = vcombine.high %v767, %v782
        %v796 = vunpack.c.l.s4 1983009808
        %v797 = vunpack.c.0.s8 %v796
        %v798 = vlaneseq
        %v799 = vshrl.u32 %v798, 7
        %v800 = vsub.s32 %v797, %v799
        %v801 = vrot.slane %v793, %v800
        %v803 = vunpack.c.l.s4 1983009808
        %v804 = vunpack.c.0.s8 %v803
        %v805 = vlaneseq
        %v806 = vshrl.u32 %v805, 7
        %v807 = vsub.s32 %v804, %v806
        %v808 = vrot.slane %v794, %v807
        %v809 = vcombine.low %v776, %v788
        %v810 = vcombine.high %v776, %v788
        %v812 = vunpack.c.l.s4 1983009808
        %v813 = vunpack.c.0.s8 %v812
        %v814 = vlaneseq
        %v815 = vshrl.u32 %v814, 7
        %v816 = vsub.s32 %v813, %v815
        %v817 = vrot.slane %v809, %v816
        %v819 = vunpack.c.l.s4 1983009808
        %v820 = vunpack.c.0.s8 %v819
        %v821 = vlaneseq
        %v822 = vshrl.u32 %v821, 7
        %v823 = vsub.s32 %v820, %v822
        %v824 = vrot.slane %v810, %v823
        %v825 = vcombine.low %v801, %v817
        %v826 = vcombine.high %v801, %v817
        %v828 = vunpack.c.l.s4 1934713408
        %v829 = vunpack.c.0.s8 %v828
        %v830 = vlaneseq
        %v831 = vshrl.u32 %v830, 7
        %v832 = vsub.s32 %v829, %v831
        %v833 = vrot.slane %v825, %v832
        %v835 = vunpack.c.l.s4 1934713408
        %v836 = vunpack.c.0.s8 %v835
        %v837 = vlaneseq
        %v838 = vshrl.u32 %v837, 7
        %v839 = vsub.s32 %v836, %v838
        %v840 = vrot.slane %v826, %v839
        %v841 = vcombine.low %v808, %v824
        %v842 = vcombine.high %v808, %v824
        %v844 = vunpack.c.l.s4 1934713408
        %v845 = vunpack.c.0.s8 %v844
        %v846 = vlaneseq
        %v847 = vshrl.u32 %v846, 7
        %v848 = vsub.s32 %v845, %v847
        %v849 = vrot.slane %v841, %v848
        %v851 = vunpack.c.l.s4 1934713408
        %v852 = vunpack.c.0.s8 %v851
        %v853 = vlaneseq
        %v854 = vshrl.u32 %v853, 7
        %v855 = vsub.s32 %v852, %v854
        %v856 = vrot.slane %v842, %v855
        %v857 = vcombine.high %v833, 0.0
        %v858 = vcombine.high %v840, 0.0
        %v859 = vcombine.high %v849, 0.0
        %v860 = vcombine.high %v856, 0.0
        %v861 = vcombine.low %v770, %v784
        %v862 = vcombine.high %v770, %v784
        %v864 = vunpack.c.l.s4 1983009808
        %v865 = vunpack.c.0.s8 %v864
        %v866 = vlaneseq
        %v867 = vshrl.u32 %v866, 7
        %v868 = vsub.s32 %v865, %v867
        %v869 = vrot.slane %v861, %v868
        %v871 = vunpack.c.l.s4 1983009808
        %v872 = vunpack.c.0.s8 %v871
        %v873 = vlaneseq
        %v874 = vshrl.u32 %v873, 7
        %v875 = vsub.s32 %v872, %v874
        %v876 = vrot.slane %v862, %v875
        %v877 = vcombine.low %v778, %v790
        %v878 = vcombine.high %v778, %v790
        %v880 = vunpack.c.l.s4 1983009808
        %v881 = vunpack.c.0.s8 %v880
        %v882 = vlaneseq
        %v883 = vshrl.u32 %v882, 7
        %v884 = vsub.s32 %v881, %v883
        %v885 = vrot.slane %v877, %v884
        %v887 = vunpack.c.l.s4 1983009808
        %v888 = vunpack.c.0.s8 %v887
        %v889 = vlaneseq
        %v890 = vshrl.u32 %v889, 7
        %v891 = vsub.s32 %v888, %v890
        %v892 = vrot.slane %v878, %v891
        %v893 = vcombine.low %v869, %v885
        %v894 = vcombine.high %v869, %v885
        %v896 = vunpack.c.l.s4 1934713408
        %v897 = vunpack.c.0.s8 %v896
        %v898 = vlaneseq
        %v899 = vshrl.u32 %v898, 7
        %v900 = vsub.s32 %v897, %v899
        %v901 = vrot.slane %v893, %v900
        %v903 = vunpack.c.l.s4 1934713408
        %v904 = vunpack.c.0.s8 %v903
        %v905 = vlaneseq
        %v906 = vshrl.u32 %v905, 7
        %v907 = vsub.s32 %v904, %v906
        %v908 = vrot.slane %v894, %v907
        %v909 = vcombine.low %v876, %v892
        %v910 = vcombine.high %v876, %v892
        %v912 = vunpack.c.l.s4 1934713408
        %v913 = vunpack.c.0.s8 %v912
        %v914 = vlaneseq
        %v915 = vshrl.u32 %v914, 7
        %v916 = vsub.s32 %v913, %v915
        %v917 = vrot.slane %v909, %v916
        %v919 = vunpack.c.l.s4 1934713408
        %v920 = vunpack.c.0.s8 %v919
        %v921 = vlaneseq
        %v922 = vshrl.u32 %v921, 7
        %v923 = vsub.s32 %v920, %v922
        %v924 = vrot.slane %v910, %v923
        %v925 = vcombine.high %v901, 0.0
        %v926 = vcombine.high %v908, 0.0
        %v927 = vcombine.high %v917, 0.0
        %v928 = vcombine.high %v924, 0.0
        %v929 = vcombine.low %v833, %v840
        %v931 = vunpack.c.l.s4 1983009808
        %v932 = vunpack.c.0.s8 %v931
        %v933 = vlaneseq
        %v934 = vshrl.u32 %v933, 7
        %v935 = vsub.s32 %v932, %v934
        %v936 = vrot.slane %v929, %v935
        %v937 = vcombine.low %v857, %v858
        %v939 = vunpack.c.l.s4 1983009808
        %v940 = vunpack.c.0.s8 %v939
        %v941 = vlaneseq
        %v942 = vshrl.u32 %v941, 7
        %v943 = vsub.s32 %v940, %v942
        %v944 = vrot.slane %v937, %v943
        %v945 = vcombine.low %v849, %v856
        %v947 = vunpack.c.l.s4 1983009808
        %v948 = vunpack.c.0.s8 %v947
        %v949 = vlaneseq
        %v950 = vshrl.u32 %v949, 7
        %v951 = vsub.s32 %v948, %v950
        %v952 = vrot.slane %v945, %v951
        %v953 = vcombine.low %v859, %v860
        %v955 = vunpack.c.l.s4 1983009808
        %v956 = vunpack.c.0.s8 %v955
        %v957 = vlaneseq
        %v958 = vshrl.u32 %v957, 7
        %v959 = vsub.s32 %v956, %v958
        %v960 = vrot.slane %v953, %v959
        %v961 = vcombine.low %v936, %v944
        %v962 = vcombine.high %v936, %v944
        %v964 = vunpack.c.l.s4 1934713408
        %v965 = vunpack.c.0.s8 %v964
        %v966 = vlaneseq
        %v967 = vshrl.u32 %v966, 7
        %v968 = vsub.s32 %v965, %v967
        %v969 = vrot.slane %v961, %v968
        %v971 = vunpack.c.l.s4 1934713408
        %v972 = vunpack.c.0.s8 %v971
        %v973 = vlaneseq
        %v974 = vshrl.u32 %v973, 7
        %v975 = vsub.s32 %v972, %v974
        %v976 = vrot.slane %v962, %v975
        %v977 = vcombine.low %v952, %v960
        %v978 = vcombine.high %v952, %v960
        %v980 = vunpack.c.l.s4 1934713408
        %v981 = vunpack.c.0.s8 %v980
        %v982 = vlaneseq
        %v983 = vshrl.u32 %v982, 7
        %v984 = vsub.s32 %v981, %v983
        %v985 = vrot.slane %v977, %v984
        %v987 = vunpack.c.l.s4 1934713408
        %v988 = vunpack.c.0.s8 %v987
        %v989 = vlaneseq
        %v990 = vshrl.u32 %v989, 7
        %v991 = vsub.s32 %v988, %v990
        %v992 = vrot.slane %v978, %v991
        %v993 = vcombine.low %v969, %v985
        %v994 = vcombine.high %v969, %v985
        %v995 = vcombine.low %v976, %v992
        %v996 = vcombine.high %v976, %v992
        %v997 = vcombine.low %v901, %v908
        %v999 = vunpack.c.l.s4 1983009808
        %v1000 = vunpack.c.0.s8 %v999
        %v1001 = vlaneseq
        %v1002 = vshrl.u32 %v1001, 7
        %v1003 = vsub.s32 %v1000, %v1002
        %v1004 = vrot.slane %v997, %v1003
        %v1005 = vcombine.low %v925, %v926
        %v1007 = vunpack.c.l.s4 1983009808
        %v1008 = vunpack.c.0.s8 %v1007
        %v1009 = vlaneseq
        %v1010 = vshrl.u32 %v1009, 7
        %v1011 = vsub.s32 %v1008, %v1010
        %v1012 = vrot.slane %v1005, %v1011
        %v1013 = vcombine.low %v917, %v924
        %v1015 = vunpack.c.l.s4 1983009808
        %v1016 = vunpack.c.0.s8 %v1015
        %v1017 = vlaneseq
        %v1018 = vshrl.u32 %v1017, 7
        %v1019 = vsub.s32 %v1016, %v1018
        %v1020 = vrot.slane %v1013, %v1019
        %v1021 = vcombine.low %v927, %v928
        %v1023 = vunpack.c.l.s4 1983009808
        %v1024 = vunpack.c.0.s8 %v1023
        %v1025 = vlaneseq
        %v1026 = vshrl.u32 %v1025, 7
        %v1027 = vsub.s32 %v1024, %v1026
        %v1028 = vrot.slane %v1021, %v1027
        %v1029 = vcombine.low %v1004, %v1012
        %v1030 = vcombine.high %v1004, %v1012
        %v1032 = vunpack.c.l.s4 1934713408
        %v1033 = vunpack.c.0.s8 %v1032
        %v1034 = vlaneseq
        %v1035 = vshrl.u32 %v1034, 7
        %v1036 = vsub.s32 %v1033, %v1035
        %v1037 = vrot.slane %v1029, %v1036
        %v1039 = vunpack.c.l.s4 1934713408
        %v1040 = vunpack.c.0.s8 %v1039
        %v1041 = vlaneseq
        %v1042 = vshrl.u32 %v1041, 7
        %v1043 = vsub.s32 %v1040, %v1042
        %v1044 = vrot.slane %v1030, %v1043
        %v1045 = vcombine.low %v1020, %v1028
        %v1046 = vcombine.high %v1020, %v1028
        %v1048 = vunpack.c.l.s4 1934713408
        %v1049 = vunpack.c.0.s8 %v1048
        %v1050 = vlaneseq
        %v1051 = vshrl.u32 %v1050, 7
        %v1052 = vsub.s32 %v1049, %v1051
        %v1053 = vrot.slane %v1045, %v1052
        %v1055 = vunpack.c.l.s4 1934713408
        %v1056 = vunpack.c.0.s8 %v1055
        %v1057 = vlaneseq
        %v1058 = vshrl.u32 %v1057, 7
        %v1059 = vsub.s32 %v1056, %v1058
        %v1060 = vrot.slane %v1046, %v1059
        %v1061 = vcombine.low %v1037, %v1053
        %v1062 = vcombine.high %v1037, %v1053
        %v1063 = vcombine.low %v1044, %v1060
        %v1064 = vcombine.high %v1044, %v1060
        %v1065 = vpack.c.bf16 %v993, %v993
        %v1066 = vpack.c.bf16 %v994, %v994
        %v1067 = vpack.c.bf16 %v995, %v995
        %v1068 = vpack.c.bf16 %v996, %v996
        %v1069 = vpack.c.bf16 %v1061, %v1061
        %v1070 = vpack.c.bf16 %v1062, %v1062
        %v1071 = vpack.c.bf16 %v1063, %v1063
        %v1072 = vpack.c.bf16 %v1064, %v1064
        %1073 = vrot.lane.b32.xlu0 %v767, 96
        %v1074 = vpop.permute.xlu0 %1073
        %1075 = vrot.lane.b32.xlu0 %v770, 96
        %v1076 = vpop.permute.xlu0 %1075
        %1077 = vrot.lane.b32.xlu0 %v776, 96
        %v1078 = vpop.permute.xlu0 %1077
        %1079 = vrot.lane.b32.xlu0 %v778, 96
        %v1080 = vpop.permute.xlu0 %1079
        %1081 = vrot.lane.b32.xlu0 %v782, 96
        %v1082 = vpop.permute.xlu0 %1081
        %1083 = vrot.lane.b32.xlu0 %v784, 96
        %v1084 = vpop.permute.xlu0 %1083
        %1085 = vrot.lane.b32.xlu0 %v788, 96
        %v1086 = vpop.permute.xlu0 %1085
        %1087 = vrot.lane.b32.xlu0 %v790, 96
        %v1088 = vpop.permute.xlu0 %1087
        %v1097 = vcombine.low %v1074, %v1082
        %v1098 = vcombine.high %v1074, %v1082
        %v1100 = vunpack.c.l.s4 1983009808
        %v1101 = vunpack.c.0.s8 %v1100
        %v1102 = vlaneseq
        %v1103 = vshrl.u32 %v1102, 7
        %v1104 = vsub.s32 %v1101, %v1103
        %v1105 = vrot.slane %v1097, %v1104
        %v1107 = vunpack.c.l.s4 1983009808
        %v1108 = vunpack.c.0.s8 %v1107
        %v1109 = vlaneseq
        %v1110 = vshrl.u32 %v1109, 7
        %v1111 = vsub.s32 %v1108, %v1110
        %v1112 = vrot.slane %v1098, %v1111
        %v1113 = vcombine.low %v1078, %v1086
        %v1114 = vcombine.high %v1078, %v1086
        %v1116 = vunpack.c.l.s4 1983009808
        %v1117 = vunpack.c.0.s8 %v1116
        %v1118 = vlaneseq
        %v1119 = vshrl.u32 %v1118, 7
        %v1120 = vsub.s32 %v1117, %v1119
        %v1121 = vrot.slane %v1113, %v1120
        %v1123 = vunpack.c.l.s4 1983009808
        %v1124 = vunpack.c.0.s8 %v1123
        %v1125 = vlaneseq
        %v1126 = vshrl.u32 %v1125, 7
        %v1127 = vsub.s32 %v1124, %v1126
        %v1128 = vrot.slane %v1114, %v1127
        %v1129 = vcombine.low %v1105, %v1121
        %v1130 = vcombine.high %v1105, %v1121
        %v1132 = vunpack.c.l.s4 1934713408
        %v1133 = vunpack.c.0.s8 %v1132
        %v1134 = vlaneseq
        %v1135 = vshrl.u32 %v1134, 7
        %v1136 = vsub.s32 %v1133, %v1135
        %v1137 = vrot.slane %v1129, %v1136
        %v1139 = vunpack.c.l.s4 1934713408
        %v1140 = vunpack.c.0.s8 %v1139
        %v1141 = vlaneseq
        %v1142 = vshrl.u32 %v1141, 7
        %v1143 = vsub.s32 %v1140, %v1142
        %v1144 = vrot.slane %v1130, %v1143
        %v1145 = vcombine.low %v1112, %v1128
        %v1146 = vcombine.high %v1112, %v1128
        %v1148 = vunpack.c.l.s4 1934713408
        %v1149 = vunpack.c.0.s8 %v1148
        %v1150 = vlaneseq
        %v1151 = vshrl.u32 %v1150, 7
        %v1152 = vsub.s32 %v1149, %v1151
        %v1153 = vrot.slane %v1145, %v1152
        %v1155 = vunpack.c.l.s4 1934713408
        %v1156 = vunpack.c.0.s8 %v1155
        %v1157 = vlaneseq
        %v1158 = vshrl.u32 %v1157, 7
        %v1159 = vsub.s32 %v1156, %v1158
        %v1160 = vrot.slane %v1146, %v1159
        %v1161 = vcombine.high %v1137, 0.0
        %v1162 = vcombine.high %v1144, 0.0
        %v1163 = vcombine.high %v1153, 0.0
        %v1164 = vcombine.high %v1160, 0.0
        %v1165 = vcombine.low %v1076, %v1084
        %v1166 = vcombine.high %v1076, %v1084
        %v1168 = vunpack.c.l.s4 1983009808
        %v1169 = vunpack.c.0.s8 %v1168
        %v1170 = vlaneseq
        %v1171 = vshrl.u32 %v1170, 7
        %v1172 = vsub.s32 %v1169, %v1171
        %v1173 = vrot.slane %v1165, %v1172
        %v1175 = vunpack.c.l.s4 1983009808
        %v1176 = vunpack.c.0.s8 %v1175
        %v1177 = vlaneseq
        %v1178 = vshrl.u32 %v1177, 7
        %v1179 = vsub.s32 %v1176, %v1178
        %v1180 = vrot.slane %v1166, %v1179
        %v1181 = vcombine.low %v1080, %v1088
        %v1182 = vcombine.high %v1080, %v1088
        %v1184 = vunpack.c.l.s4 1983009808
        %v1185 = vunpack.c.0.s8 %v1184
        %v1186 = vlaneseq
        %v1187 = vshrl.u32 %v1186, 7
        %v1188 = vsub.s32 %v1185, %v1187
        %v1189 = vrot.slane %v1181, %v1188
        %v1191 = vunpack.c.l.s4 1983009808
        %v1192 = vunpack.c.0.s8 %v1191
        %v1193 = vlaneseq
        %v1194 = vshrl.u32 %v1193, 7
        %v1195 = vsub.s32 %v1192, %v1194
        %v1196 = vrot.slane %v1182, %v1195
        %v1197 = vcombine.low %v1173, %v1189
        %v1198 = vcombine.high %v1173, %v1189
        %v1200 = vunpack.c.l.s4 1934713408
        %v1201 = vunpack.c.0.s8 %v1200
        %v1202 = vlaneseq
        %v1203 = vshrl.u32 %v1202, 7
        %v1204 = vsub.s32 %v1201, %v1203
        %v1205 = vrot.slane %v1197, %v1204
        %v1207 = vunpack.c.l.s4 1934713408
        %v1208 = vunpack.c.0.s8 %v1207
        %v1209 = vlaneseq
        %v1210 = vshrl.u32 %v1209, 7
        %v1211 = vsub.s32 %v1208, %v1210
        %v1212 = vrot.slane %v1198, %v1211
        %v1213 = vcombine.low %v1180, %v1196
        %v1214 = vcombine.high %v1180, %v1196
        %v1216 = vunpack.c.l.s4 1934713408
        %v1217 = vunpack.c.0.s8 %v1216
        %v1218 = vlaneseq
        %v1219 = vshrl.u32 %v1218, 7
        %v1220 = vsub.s32 %v1217, %v1219
        %v1221 = vrot.slane %v1213, %v1220
        %v1223 = vunpack.c.l.s4 1934713408
        %v1224 = vunpack.c.0.s8 %v1223
        %v1225 = vlaneseq
        %v1226 = vshrl.u32 %v1225, 7
        %v1227 = vsub.s32 %v1224, %v1226
        %v1228 = vrot.slane %v1214, %v1227
        %v1229 = vcombine.high %v1205, 0.0
        %v1230 = vcombine.high %v1212, 0.0
        %v1231 = vcombine.high %v1221, 0.0
        %v1232 = vcombine.high %v1228, 0.0
        %v1233 = vcombine.low %v1137, %v1144
        %v1235 = vunpack.c.l.s4 1983009808
        %v1236 = vunpack.c.0.s8 %v1235
        %v1237 = vlaneseq
        %v1238 = vshrl.u32 %v1237, 7
        %v1239 = vsub.s32 %v1236, %v1238
        %v1240 = vrot.slane %v1233, %v1239
        %v1241 = vcombine.low %v1161, %v1162
        %v1243 = vunpack.c.l.s4 1983009808
        %v1244 = vunpack.c.0.s8 %v1243
        %v1245 = vlaneseq
        %v1246 = vshrl.u32 %v1245, 7
        %v1247 = vsub.s32 %v1244, %v1246
        %v1248 = vrot.slane %v1241, %v1247
        %v1249 = vcombine.low %v1153, %v1160
        %v1251 = vunpack.c.l.s4 1983009808
        %v1252 = vunpack.c.0.s8 %v1251
        %v1253 = vlaneseq
        %v1254 = vshrl.u32 %v1253, 7
        %v1255 = vsub.s32 %v1252, %v1254
        %v1256 = vrot.slane %v1249, %v1255
        %v1257 = vcombine.low %v1163, %v1164
        %v1259 = vunpack.c.l.s4 1983009808
        %v1260 = vunpack.c.0.s8 %v1259
        %v1261 = vlaneseq
        %v1262 = vshrl.u32 %v1261, 7
        %v1263 = vsub.s32 %v1260, %v1262
        %v1264 = vrot.slane %v1257, %v1263
        %v1265 = vcombine.low %v1240, %v1248
        %v1266 = vcombine.high %v1240, %v1248
        %v1268 = vunpack.c.l.s4 1934713408
        %v1269 = vunpack.c.0.s8 %v1268
        %v1270 = vlaneseq
        %v1271 = vshrl.u32 %v1270, 7
        %v1272 = vsub.s32 %v1269, %v1271
        %v1273 = vrot.slane %v1265, %v1272
        %v1275 = vunpack.c.l.s4 1934713408
        %v1276 = vunpack.c.0.s8 %v1275
        %v1277 = vlaneseq
        %v1278 = vshrl.u32 %v1277, 7
        %v1279 = vsub.s32 %v1276, %v1278
        %v1280 = vrot.slane %v1266, %v1279
        %v1281 = vcombine.low %v1256, %v1264
        %v1282 = vcombine.high %v1256, %v1264
        %v1284 = vunpack.c.l.s4 1934713408
        %v1285 = vunpack.c.0.s8 %v1284
        %v1286 = vlaneseq
        %v1287 = vshrl.u32 %v1286, 7
        %v1288 = vsub.s32 %v1285, %v1287
        %v1289 = vrot.slane %v1281, %v1288
        %v1291 = vunpack.c.l.s4 1934713408
        %v1292 = vunpack.c.0.s8 %v1291
        %v1293 = vlaneseq
        %v1294 = vshrl.u32 %v1293, 7
        %v1295 = vsub.s32 %v1292, %v1294
        %v1296 = vrot.slane %v1282, %v1295
        %v1297 = vcombine.low %v1273, %v1289
        %v1298 = vcombine.high %v1273, %v1289
        %v1299 = vcombine.low %v1280, %v1296
        %v1300 = vcombine.high %v1280, %v1296
        %v1301 = vcombine.low %v1205, %v1212
        %v1303 = vunpack.c.l.s4 1983009808
        %v1304 = vunpack.c.0.s8 %v1303
        %v1305 = vlaneseq
        %v1306 = vshrl.u32 %v1305, 7
        %v1307 = vsub.s32 %v1304, %v1306
        %v1308 = vrot.slane %v1301, %v1307
        %v1309 = vcombine.low %v1229, %v1230
        %v1311 = vunpack.c.l.s4 1983009808
        %v1312 = vunpack.c.0.s8 %v1311
        %v1313 = vlaneseq
        %v1314 = vshrl.u32 %v1313, 7
        %v1315 = vsub.s32 %v1312, %v1314
        %v1316 = vrot.slane %v1309, %v1315
        %v1317 = vcombine.low %v1221, %v1228
        %v1319 = vunpack.c.l.s4 1983009808
        %v1320 = vunpack.c.0.s8 %v1319
        %v1321 = vlaneseq
        %v1322 = vshrl.u32 %v1321, 7
        %v1323 = vsub.s32 %v1320, %v1322
        %v1324 = vrot.slane %v1317, %v1323
        %v1325 = vcombine.low %v1231, %v1232
        %v1327 = vunpack.c.l.s4 1983009808
        %v1328 = vunpack.c.0.s8 %v1327
        %v1329 = vlaneseq
        %v1330 = vshrl.u32 %v1329, 7
        %v1331 = vsub.s32 %v1328, %v1330
        %v1332 = vrot.slane %v1325, %v1331
        %v1333 = vcombine.low %v1308, %v1316
        %v1334 = vcombine.high %v1308, %v1316
        %v1336 = vunpack.c.l.s4 1934713408
        %v1337 = vunpack.c.0.s8 %v1336
        %v1338 = vlaneseq
        %v1339 = vshrl.u32 %v1338, 7
        %v1340 = vsub.s32 %v1337, %v1339
        %v1341 = vrot.slane %v1333, %v1340
        %v1343 = vunpack.c.l.s4 1934713408
        %v1344 = vunpack.c.0.s8 %v1343
        %v1345 = vlaneseq
        %v1346 = vshrl.u32 %v1345, 7
        %v1347 = vsub.s32 %v1344, %v1346
        %v1348 = vrot.slane %v1334, %v1347
        %v1349 = vcombine.low %v1324, %v1332
        %v1350 = vcombine.high %v1324, %v1332
        %v1352 = vunpack.c.l.s4 1934713408
        %v1353 = vunpack.c.0.s8 %v1352
        %v1354 = vlaneseq
        %v1355 = vshrl.u32 %v1354, 7
        %v1356 = vsub.s32 %v1353, %v1355
        %v1357 = vrot.slane %v1349, %v1356
        %v1359 = vunpack.c.l.s4 1934713408
        %v1360 = vunpack.c.0.s8 %v1359
        %v1361 = vlaneseq
        %v1362 = vshrl.u32 %v1361, 7
        %v1363 = vsub.s32 %v1360, %v1362
        %v1364 = vrot.slane %v1350, %v1363
        %v1365 = vcombine.low %v1341, %v1357
        %v1366 = vcombine.high %v1341, %v1357
        %v1367 = vcombine.low %v1348, %v1364
        %v1368 = vcombine.high %v1348, %v1364
        %v1369 = vpack.c.bf16 %v1297, %v1297
        %v1370 = vpack.c.bf16 %v1298, %v1298
        %v1371 = vpack.c.bf16 %v1299, %v1299
        %v1372 = vpack.c.bf16 %v1300, %v1300
        %v1373 = vpack.c.bf16 %v1365, %v1365
        %v1374 = vpack.c.bf16 %v1366, %v1366
        %v1375 = vpack.c.bf16 %v1367, %v1367
        %v1376 = vpack.c.bf16 %v1368, %v1368
        %1377 = vrot.lane.b32.xlu0 %v767, 64
        %v1378 = vpop.permute.xlu0 %1377
        %1379 = vrot.lane.b32.xlu0 %v770, 64
        %v1380 = vpop.permute.xlu0 %1379
        %1381 = vrot.lane.b32.xlu0 %v776, 64
        %v1382 = vpop.permute.xlu0 %1381
        %1383 = vrot.lane.b32.xlu0 %v778, 64
        %v1384 = vpop.permute.xlu0 %1383
        %1385 = vrot.lane.b32.xlu0 %v782, 64
        %v1386 = vpop.permute.xlu0 %1385
        %1387 = vrot.lane.b32.xlu0 %v784, 64
        %v1388 = vpop.permute.xlu0 %1387
        %1389 = vrot.lane.b32.xlu0 %v788, 64
        %v1390 = vpop.permute.xlu0 %1389
        %1391 = vrot.lane.b32.xlu0 %v790, 64
        %v1392 = vpop.permute.xlu0 %1391
        %v1401 = vcombine.low %v1378, %v1386
        %v1402 = vcombine.high %v1378, %v1386
        %v1404 = vunpack.c.l.s4 1983009808
        %v1405 = vunpack.c.0.s8 %v1404
        %v1406 = vlaneseq
        %v1407 = vshrl.u32 %v1406, 7
        %v1408 = vsub.s32 %v1405, %v1407
        %v1409 = vrot.slane %v1401, %v1408
        %v1411 = vunpack.c.l.s4 1983009808
        %v1412 = vunpack.c.0.s8 %v1411
        %v1413 = vlaneseq
        %v1414 = vshrl.u32 %v1413, 7
        %v1415 = vsub.s32 %v1412, %v1414
        %v1416 = vrot.slane %v1402, %v1415
        %v1417 = vcombine.low %v1382, %v1390
        %v1418 = vcombine.high %v1382, %v1390
        %v1420 = vunpack.c.l.s4 1983009808
        %v1421 = vunpack.c.0.s8 %v1420
        %v1422 = vlaneseq
        %v1423 = vshrl.u32 %v1422, 7
        %v1424 = vsub.s32 %v1421, %v1423
        %v1425 = vrot.slane %v1417, %v1424
        %v1427 = vunpack.c.l.s4 1983009808
        %v1428 = vunpack.c.0.s8 %v1427
        %v1429 = vlaneseq
        %v1430 = vshrl.u32 %v1429, 7
        %v1431 = vsub.s32 %v1428, %v1430
        %v1432 = vrot.slane %v1418, %v1431
        %v1433 = vcombine.low %v1409, %v1425
        %v1434 = vcombine.high %v1409, %v1425
        %v1436 = vunpack.c.l.s4 1934713408
        %v1437 = vunpack.c.0.s8 %v1436
        %v1438 = vlaneseq
        %v1439 = vshrl.u32 %v1438, 7
        %v1440 = vsub.s32 %v1437, %v1439
        %v1441 = vrot.slane %v1433, %v1440
        %v1443 = vunpack.c.l.s4 1934713408
        %v1444 = vunpack.c.0.s8 %v1443
        %v1445 = vlaneseq
        %v1446 = vshrl.u32 %v1445, 7
        %v1447 = vsub.s32 %v1444, %v1446
        %v1448 = vrot.slane %v1434, %v1447
        %v1449 = vcombine.low %v1416, %v1432
        %v1450 = vcombine.high %v1416, %v1432
        %v1452 = vunpack.c.l.s4 1934713408
        %v1453 = vunpack.c.0.s8 %v1452
        %v1454 = vlaneseq
        %v1455 = vshrl.u32 %v1454, 7
        %v1456 = vsub.s32 %v1453, %v1455
        %v1457 = vrot.slane %v1449, %v1456
        %v1459 = vunpack.c.l.s4 1934713408
        %v1460 = vunpack.c.0.s8 %v1459
        %v1461 = vlaneseq
        %v1462 = vshrl.u32 %v1461, 7
        %v1463 = vsub.s32 %v1460, %v1462
        %v1464 = vrot.slane %v1450, %v1463
        %v1465 = vcombine.high %v1441, 0.0
        %v1466 = vcombine.high %v1448, 0.0
        %v1467 = vcombine.high %v1457, 0.0
        %v1468 = vcombine.high %v1464, 0.0
        %v1469 = vcombine.low %v1380, %v1388
        %v1470 = vcombine.high %v1380, %v1388
        %v1472 = vunpack.c.l.s4 1983009808
        %v1473 = vunpack.c.0.s8 %v1472
        %v1474 = vlaneseq
        %v1475 = vshrl.u32 %v1474, 7
        %v1476 = vsub.s32 %v1473, %v1475
        %v1477 = vrot.slane %v1469, %v1476
        %v1479 = vunpack.c.l.s4 1983009808
        %v1480 = vunpack.c.0.s8 %v1479
        %v1481 = vlaneseq
        %v1482 = vshrl.u32 %v1481, 7
        %v1483 = vsub.s32 %v1480, %v1482
        %v1484 = vrot.slane %v1470, %v1483
        %v1485 = vcombine.low %v1384, %v1392
        %v1486 = vcombine.high %v1384, %v1392
        %v1488 = vunpack.c.l.s4 1983009808
        %v1489 = vunpack.c.0.s8 %v1488
        %v1490 = vlaneseq
        %v1491 = vshrl.u32 %v1490, 7
        %v1492 = vsub.s32 %v1489, %v1491
        %v1493 = vrot.slane %v1485, %v1492
        %v1495 = vunpack.c.l.s4 1983009808
        %v1496 = vunpack.c.0.s8 %v1495
        %v1497 = vlaneseq
        %v1498 = vshrl.u32 %v1497, 7
        %v1499 = vsub.s32 %v1496, %v1498
        %v1500 = vrot.slane %v1486, %v1499
        %v1501 = vcombine.low %v1477, %v1493
        %v1502 = vcombine.high %v1477, %v1493
        %v1504 = vunpack.c.l.s4 1934713408
        %v1505 = vunpack.c.0.s8 %v1504
        %v1506 = vlaneseq
        %v1507 = vshrl.u32 %v1506, 7
        %v1508 = vsub.s32 %v1505, %v1507
        %v1509 = vrot.slane %v1501, %v1508
        %v1511 = vunpack.c.l.s4 1934713408
        %v1512 = vunpack.c.0.s8 %v1511
        %v1513 = vlaneseq
        %v1514 = vshrl.u32 %v1513, 7
        %v1515 = vsub.s32 %v1512, %v1514
        %v1516 = vrot.slane %v1502, %v1515
        %v1517 = vcombine.low %v1484, %v1500
        %v1518 = vcombine.high %v1484, %v1500
        %v1520 = vunpack.c.l.s4 1934713408
        %v1521 = vunpack.c.0.s8 %v1520
        %v1522 = vlaneseq
        %v1523 = vshrl.u32 %v1522, 7
        %v1524 = vsub.s32 %v1521, %v1523
        %v1525 = vrot.slane %v1517, %v1524
        %v1527 = vunpack.c.l.s4 1934713408
        %v1528 = vunpack.c.0.s8 %v1527
        %v1529 = vlaneseq
        %v1530 = vshrl.u32 %v1529, 7
        %v1531 = vsub.s32 %v1528, %v1530
        %v1532 = vrot.slane %v1518, %v1531
        %v1533 = vcombine.high %v1509, 0.0
        %v1534 = vcombine.high %v1516, 0.0
        %v1535 = vcombine.high %v1525, 0.0
        %v1536 = vcombine.high %v1532, 0.0
        %v1537 = vcombine.low %v1441, %v1448
        %v1539 = vunpack.c.l.s4 1983009808
        %v1540 = vunpack.c.0.s8 %v1539
        %v1541 = vlaneseq
        %v1542 = vshrl.u32 %v1541, 7
        %v1543 = vsub.s32 %v1540, %v1542
        %v1544 = vrot.slane %v1537, %v1543
        %v1545 = vcombine.low %v1465, %v1466
        %v1547 = vunpack.c.l.s4 1983009808
        %v1548 = vunpack.c.0.s8 %v1547
        %v1549 = vlaneseq
        %v1550 = vshrl.u32 %v1549, 7
        %v1551 = vsub.s32 %v1548, %v1550
        %v1552 = vrot.slane %v1545, %v1551
        %v1553 = vcombine.low %v1457, %v1464
        %v1555 = vunpack.c.l.s4 1983009808
        %v1556 = vunpack.c.0.s8 %v1555
        %v1557 = vlaneseq
        %v1558 = vshrl.u32 %v1557, 7
        %v1559 = vsub.s32 %v1556, %v1558
        %v1560 = vrot.slane %v1553, %v1559
        %v1561 = vcombine.low %v1467, %v1468
        %v1563 = vunpack.c.l.s4 1983009808
        %v1564 = vunpack.c.0.s8 %v1563
        %v1565 = vlaneseq
        %v1566 = vshrl.u32 %v1565, 7
        %v1567 = vsub.s32 %v1564, %v1566
        %v1568 = vrot.slane %v1561, %v1567
        %v1569 = vcombine.low %v1544, %v1552
        %v1570 = vcombine.high %v1544, %v1552
        %v1572 = vunpack.c.l.s4 1934713408
        %v1573 = vunpack.c.0.s8 %v1572
        %v1574 = vlaneseq
        %v1575 = vshrl.u32 %v1574, 7
        %v1576 = vsub.s32 %v1573, %v1575
        %v1577 = vrot.slane %v1569, %v1576
        %v1579 = vunpack.c.l.s4 1934713408
        %v1580 = vunpack.c.0.s8 %v1579
        %v1581 = vlaneseq
        %v1582 = vshrl.u32 %v1581, 7
        %v1583 = vsub.s32 %v1580, %v1582
        %v1584 = vrot.slane %v1570, %v1583
        %v1585 = vcombine.low %v1560, %v1568
        %v1586 = vcombine.high %v1560, %v1568
        %v1588 = vunpack.c.l.s4 1934713408
        %v1589 = vunpack.c.0.s8 %v1588
        %v1590 = vlaneseq
        %v1591 = vshrl.u32 %v1590, 7
        %v1592 = vsub.s32 %v1589, %v1591
        %v1593 = vrot.slane %v1585, %v1592
        %v1595 = vunpack.c.l.s4 1934713408
        %v1596 = vunpack.c.0.s8 %v1595
        %v1597 = vlaneseq
        %v1598 = vshrl.u32 %v1597, 7
        %v1599 = vsub.s32 %v1596, %v1598
        %v1600 = vrot.slane %v1586, %v1599
        %v1601 = vcombine.low %v1577, %v1593
        %v1602 = vcombine.high %v1577, %v1593
        %v1603 = vcombine.low %v1584, %v1600
        %v1604 = vcombine.high %v1584, %v1600
        %v1605 = vcombine.low %v1509, %v1516
        %v1607 = vunpack.c.l.s4 1983009808
        %v1608 = vunpack.c.0.s8 %v1607
        %v1609 = vlaneseq
        %v1610 = vshrl.u32 %v1609, 7
        %v1611 = vsub.s32 %v1608, %v1610
        %v1612 = vrot.slane %v1605, %v1611
        %v1613 = vcombine.low %v1533, %v1534
        %v1615 = vunpack.c.l.s4 1983009808
        %v1616 = vunpack.c.0.s8 %v1615
        %v1617 = vlaneseq
        %v1618 = vshrl.u32 %v1617, 7
        %v1619 = vsub.s32 %v1616, %v1618
        %v1620 = vrot.slane %v1613, %v1619
        %v1621 = vcombine.low %v1525, %v1532
        %v1623 = vunpack.c.l.s4 1983009808
        %v1624 = vunpack.c.0.s8 %v1623
        %v1625 = vlaneseq
        %v1626 = vshrl.u32 %v1625, 7
        %v1627 = vsub.s32 %v1624, %v1626
        %v1628 = vrot.slane %v1621, %v1627
        %v1629 = vcombine.low %v1535, %v1536
        %v1631 = vunpack.c.l.s4 1983009808
        %v1632 = vunpack.c.0.s8 %v1631
        %v1633 = vlaneseq
        %v1634 = vshrl.u32 %v1633, 7
        %v1635 = vsub.s32 %v1632, %v1634
        %v1636 = vrot.slane %v1629, %v1635
        %v1637 = vcombine.low %v1612, %v1620
        %v1638 = vcombine.high %v1612, %v1620
        %v1640 = vunpack.c.l.s4 1934713408
        %v1641 = vunpack.c.0.s8 %v1640
        %v1642 = vlaneseq
        %v1643 = vshrl.u32 %v1642, 7
        %v1644 = vsub.s32 %v1641, %v1643
        %v1645 = vrot.slane %v1637, %v1644
        %v1647 = vunpack.c.l.s4 1934713408
        %v1648 = vunpack.c.0.s8 %v1647
        %v1649 = vlaneseq
        %v1650 = vshrl.u32 %v1649, 7
        %v1651 = vsub.s32 %v1648, %v1650
        %v1652 = vrot.slane %v1638, %v1651
        %v1653 = vcombine.low %v1628, %v1636
        %v1654 = vcombine.high %v1628, %v1636
        %v1656 = vunpack.c.l.s4 1934713408
        %v1657 = vunpack.c.0.s8 %v1656
        %v1658 = vlaneseq
        %v1659 = vshrl.u32 %v1658, 7
        %v1660 = vsub.s32 %v1657, %v1659
        %v1661 = vrot.slane %v1653, %v1660
        %v1663 = vunpack.c.l.s4 1934713408
        %v1664 = vunpack.c.0.s8 %v1663
        %v1665 = vlaneseq
        %v1666 = vshrl.u32 %v1665, 7
        %v1667 = vsub.s32 %v1664, %v1666
        %v1668 = vrot.slane %v1654, %v1667
        %v1669 = vcombine.low %v1645, %v1661
        %v1670 = vcombine.high %v1645, %v1661
        %v1671 = vcombine.low %v1652, %v1668
        %v1672 = vcombine.high %v1652, %v1668
        %v1673 = vpack.c.bf16 %v1601, %v1601
        %v1674 = vpack.c.bf16 %v1602, %v1602
        %v1675 = vpack.c.bf16 %v1603, %v1603
        %v1676 = vpack.c.bf16 %v1604, %v1604
        %v1677 = vpack.c.bf16 %v1669, %v1669
        %v1678 = vpack.c.bf16 %v1670, %v1670
        %v1679 = vpack.c.bf16 %v1671, %v1671
        %v1680 = vpack.c.bf16 %v1672, %v1672
        %vm1681 = vcmask 64512
        %v1683 = vsel %vm1681, %v1065, 0
        %v1686 = vsel %vm1681, %v1369, 0
        %1688 = vmatprep.subr.bf16.mxu0 0
        %1689 = vmatpush1.bf16.xpose.msra.mxu0 %v1686
        %1690 = vmatprep.subr.bf16.mxu0 0
        %1691 = vmatpush1.bf16.xpose.msra.mxu0 0
        %1692 = vmatprep.subr.bf16.mxu0 0
        %1693 = vmatpush1.bf16.xpose.msra.mxu0 0
        %1694 = vmatprep.subr.bf16.mxu0 0
        %1695 = vmatpush1.bf16.xpose.msra.mxu0 0
        %1696 = vmatprep.subr.bf16.mxu0 0
        %1697 = vmatpush1.bf16.xpose.msra.mxu0 0
        %1698 = vmatprep.subr.bf16.mxu0 0
        %1699 = vmatpush1.bf16.xpose.msra.mxu0 0
        %1700 = vmatprep.subr.bf16.mxu0 0
        %1701 = vmatpush1.bf16.xpose.msra.mxu0 0
        %1702 = vmatprep.subr.bf16.mxu0 0
        %1703 = vmatpush1.bf16.xpose.msra.mxu0 0
        %1704 = vmatprep.subr.bf16.mxu0 0
        %1705 = vmatpush1.bf16.xpose.msra.mxu0 0
        %1706 = vmatprep.subr.bf16.mxu0 0
        %1707 = vmatpush1.bf16.xpose.msra.mxu0 0
        %1708 = vmatprep.subr.bf16.mxu0 0
        %1709 = vmatpush1.bf16.xpose.msra.mxu0 0
        %1710 = vmatprep.subr.bf16.mxu0 0
        %1711 = vmatpush1.bf16.xpose.msra.mxu0 0
        %1712 = vmatprep.subr.bf16.mxu0 0
        %1713 = vmatpush1.bf16.xpose.msra.mxu0 0
        %1714 = vmatprep.subr.bf16.mxu0 0
        %1715 = vmatpush1.bf16.xpose.msra.mxu0 0
        %1716 = vmatprep.subr.bf16.mxu0 0
        %1717 = vmatpush1.bf16.xpose.msra.mxu0 0
        %1718 = vmatprep.subr.bf16.mxu0 0
        %1719 = vmatpush1.bf16.xpose.msra.mxu0 0
        %1720 = vmatprep.mubr.bf16.mxu0 0
        %1721 = vmatmul.mubr.bf16.gmra.mrb[0].mxu0 %v1683
        %v1722 = vpop.f32.mrb[0].mxu0
        %v1723 = vadd.f32 0.0, %v1722
        %v1724 = vpop.f32.mrb[0].mxu0
        %v1725 = vpop.f32.mrb[0].mxu0
        %v1726 = vpop.f32.mrb[0].mxu0
        %1727 = vdwg.mxu0
        %v1729 = vsel %vm1681, %v1066, 0
        %v1732 = vsel %vm1681, %v1370, 0
        %1734 = vmatprep.subr.bf16.mxu0 0
        %1735 = vmatpush1.bf16.xpose.msra.mxu0 %v1732
        %1736 = vmatprep.subr.bf16.mxu0 0
        %1737 = vmatpush1.bf16.xpose.msra.mxu0 0
        %1738 = vmatprep.subr.bf16.mxu0 0
        %1739 = vmatpush1.bf16.xpose.msra.mxu0 0
        %1740 = vmatprep.subr.bf16.mxu0 0
        %1741 = vmatpush1.bf16.xpose.msra.mxu0 0
        %1742 = vmatprep.subr.bf16.mxu0 0
        %1743 = vmatpush1.bf16.xpose.msra.mxu0 0
        %1744 = vmatprep.subr.bf16.mxu0 0
        %1745 = vmatpush1.bf16.xpose.msra.mxu0 0
        %1746 = vmatprep.subr.bf16.mxu0 0
        %1747 = vmatpush1.bf16.xpose.msra.mxu0 0
        %1748 = vmatprep.subr.bf16.mxu0 0
        %1749 = vmatpush1.bf16.xpose.msra.mxu0 0
        %1750 = vmatprep.subr.bf16.mxu0 0
        %1751 = vmatpush1.bf16.xpose.msra.mxu0 0
        %1752 = vmatprep.subr.bf16.mxu0 0
        %1753 = vmatpush1.bf16.xpose.msra.mxu0 0
        %1754 = vmatprep.subr.bf16.mxu0 0
        %1755 = vmatpush1.bf16.xpose.msra.mxu0 0
        %1756 = vmatprep.subr.bf16.mxu0 0
        %1757 = vmatpush1.bf16.xpose.msra.mxu0 0
        %1758 = vmatprep.subr.bf16.mxu0 0
        %1759 = vmatpush1.bf16.xpose.msra.mxu0 0
        %1760 = vmatprep.subr.bf16.mxu0 0
        %1761 = vmatpush1.bf16.xpose.msra.mxu0 0
        %1762 = vmatprep.subr.bf16.mxu0 0
        %1763 = vmatpush1.bf16.xpose.msra.mxu0 0
        %1764 = vmatprep.subr.bf16.mxu0 0
        %1765 = vmatpush1.bf16.xpose.msra.mxu0 0
        %1766 = vmatprep.mubr.bf16.mxu0 0
        %1767 = vmatmul.mubr.bf16.gmra.mrb[0].mxu0 %v1729
        %v1768 = vpop.f32.mrb[0].mxu0
        %v1769 = vadd.f32 0.0, %v1768
        %v1770 = vpop.f32.mrb[0].mxu0
        %v1771 = vpop.f32.mrb[0].mxu0
        %v1772 = vpop.f32.mrb[0].mxu0
        %1773 = vdwg.mxu0
        %v1775 = vsel %vm1681, %v1067, 0
        %v1778 = vsel %vm1681, %v1371, 0
        %1780 = vmatprep.subr.bf16.mxu0 0
        %1781 = vmatpush1.bf16.xpose.msra.mxu0 %v1778
        %1782 = vmatprep.subr.bf16.mxu0 0
        %1783 = vmatpush1.bf16.xpose.msra.mxu0 0
        %1784 = vmatprep.subr.bf16.mxu0 0
        %1785 = vmatpush1.bf16.xpose.msra.mxu0 0
        %1786 = vmatprep.subr.bf16.mxu0 0
        %1787 = vmatpush1.bf16.xpose.msra.mxu0 0
        %1788 = vmatprep.subr.bf16.mxu0 0
        %1789 = vmatpush1.bf16.xpose.msra.mxu0 0
        %1790 = vmatprep.subr.bf16.mxu0 0
        %1791 = vmatpush1.bf16.xpose.msra.mxu0 0
        %1792 = vmatprep.subr.bf16.mxu0 0
        %1793 = vmatpush1.bf16.xpose.msra.mxu0 0
        %1794 = vmatprep.subr.bf16.mxu0 0
        %1795 = vmatpush1.bf16.xpose.msra.mxu0 0
        %1796 = vmatprep.subr.bf16.mxu0 0
        %1797 = vmatpush1.bf16.xpose.msra.mxu0 0
        %1798 = vmatprep.subr.bf16.mxu0 0
        %1799 = vmatpush1.bf16.xpose.msra.mxu0 0
        %1800 = vmatprep.subr.bf16.mxu0 0
        %1801 = vmatpush1.bf16.xpose.msra.mxu0 0
        %1802 = vmatprep.subr.bf16.mxu0 0
        %1803 = vmatpush1.bf16.xpose.msra.mxu0 0
        %1804 = vmatprep.subr.bf16.mxu0 0
        %1805 = vmatpush1.bf16.xpose.msra.mxu0 0
        %1806 = vmatprep.subr.bf16.mxu0 0
        %1807 = vmatpush1.bf16.xpose.msra.mxu0 0
        %1808 = vmatprep.subr.bf16.mxu0 0
        %1809 = vmatpush1.bf16.xpose.msra.mxu0 0
        %1810 = vmatprep.subr.bf16.mxu0 0
        %1811 = vmatpush1.bf16.xpose.msra.mxu0 0
        %1812 = vmatprep.mubr.bf16.mxu0 0
        %1813 = vmatmul.mubr.bf16.gmra.mrb[0].mxu0 %v1775
        %v1814 = vpop.f32.mrb[0].mxu0
        %v1815 = vadd.f32 0.0, %v1814
        %v1816 = vpop.f32.mrb[0].mxu0
        %v1817 = vpop.f32.mrb[0].mxu0
        %v1818 = vpop.f32.mrb[0].mxu0
        %1819 = vdwg.mxu0
        %v1821 = vsel %vm1681, %v1068, 0
        %v1824 = vsel %vm1681, %v1372, 0
        %1826 = vmatprep.subr.bf16.mxu0 0
        %1827 = vmatpush1.bf16.xpose.msra.mxu0 %v1824
        %1828 = vmatprep.subr.bf16.mxu0 0
        %1829 = vmatpush1.bf16.xpose.msra.mxu0 0
        %1830 = vmatprep.subr.bf16.mxu0 0
        %1831 = vmatpush1.bf16.xpose.msra.mxu0 0
        %1832 = vmatprep.subr.bf16.mxu0 0
        %1833 = vmatpush1.bf16.xpose.msra.mxu0 0
        %1834 = vmatprep.subr.bf16.mxu0 0
        %1835 = vmatpush1.bf16.xpose.msra.mxu0 0
        %1836 = vmatprep.subr.bf16.mxu0 0
        %1837 = vmatpush1.bf16.xpose.msra.mxu0 0
        %1838 = vmatprep.subr.bf16.mxu0 0
        %1839 = vmatpush1.bf16.xpose.msra.mxu0 0
        %1840 = vmatprep.subr.bf16.mxu0 0
        %1841 = vmatpush1.bf16.xpose.msra.mxu0 0
        %1842 = vmatprep.subr.bf16.mxu0 0
        %1843 = vmatpush1.bf16.xpose.msra.mxu0 0
        %1844 = vmatprep.subr.bf16.mxu0 0
        %1845 = vmatpush1.bf16.xpose.msra.mxu0 0
        %1846 = vmatprep.subr.bf16.mxu0 0
        %1847 = vmatpush1.bf16.xpose.msra.mxu0 0
        %1848 = vmatprep.subr.bf16.mxu0 0
        %1849 = vmatpush1.bf16.xpose.msra.mxu0 0
        %1850 = vmatprep.subr.bf16.mxu0 0
        %1851 = vmatpush1.bf16.xpose.msra.mxu0 0
        %1852 = vmatprep.subr.bf16.mxu0 0
        %1853 = vmatpush1.bf16.xpose.msra.mxu0 0
        %1854 = vmatprep.subr.bf16.mxu0 0
        %1855 = vmatpush1.bf16.xpose.msra.mxu0 0
        %1856 = vmatprep.subr.bf16.mxu0 0
        %1857 = vmatpush1.bf16.xpose.msra.mxu0 0
        %1858 = vmatprep.mubr.bf16.mxu0 0
        %1859 = vmatmul.mubr.bf16.gmra.mrb[0].mxu0 %v1821
        %v1860 = vpop.f32.mrb[0].mxu0
        %v1861 = vadd.f32 0.0, %v1860
        %v1862 = vpop.f32.mrb[0].mxu0
        %v1863 = vpop.f32.mrb[0].mxu0
        %v1864 = vpop.f32.mrb[0].mxu0
        %1865 = vdwg.mxu0
        %v1867 = vsel %vm1681, %v1069, 0
        %v1870 = vsel %vm1681, %v1373, 0
        %1872 = vmatprep.subr.bf16.mxu0 0
        %1873 = vmatpush1.bf16.xpose.msra.mxu0 %v1870
        %1874 = vmatprep.subr.bf16.mxu0 0
        %1875 = vmatpush1.bf16.xpose.msra.mxu0 0
        %1876 = vmatprep.subr.bf16.mxu0 0
        %1877 = vmatpush1.bf16.xpose.msra.mxu0 0
        %1878 = vmatprep.subr.bf16.mxu0 0
        %1879 = vmatpush1.bf16.xpose.msra.mxu0 0
        %1880 = vmatprep.subr.bf16.mxu0 0
        %1881 = vmatpush1.bf16.xpose.msra.mxu0 0
        %1882 = vmatprep.subr.bf16.mxu0 0
        %1883 = vmatpush1.bf16.xpose.msra.mxu0 0
        %1884 = vmatprep.subr.bf16.mxu0 0
        %1885 = vmatpush1.bf16.xpose.msra.mxu0 0
        %1886 = vmatprep.subr.bf16.mxu0 0
        %1887 = vmatpush1.bf16.xpose.msra.mxu0 0
        %1888 = vmatprep.subr.bf16.mxu0 0
        %1889 = vmatpush1.bf16.xpose.msra.mxu0 0
        %1890 = vmatprep.subr.bf16.mxu0 0
        %1891 = vmatpush1.bf16.xpose.msra.mxu0 0
        %1892 = vmatprep.subr.bf16.mxu0 0
        %1893 = vmatpush1.bf16.xpose.msra.mxu0 0
        %1894 = vmatprep.subr.bf16.mxu0 0
        %1895 = vmatpush1.bf16.xpose.msra.mxu0 0
        %1896 = vmatprep.subr.bf16.mxu0 0
        %1897 = vmatpush1.bf16.xpose.msra.mxu0 0
        %1898 = vmatprep.subr.bf16.mxu0 0
        %1899 = vmatpush1.bf16.xpose.msra.mxu0 0
        %1900 = vmatprep.subr.bf16.mxu0 0
        %1901 = vmatpush1.bf16.xpose.msra.mxu0 0
        %1902 = vmatprep.subr.bf16.mxu0 0
        %1903 = vmatpush1.bf16.xpose.msra.mxu0 0
        %1904 = vmatprep.mubr.bf16.mxu0 0
        %1905 = vmatmul.mubr.bf16.gmra.mrb[0].mxu0 %v1867
        %v1906 = vpop.f32.mrb[0].mxu0
        %v1907 = vadd.f32 0.0, %v1906
        %v1908 = vpop.f32.mrb[0].mxu0
        %v1909 = vpop.f32.mrb[0].mxu0
        %v1910 = vpop.f32.mrb[0].mxu0
        %1911 = vdwg.mxu0
        %v1913 = vsel %vm1681, %v1070, 0
        %v1916 = vsel %vm1681, %v1374, 0
        %1918 = vmatprep.subr.bf16.mxu0 0
        %1919 = vmatpush1.bf16.xpose.msra.mxu0 %v1916
        %1920 = vmatprep.subr.bf16.mxu0 0
        %1921 = vmatpush1.bf16.xpose.msra.mxu0 0
        %1922 = vmatprep.subr.bf16.mxu0 0
        %1923 = vmatpush1.bf16.xpose.msra.mxu0 0
        %1924 = vmatprep.subr.bf16.mxu0 0
        %1925 = vmatpush1.bf16.xpose.msra.mxu0 0
        %1926 = vmatprep.subr.bf16.mxu0 0
        %1927 = vmatpush1.bf16.xpose.msra.mxu0 0
        %1928 = vmatprep.subr.bf16.mxu0 0
        %1929 = vmatpush1.bf16.xpose.msra.mxu0 0
        %1930 = vmatprep.subr.bf16.mxu0 0
        %1931 = vmatpush1.bf16.xpose.msra.mxu0 0
        %1932 = vmatprep.subr.bf16.mxu0 0
        %1933 = vmatpush1.bf16.xpose.msra.mxu0 0
        %1934 = vmatprep.subr.bf16.mxu0 0
        %1935 = vmatpush1.bf16.xpose.msra.mxu0 0
        %1936 = vmatprep.subr.bf16.mxu0 0
        %1937 = vmatpush1.bf16.xpose.msra.mxu0 0
        %1938 = vmatprep.subr.bf16.mxu0 0
        %1939 = vmatpush1.bf16.xpose.msra.mxu0 0
        %1940 = vmatprep.subr.bf16.mxu0 0
        %1941 = vmatpush1.bf16.xpose.msra.mxu0 0
        %1942 = vmatprep.subr.bf16.mxu0 0
        %1943 = vmatpush1.bf16.xpose.msra.mxu0 0
        %1944 = vmatprep.subr.bf16.mxu0 0
        %1945 = vmatpush1.bf16.xpose.msra.mxu0 0
        %1946 = vmatprep.subr.bf16.mxu0 0
        %1947 = vmatpush1.bf16.xpose.msra.mxu0 0
        %1948 = vmatprep.subr.bf16.mxu0 0
        %1949 = vmatpush1.bf16.xpose.msra.mxu0 0
        %1950 = vmatprep.mubr.bf16.mxu0 0
        %1951 = vmatmul.mubr.bf16.gmra.mrb[0].mxu0 %v1913
        %v1952 = vpop.f32.mrb[0].mxu0
        %v1953 = vadd.f32 0.0, %v1952
        %v1954 = vpop.f32.mrb[0].mxu0
        %v1955 = vpop.f32.mrb[0].mxu0
        %v1956 = vpop.f32.mrb[0].mxu0
        %1957 = vdwg.mxu0
        %v1959 = vsel %vm1681, %v1071, 0
        %v1962 = vsel %vm1681, %v1375, 0
        %1964 = vmatprep.subr.bf16.mxu0 0
        %1965 = vmatpush1.bf16.xpose.msra.mxu0 %v1962
        %1966 = vmatprep.subr.bf16.mxu0 0
        %1967 = vmatpush1.bf16.xpose.msra.mxu0 0
        %1968 = vmatprep.subr.bf16.mxu0 0
        %1969 = vmatpush1.bf16.xpose.msra.mxu0 0
        %1970 = vmatprep.subr.bf16.mxu0 0
        %1971 = vmatpush1.bf16.xpose.msra.mxu0 0
        %1972 = vmatprep.subr.bf16.mxu0 0
        %1973 = vmatpush1.bf16.xpose.msra.mxu0 0
        %1974 = vmatprep.subr.bf16.mxu0 0
        %1975 = vmatpush1.bf16.xpose.msra.mxu0 0
        %1976 = vmatprep.subr.bf16.mxu0 0
        %1977 = vmatpush1.bf16.xpose.msra.mxu0 0
        %1978 = vmatprep.subr.bf16.mxu0 0
        %1979 = vmatpush1.bf16.xpose.msra.mxu0 0
        %1980 = vmatprep.subr.bf16.mxu0 0
        %1981 = vmatpush1.bf16.xpose.msra.mxu0 0
        %1982 = vmatprep.subr.bf16.mxu0 0
        %1983 = vmatpush1.bf16.xpose.msra.mxu0 0
        %1984 = vmatprep.subr.bf16.mxu0 0
        %1985 = vmatpush1.bf16.xpose.msra.mxu0 0
        %1986 = vmatprep.subr.bf16.mxu0 0
        %1987 = vmatpush1.bf16.xpose.msra.mxu0 0
        %1988 = vmatprep.subr.bf16.mxu0 0
        %1989 = vmatpush1.bf16.xpose.msra.mxu0 0
        %1990 = vmatprep.subr.bf16.mxu0 0
        %1991 = vmatpush1.bf16.xpose.msra.mxu0 0
        %1992 = vmatprep.subr.bf16.mxu0 0
        %1993 = vmatpush1.bf16.xpose.msra.mxu0 0
        %1994 = vmatprep.subr.bf16.mxu0 0
        %1995 = vmatpush1.bf16.xpose.msra.mxu0 0
        %1996 = vmatprep.mubr.bf16.mxu0 0
        %1997 = vmatmul.mubr.bf16.gmra.mrb[0].mxu0 %v1959
        %v1998 = vpop.f32.mrb[0].mxu0
        %v1999 = vadd.f32 0.0, %v1998
        %v2000 = vpop.f32.mrb[0].mxu0
        %v2001 = vpop.f32.mrb[0].mxu0
        %v2002 = vpop.f32.mrb[0].mxu0
        %2003 = vdwg.mxu0
        %v2005 = vsel %vm1681, %v1072, 0
        %v2008 = vsel %vm1681, %v1376, 0
        %2010 = vmatprep.subr.bf16.mxu0 0
        %2011 = vmatpush1.bf16.xpose.msra.mxu0 %v2008
        %2012 = vmatprep.subr.bf16.mxu0 0
        %2013 = vmatpush1.bf16.xpose.msra.mxu0 0
        %2014 = vmatprep.subr.bf16.mxu0 0
        %2015 = vmatpush1.bf16.xpose.msra.mxu0 0
        %2016 = vmatprep.subr.bf16.mxu0 0
        %2017 = vmatpush1.bf16.xpose.msra.mxu0 0
        %2018 = vmatprep.subr.bf16.mxu0 0
        %2019 = vmatpush1.bf16.xpose.msra.mxu0 0
        %2020 = vmatprep.subr.bf16.mxu0 0
        %2021 = vmatpush1.bf16.xpose.msra.mxu0 0
        %2022 = vmatprep.subr.bf16.mxu0 0
        %2023 = vmatpush1.bf16.xpose.msra.mxu0 0
        %2024 = vmatprep.subr.bf16.mxu0 0
        %2025 = vmatpush1.bf16.xpose.msra.mxu0 0
        %2026 = vmatprep.subr.bf16.mxu0 0
        %2027 = vmatpush1.bf16.xpose.msra.mxu0 0
        %2028 = vmatprep.subr.bf16.mxu0 0
        %2029 = vmatpush1.bf16.xpose.msra.mxu0 0
        %2030 = vmatprep.subr.bf16.mxu0 0
        %2031 = vmatpush1.bf16.xpose.msra.mxu0 0
        %2032 = vmatprep.subr.bf16.mxu0 0
        %2033 = vmatpush1.bf16.xpose.msra.mxu0 0
        %2034 = vmatprep.subr.bf16.mxu0 0
        %2035 = vmatpush1.bf16.xpose.msra.mxu0 0
        %2036 = vmatprep.subr.bf16.mxu0 0
        %2037 = vmatpush1.bf16.xpose.msra.mxu0 0
        %2038 = vmatprep.subr.bf16.mxu0 0
        %2039 = vmatpush1.bf16.xpose.msra.mxu0 0
        %2040 = vmatprep.subr.bf16.mxu0 0
        %2041 = vmatpush1.bf16.xpose.msra.mxu0 0
        %2042 = vmatprep.mubr.bf16.mxu0 0
        %2043 = vmatmul.mubr.bf16.gmra.mrb[0].mxu0 %v2005
        %v2044 = vpop.f32.mrb[0].mxu0
        %v2045 = vadd.f32 0.0, %v2044
        %v2046 = vpop.f32.mrb[0].mxu0
        %v2047 = vpop.f32.mrb[0].mxu0
        %v2048 = vpop.f32.mrb[0].mxu0
        %2049 = vdwg.mxu0
        %v2050 = vsel %vm1681, %v1723, -inf
        %2051 = vmax.xlane.f32.xlu0 %v2050
        %v2052 = vpop.xlane.xlu0 %2051
        %v2053 = vsel %vm1681, %v1769, -inf
        %2054 = vmax.xlane.f32.xlu0 %v2053
        %v2055 = vpop.xlane.xlu0 %2054
        %v2056 = vsel %vm1681, %v1815, -inf
        %2057 = vmax.xlane.f32.xlu0 %v2056
        %v2058 = vpop.xlane.xlu0 %2057
        %v2059 = vsel %vm1681, %v1861, -inf
        %2060 = vmax.xlane.f32.xlu0 %v2059
        %v2061 = vpop.xlane.xlu0 %2060
        %v2062 = vsel %vm1681, %v1907, -inf
        %2063 = vmax.xlane.f32.xlu0 %v2062
        %v2064 = vpop.xlane.xlu0 %2063
        %v2065 = vsel %vm1681, %v1953, -inf
        %2066 = vmax.xlane.f32.xlu0 %v2065
        %v2067 = vpop.xlane.xlu0 %2066
        %v2068 = vsel %vm1681, %v1999, -inf
        %2069 = vmax.xlane.f32.xlu0 %v2068
        %v2070 = vpop.xlane.xlu0 %2069
        %v2071 = vsel %vm1681, %v2045, -inf
        %2072 = vmax.xlane.f32.xlu0 %v2071
        %v2073 = vpop.xlane.xlu0 %2072
        %v2074 = vsub.f32 %v1723, %v2052
        %v2075 = vsub.f32 %v1769, %v2055
        %v2076 = vsub.f32 %v1815, %v2058
        %v2077 = vsub.f32 %v1861, %v2061
        %v2078 = vsub.f32 %v1907, %v2064
        %v2079 = vsub.f32 %v1953, %v2067
        %v2080 = vsub.f32 %v1999, %v2070
        %v2081 = vsub.f32 %v2045, %v2073
        %v2082 = vmul.f32 %v2074, 1.442695
        %v2083 = vpow.pop %v2082
        %v2084 = vmul.f32 %v2075, 1.442695
        %v2085 = vpow.pop %v2084
        %v2086 = vmul.f32 %v2076, 1.442695
        %v2087 = vpow.pop %v2086
        %v2088 = vmul.f32 %v2077, 1.442695
        %v2089 = vpow.pop %v2088
        %v2090 = vmul.f32 %v2078, 1.442695
        %v2091 = vpow.pop %v2090
        %v2092 = vmul.f32 %v2079, 1.442695
        %v2093 = vpow.pop %v2092
        %v2094 = vmul.f32 %v2080, 1.442695
        %v2095 = vpow.pop %v2094
        %v2096 = vmul.f32 %v2081, 1.442695
        %v2097 = vpow.pop %v2096
        %v2098 = vsel %vm1681, %v2083, 0.0
        %2099 = vadd.xlane.f32.xlu0 %v2098
        %v2100 = vpop.xlane.xlu0 %2099
        %v2101 = vsel %vm1681, %v2085, 0.0
        %2102 = vadd.xlane.f32.xlu0 %v2101
        %v2103 = vpop.xlane.xlu0 %2102
        %v2104 = vsel %vm1681, %v2087, 0.0
        %2105 = vadd.xlane.f32.xlu0 %v2104
        %v2106 = vpop.xlane.xlu0 %2105
        %v2107 = vsel %vm1681, %v2089, 0.0
        %2108 = vadd.xlane.f32.xlu0 %v2107
        %v2109 = vpop.xlane.xlu0 %2108
        %v2110 = vsel %vm1681, %v2091, 0.0
        %2111 = vadd.xlane.f32.xlu0 %v2110
        %v2112 = vpop.xlane.xlu0 %2111
        %v2113 = vsel %vm1681, %v2093, 0.0
        %2114 = vadd.xlane.f32.xlu0 %v2113
        %v2115 = vpop.xlane.xlu0 %2114
        %v2116 = vsel %vm1681, %v2095, 0.0
        %2117 = vadd.xlane.f32.xlu0 %v2116
        %v2118 = vpop.xlane.xlu0 %2117
        %v2119 = vsel %vm1681, %v2097, 0.0
        %2120 = vadd.xlane.f32.xlu0 %v2119
        %v2121 = vpop.xlane.xlu0 %2120
        %v2122 = vrcp.pop %v2100
        %v2123 = vrcp.pop %v2103
        %v2124 = vrcp.pop %v2106
        %v2125 = vrcp.pop %v2109
        %v2126 = vrcp.pop %v2112
        %v2127 = vrcp.pop %v2115
        %v2128 = vrcp.pop %v2118
        %v2129 = vrcp.pop %v2121
        %v2130 = vmul.f32 %v2083, %v2122
        %v2131 = vmul.f32 %v2085, %v2123
        %v2132 = vmul.f32 %v2087, %v2124
        %v2133 = vmul.f32 %v2089, %v2125
        %v2134 = vmul.f32 %v2091, %v2126
        %v2135 = vmul.f32 %v2093, %v2127
        %v2136 = vmul.f32 %v2095, %v2128
        %v2137 = vmul.f32 %v2097, %v2129
        %v2138 = vpack.c.bf16 %v2130, %v2130
        %v2139 = vpack.c.bf16 %v2131, %v2131
        %v2140 = vpack.c.bf16 %v2132, %v2132
        %v2141 = vpack.c.bf16 %v2133, %v2133
        %v2142 = vpack.c.bf16 %v2134, %v2134
        %v2143 = vpack.c.bf16 %v2135, %v2135
        %v2144 = vpack.c.bf16 %v2136, %v2136
        %v2145 = vpack.c.bf16 %v2137, %v2137
        %v2147 = vsel %vm1681, %v2138, 0
        %vm2149 = vcmask 1043456
        %v2151 = vsel %vm2149, %v1673, 0
        %2153 = vmatprep.subr.bf16.mxu0 0
        %2154 = vmatpush1.bf16.msra.mxu0 %v2151
        %2155 = vmatprep.subr.bf16.mxu0 0
        %2156 = vmatpush1.bf16.msra.mxu0 0
        %2157 = vmatprep.subr.bf16.mxu0 0
        %2158 = vmatpush1.bf16.msra.mxu0 0
        %2159 = vmatprep.subr.bf16.mxu0 0
        %2160 = vmatpush1.bf16.msra.mxu0 0
        %2161 = vmatprep.subr.bf16.mxu0 0
        %2162 = vmatpush1.bf16.msra.mxu0 0
        %2163 = vmatprep.subr.bf16.mxu0 0
        %2164 = vmatpush1.bf16.msra.mxu0 0
        %2165 = vmatprep.subr.bf16.mxu0 0
        %2166 = vmatpush1.bf16.msra.mxu0 0
        %2167 = vmatprep.subr.bf16.mxu0 0
        %2168 = vmatpush1.bf16.msra.mxu0 0
        %2169 = vmatprep.subr.bf16.mxu0 0
        %2170 = vmatpush1.bf16.msra.mxu0 0
        %2171 = vmatprep.subr.bf16.mxu0 0
        %2172 = vmatpush1.bf16.msra.mxu0 0
        %2173 = vmatprep.subr.bf16.mxu0 0
        %2174 = vmatpush1.bf16.msra.mxu0 0
        %2175 = vmatprep.subr.bf16.mxu0 0
        %2176 = vmatpush1.bf16.msra.mxu0 0
        %2177 = vmatprep.subr.bf16.mxu0 0
        %2178 = vmatpush1.bf16.msra.mxu0 0
        %2179 = vmatprep.subr.bf16.mxu0 0
        %2180 = vmatpush1.bf16.msra.mxu0 0
        %2181 = vmatprep.subr.bf16.mxu0 0
        %2182 = vmatpush1.bf16.msra.mxu0 0
        %2183 = vmatprep.subr.bf16.mxu0 0
        %2184 = vmatpush1.bf16.msra.mxu0 0
        %2185 = vmatprep.mubr.bf16.mxu0 0
        %2186 = vmatmul.mubr.bf16.gmra.mrb[0].mxu0 %v2147
        %v2187 = vpop.f32.mrb[0].mxu0
        %v2188 = vadd.f32 0.0, %v2187
        %v2189 = vpop.f32.mrb[0].mxu0
        %v2190 = vpop.f32.mrb[0].mxu0
        %v2191 = vpop.f32.mrb[0].mxu0
        %2192 = vdwg.mxu0
        %v2194 = vsel %vm1681, %v2139, 0
        %v2197 = vsel %vm2149, %v1674, 0
        %2199 = vmatprep.subr.bf16.mxu0 0
        %2200 = vmatpush1.bf16.msra.mxu0 %v2197
        %2201 = vmatprep.subr.bf16.mxu0 0
        %2202 = vmatpush1.bf16.msra.mxu0 0
        %2203 = vmatprep.subr.bf16.mxu0 0
        %2204 = vmatpush1.bf16.msra.mxu0 0
        %2205 = vmatprep.subr.bf16.mxu0 0
        %2206 = vmatpush1.bf16.msra.mxu0 0
        %2207 = vmatprep.subr.bf16.mxu0 0
        %2208 = vmatpush1.bf16.msra.mxu0 0
        %2209 = vmatprep.subr.bf16.mxu0 0
        %2210 = vmatpush1.bf16.msra.mxu0 0
        %2211 = vmatprep.subr.bf16.mxu0 0
        %2212 = vmatpush1.bf16.msra.mxu0 0
        %2213 = vmatprep.subr.bf16.mxu0 0
        %2214 = vmatpush1.bf16.msra.mxu0 0
        %2215 = vmatprep.subr.bf16.mxu0 0
        %2216 = vmatpush1.bf16.msra.mxu0 0
        %2217 = vmatprep.subr.bf16.mxu0 0
        %2218 = vmatpush1.bf16.msra.mxu0 0
        %2219 = vmatprep.subr.bf16.mxu0 0
        %2220 = vmatpush1.bf16.msra.mxu0 0
        %2221 = vmatprep.subr.bf16.mxu0 0
        %2222 = vmatpush1.bf16.msra.mxu0 0
        %2223 = vmatprep.subr.bf16.mxu0 0
        %2224 = vmatpush1.bf16.msra.mxu0 0
        %2225 = vmatprep.subr.bf16.mxu0 0
        %2226 = vmatpush1.bf16.msra.mxu0 0
        %2227 = vmatprep.subr.bf16.mxu0 0
        %2228 = vmatpush1.bf16.msra.mxu0 0
        %2229 = vmatprep.subr.bf16.mxu0 0
        %2230 = vmatpush1.bf16.msra.mxu0 0
        %2231 = vmatprep.mubr.bf16.mxu0 0
        %2232 = vmatmul.mubr.bf16.gmra.mrb[0].mxu0 %v2194
        %v2233 = vpop.f32.mrb[0].mxu0
        %v2234 = vadd.f32 0.0, %v2233
        %v2235 = vpop.f32.mrb[0].mxu0
        %v2236 = vpop.f32.mrb[0].mxu0
        %v2237 = vpop.f32.mrb[0].mxu0
        %2238 = vdwg.mxu0
        %v2240 = vsel %vm1681, %v2140, 0
        %v2243 = vsel %vm2149, %v1675, 0
        %2245 = vmatprep.subr.bf16.mxu0 0
        %2246 = vmatpush1.bf16.msra.mxu0 %v2243
        %2247 = vmatprep.subr.bf16.mxu0 0
        %2248 = vmatpush1.bf16.msra.mxu0 0
        %2249 = vmatprep.subr.bf16.mxu0 0
        %2250 = vmatpush1.bf16.msra.mxu0 0
        %2251 = vmatprep.subr.bf16.mxu0 0
        %2252 = vmatpush1.bf16.msra.mxu0 0
        %2253 = vmatprep.subr.bf16.mxu0 0
        %2254 = vmatpush1.bf16.msra.mxu0 0
        %2255 = vmatprep.subr.bf16.mxu0 0
        %2256 = vmatpush1.bf16.msra.mxu0 0
        %2257 = vmatprep.subr.bf16.mxu0 0
        %2258 = vmatpush1.bf16.msra.mxu0 0
        %2259 = vmatprep.subr.bf16.mxu0 0
        %2260 = vmatpush1.bf16.msra.mxu0 0
        %2261 = vmatprep.subr.bf16.mxu0 0
        %2262 = vmatpush1.bf16.msra.mxu0 0
        %2263 = vmatprep.subr.bf16.mxu0 0
        %2264 = vmatpush1.bf16.msra.mxu0 0
        %2265 = vmatprep.subr.bf16.mxu0 0
        %2266 = vmatpush1.bf16.msra.mxu0 0
        %2267 = vmatprep.subr.bf16.mxu0 0
        %2268 = vmatpush1.bf16.msra.mxu0 0
        %2269 = vmatprep.subr.bf16.mxu0 0
        %2270 = vmatpush1.bf16.msra.mxu0 0
        %2271 = vmatprep.subr.bf16.mxu0 0
        %2272 = vmatpush1.bf16.msra.mxu0 0
        %2273 = vmatprep.subr.bf16.mxu0 0
        %2274 = vmatpush1.bf16.msra.mxu0 0
        %2275 = vmatprep.subr.bf16.mxu0 0
        %2276 = vmatpush1.bf16.msra.mxu0 0
        %2277 = vmatprep.mubr.bf16.mxu0 0
        %2278 = vmatmul.mubr.bf16.gmra.mrb[0].mxu0 %v2240
        %v2279 = vpop.f32.mrb[0].mxu0
        %v2280 = vadd.f32 0.0, %v2279
        %v2281 = vpop.f32.mrb[0].mxu0
        %v2282 = vpop.f32.mrb[0].mxu0
        %v2283 = vpop.f32.mrb[0].mxu0
        %2284 = vdwg.mxu0
        %v2286 = vsel %vm1681, %v2141, 0
        %v2289 = vsel %vm2149, %v1676, 0
        %2291 = vmatprep.subr.bf16.mxu0 0
        %2292 = vmatpush1.bf16.msra.mxu0 %v2289
        %2293 = vmatprep.subr.bf16.mxu0 0
        %2294 = vmatpush1.bf16.msra.mxu0 0
        %2295 = vmatprep.subr.bf16.mxu0 0
        %2296 = vmatpush1.bf16.msra.mxu0 0
        %2297 = vmatprep.subr.bf16.mxu0 0
        %2298 = vmatpush1.bf16.msra.mxu0 0
        %2299 = vmatprep.subr.bf16.mxu0 0
        %2300 = vmatpush1.bf16.msra.mxu0 0
        %2301 = vmatprep.subr.bf16.mxu0 0
        %2302 = vmatpush1.bf16.msra.mxu0 0
        %2303 = vmatprep.subr.bf16.mxu0 0
        %2304 = vmatpush1.bf16.msra.mxu0 0
        %2305 = vmatprep.subr.bf16.mxu0 0
        %2306 = vmatpush1.bf16.msra.mxu0 0
        %2307 = vmatprep.subr.bf16.mxu0 0
        %2308 = vmatpush1.bf16.msra.mxu0 0
        %2309 = vmatprep.subr.bf16.mxu0 0
        %2310 = vmatpush1.bf16.msra.mxu0 0
        %2311 = vmatprep.subr.bf16.mxu0 0
        %2312 = vmatpush1.bf16.msra.mxu0 0
        %2313 = vmatprep.subr.bf16.mxu0 0
        %2314 = vmatpush1.bf16.msra.mxu0 0
        %2315 = vmatprep.subr.bf16.mxu0 0
        %2316 = vmatpush1.bf16.msra.mxu0 0
        %2317 = vmatprep.subr.bf16.mxu0 0
        %2318 = vmatpush1.bf16.msra.mxu0 0
        %2319 = vmatprep.subr.bf16.mxu0 0
        %2320 = vmatpush1.bf16.msra.mxu0 0
        %2321 = vmatprep.subr.bf16.mxu0 0
        %2322 = vmatpush1.bf16.msra.mxu0 0
        %2323 = vmatprep.mubr.bf16.mxu0 0
        %2324 = vmatmul.mubr.bf16.gmra.mrb[0].mxu0 %v2286
        %v2325 = vpop.f32.mrb[0].mxu0
        %v2326 = vadd.f32 0.0, %v2325
        %v2327 = vpop.f32.mrb[0].mxu0
        %v2328 = vpop.f32.mrb[0].mxu0
        %v2329 = vpop.f32.mrb[0].mxu0
        %2330 = vdwg.mxu0
        %v2332 = vsel %vm1681, %v2142, 0
        %v2335 = vsel %vm2149, %v1677, 0
        %2337 = vmatprep.subr.bf16.mxu0 0
        %2338 = vmatpush1.bf16.msra.mxu0 %v2335
        %2339 = vmatprep.subr.bf16.mxu0 0
        %2340 = vmatpush1.bf16.msra.mxu0 0
        %2341 = vmatprep.subr.bf16.mxu0 0
        %2342 = vmatpush1.bf16.msra.mxu0 0
        %2343 = vmatprep.subr.bf16.mxu0 0
        %2344 = vmatpush1.bf16.msra.mxu0 0
        %2345 = vmatprep.subr.bf16.mxu0 0
        %2346 = vmatpush1.bf16.msra.mxu0 0
        %2347 = vmatprep.subr.bf16.mxu0 0
        %2348 = vmatpush1.bf16.msra.mxu0 0
        %2349 = vmatprep.subr.bf16.mxu0 0
        %2350 = vmatpush1.bf16.msra.mxu0 0
        %2351 = vmatprep.subr.bf16.mxu0 0
        %2352 = vmatpush1.bf16.msra.mxu0 0
        %2353 = vmatprep.subr.bf16.mxu0 0
        %2354 = vmatpush1.bf16.msra.mxu0 0
        %2355 = vmatprep.subr.bf16.mxu0 0
        %2356 = vmatpush1.bf16.msra.mxu0 0
        %2357 = vmatprep.subr.bf16.mxu0 0
        %2358 = vmatpush1.bf16.msra.mxu0 0
        %2359 = vmatprep.subr.bf16.mxu0 0
        %2360 = vmatpush1.bf16.msra.mxu0 0
        %2361 = vmatprep.subr.bf16.mxu0 0
        %2362 = vmatpush1.bf16.msra.mxu0 0
        %2363 = vmatprep.subr.bf16.mxu0 0
        %2364 = vmatpush1.bf16.msra.mxu0 0
        %2365 = vmatprep.subr.bf16.mxu0 0
        %2366 = vmatpush1.bf16.msra.mxu0 0
        %2367 = vmatprep.subr.bf16.mxu0 0
        %2368 = vmatpush1.bf16.msra.mxu0 0
        %2369 = vmatprep.mubr.bf16.mxu0 0
        %2370 = vmatmul.mubr.bf16.gmra.mrb[0].mxu0 %v2332
        %v2371 = vpop.f32.mrb[0].mxu0
        %v2372 = vadd.f32 0.0, %v2371
        %v2373 = vpop.f32.mrb[0].mxu0
        %v2374 = vpop.f32.mrb[0].mxu0
        %v2375 = vpop.f32.mrb[0].mxu0
        %2376 = vdwg.mxu0
        %v2378 = vsel %vm1681, %v2143, 0
        %v2381 = vsel %vm2149, %v1678, 0
        %2383 = vmatprep.subr.bf16.mxu0 0
        %2384 = vmatpush1.bf16.msra.mxu0 %v2381
        %2385 = vmatprep.subr.bf16.mxu0 0
        %2386 = vmatpush1.bf16.msra.mxu0 0
        %2387 = vmatprep.subr.bf16.mxu0 0
        %2388 = vmatpush1.bf16.msra.mxu0 0
        %2389 = vmatprep.subr.bf16.mxu0 0
        %2390 = vmatpush1.bf16.msra.mxu0 0
        %2391 = vmatprep.subr.bf16.mxu0 0
        %2392 = vmatpush1.bf16.msra.mxu0 0
        %2393 = vmatprep.subr.bf16.mxu0 0
        %2394 = vmatpush1.bf16.msra.mxu0 0
        %2395 = vmatprep.subr.bf16.mxu0 0
        %2396 = vmatpush1.bf16.msra.mxu0 0
        %2397 = vmatprep.subr.bf16.mxu0 0
        %2398 = vmatpush1.bf16.msra.mxu0 0
        %2399 = vmatprep.subr.bf16.mxu0 0
        %2400 = vmatpush1.bf16.msra.mxu0 0
        %2401 = vmatprep.subr.bf16.mxu0 0
        %2402 = vmatpush1.bf16.msra.mxu0 0
        %2403 = vmatprep.subr.bf16.mxu0 0
        %2404 = vmatpush1.bf16.msra.mxu0 0
        %2405 = vmatprep.subr.bf16.mxu0 0
        %2406 = vmatpush1.bf16.msra.mxu0 0
        %2407 = vmatprep.subr.bf16.mxu0 0
        %2408 = vmatpush1.bf16.msra.mxu0 0
        %2409 = vmatprep.subr.bf16.mxu0 0
        %2410 = vmatpush1.bf16.msra.mxu0 0
        %2411 = vmatprep.subr.bf16.mxu0 0
        %2412 = vmatpush1.bf16.msra.mxu0 0
        %2413 = vmatprep.subr.bf16.mxu0 0
        %2414 = vmatpush1.bf16.msra.mxu0 0
        %2415 = vmatprep.mubr.bf16.mxu0 0
        %2416 = vmatmul.mubr.bf16.gmra.mrb[0].mxu0 %v2378
        %v2417 = vpop.f32.mrb[0].mxu0
        %v2418 = vadd.f32 0.0, %v2417
        %v2419 = vpop.f32.mrb[0].mxu0
        %v2420 = vpop.f32.mrb[0].mxu0
        %v2421 = vpop.f32.mrb[0].mxu0
        %2422 = vdwg.mxu0
        %v2424 = vsel %vm1681, %v2144, 0
        %v2427 = vsel %vm2149, %v1679, 0
        %2429 = vmatprep.subr.bf16.mxu0 0
        %2430 = vmatpush1.bf16.msra.mxu0 %v2427
        %2431 = vmatprep.subr.bf16.mxu0 0
        %2432 = vmatpush1.bf16.msra.mxu0 0
        %2433 = vmatprep.subr.bf16.mxu0 0
        %2434 = vmatpush1.bf16.msra.mxu0 0
        %2435 = vmatprep.subr.bf16.mxu0 0
        %2436 = vmatpush1.bf16.msra.mxu0 0
        %2437 = vmatprep.subr.bf16.mxu0 0
        %2438 = vmatpush1.bf16.msra.mxu0 0
        %2439 = vmatprep.subr.bf16.mxu0 0
        %2440 = vmatpush1.bf16.msra.mxu0 0
        %2441 = vmatprep.subr.bf16.mxu0 0
        %2442 = vmatpush1.bf16.msra.mxu0 0
        %2443 = vmatprep.subr.bf16.mxu0 0
        %2444 = vmatpush1.bf16.msra.mxu0 0
        %2445 = vmatprep.subr.bf16.mxu0 0
        %2446 = vmatpush1.bf16.msra.mxu0 0
        %2447 = vmatprep.subr.bf16.mxu0 0
        %2448 = vmatpush1.bf16.msra.mxu0 0
        %2449 = vmatprep.subr.bf16.mxu0 0
        %2450 = vmatpush1.bf16.msra.mxu0 0
        %2451 = vmatprep.subr.bf16.mxu0 0
        %2452 = vmatpush1.bf16.msra.mxu0 0
        %2453 = vmatprep.subr.bf16.mxu0 0
        %2454 = vmatpush1.bf16.msra.mxu0 0
        %2455 = vmatprep.subr.bf16.mxu0 0
        %2456 = vmatpush1.bf16.msra.mxu0 0
        %2457 = vmatprep.subr.bf16.mxu0 0
        %2458 = vmatpush1.bf16.msra.mxu0 0
        %2459 = vmatprep.subr.bf16.mxu0 0
        %2460 = vmatpush1.bf16.msra.mxu0 0
        %2461 = vmatprep.mubr.bf16.mxu0 0
        %2462 = vmatmul.mubr.bf16.gmra.mrb[0].mxu0 %v2424
        %v2463 = vpop.f32.mrb[0].mxu0
        %v2464 = vadd.f32 0.0, %v2463
        %v2465 = vpop.f32.mrb[0].mxu0
        %v2466 = vpop.f32.mrb[0].mxu0
        %v2467 = vpop.f32.mrb[0].mxu0
        %2468 = vdwg.mxu0
        %v2470 = vsel %vm1681, %v2145, 0
        %v2473 = vsel %vm2149, %v1680, 0
        %2475 = vmatprep.subr.bf16.mxu0 0
        %2476 = vmatpush1.bf16.msra.mxu0 %v2473
        %2477 = vmatprep.subr.bf16.mxu0 0
        %2478 = vmatpush1.bf16.msra.mxu0 0
        %2479 = vmatprep.subr.bf16.mxu0 0
        %2480 = vmatpush1.bf16.msra.mxu0 0
        %2481 = vmatprep.subr.bf16.mxu0 0
        %2482 = vmatpush1.bf16.msra.mxu0 0
        %2483 = vmatprep.subr.bf16.mxu0 0
        %2484 = vmatpush1.bf16.msra.mxu0 0
        %2485 = vmatprep.subr.bf16.mxu0 0
        %2486 = vmatpush1.bf16.msra.mxu0 0
        %2487 = vmatprep.subr.bf16.mxu0 0
        %2488 = vmatpush1.bf16.msra.mxu0 0
        %2489 = vmatprep.subr.bf16.mxu0 0
        %2490 = vmatpush1.bf16.msra.mxu0 0
        %2491 = vmatprep.subr.bf16.mxu0 0
        %2492 = vmatpush1.bf16.msra.mxu0 0
        %2493 = vmatprep.subr.bf16.mxu0 0
        %2494 = vmatpush1.bf16.msra.mxu0 0
        %2495 = vmatprep.subr.bf16.mxu0 0
        %2496 = vmatpush1.bf16.msra.mxu0 0
        %2497 = vmatprep.subr.bf16.mxu0 0
        %2498 = vmatpush1.bf16.msra.mxu0 0
        %2499 = vmatprep.subr.bf16.mxu0 0
        %2500 = vmatpush1.bf16.msra.mxu0 0
        %2501 = vmatprep.subr.bf16.mxu0 0
        %2502 = vmatpush1.bf16.msra.mxu0 0
        %2503 = vmatprep.subr.bf16.mxu0 0
        %2504 = vmatpush1.bf16.msra.mxu0 0
        %2505 = vmatprep.subr.bf16.mxu0 0
        %2506 = vmatpush1.bf16.msra.mxu0 0
        %2507 = vmatprep.mubr.bf16.mxu0 0
        %2508 = vmatmul.mubr.bf16.gmra.mrb[0].mxu0 %v2470
        %v2509 = vpop.f32.mrb[0].mxu0
        %v2510 = vadd.f32 0.0, %v2509
        %v2511 = vpop.f32.mrb[0].mxu0
        %v2512 = vpop.f32.mrb[0].mxu0
        %v2513 = vpop.f32.mrb[0].mxu0
        %2514 = vdwg.mxu0
        %v2515 = vcombine.low %v2188, %v2280
        %v2516 = vcombine.high %v2188, %v2280
        %v2518 = vunpack.c.l.s4 1983009808
        %v2519 = vunpack.c.0.s8 %v2518
        %v2520 = vlaneseq
        %v2521 = vshrl.u32 %v2520, 7
        %v2522 = vsub.s32 %v2519, %v2521
        %v2523 = vrot.slane %v2515, %v2522
        %v2525 = vunpack.c.l.s4 1983009808
        %v2526 = vunpack.c.0.s8 %v2525
        %v2527 = vlaneseq
        %v2528 = vshrl.u32 %v2527, 7
        %v2529 = vsub.s32 %v2526, %v2528
        %v2530 = vrot.slane %v2516, %v2529
        %v2531 = vcombine.low %v2234, %v2326
        %v2532 = vcombine.high %v2234, %v2326
        %v2534 = vunpack.c.l.s4 1983009808
        %v2535 = vunpack.c.0.s8 %v2534
        %v2536 = vlaneseq
        %v2537 = vshrl.u32 %v2536, 7
        %v2538 = vsub.s32 %v2535, %v2537
        %v2539 = vrot.slane %v2531, %v2538
        %v2541 = vunpack.c.l.s4 1983009808
        %v2542 = vunpack.c.0.s8 %v2541
        %v2543 = vlaneseq
        %v2544 = vshrl.u32 %v2543, 7
        %v2545 = vsub.s32 %v2542, %v2544
        %v2546 = vrot.slane %v2532, %v2545
        %v2547 = vcombine.low %v2523, %v2539
        %v2548 = vcombine.high %v2523, %v2539
        %v2550 = vunpack.c.l.s4 1934713408
        %v2551 = vunpack.c.0.s8 %v2550
        %v2552 = vlaneseq
        %v2553 = vshrl.u32 %v2552, 7
        %v2554 = vsub.s32 %v2551, %v2553
        %v2555 = vrot.slane %v2547, %v2554
        %v2557 = vunpack.c.l.s4 1934713408
        %v2558 = vunpack.c.0.s8 %v2557
        %v2559 = vlaneseq
        %v2560 = vshrl.u32 %v2559, 7
        %v2561 = vsub.s32 %v2558, %v2560
        %v2562 = vrot.slane %v2548, %v2561
        %v2563 = vcombine.low %v2530, %v2546
        %v2564 = vcombine.high %v2530, %v2546
        %v2566 = vunpack.c.l.s4 1934713408
        %v2567 = vunpack.c.0.s8 %v2566
        %v2568 = vlaneseq
        %v2569 = vshrl.u32 %v2568, 7
        %v2570 = vsub.s32 %v2567, %v2569
        %v2571 = vrot.slane %v2563, %v2570
        %v2573 = vunpack.c.l.s4 1934713408
        %v2574 = vunpack.c.0.s8 %v2573
        %v2575 = vlaneseq
        %v2576 = vshrl.u32 %v2575, 7
        %v2577 = vsub.s32 %v2574, %v2576
        %v2578 = vrot.slane %v2564, %v2577
        %v2579 = vcombine.high %v2555, 0.0
        %v2580 = vcombine.high %v2562, 0.0
        %v2581 = vcombine.high %v2571, 0.0
        %v2582 = vcombine.high %v2578, 0.0
        %v2583 = vcombine.low %v2372, %v2464
        %v2584 = vcombine.high %v2372, %v2464
        %v2586 = vunpack.c.l.s4 1983009808
        %v2587 = vunpack.c.0.s8 %v2586
        %v2588 = vlaneseq
        %v2589 = vshrl.u32 %v2588, 7
        %v2590 = vsub.s32 %v2587, %v2589
        %v2591 = vrot.slane %v2583, %v2590
        %v2593 = vunpack.c.l.s4 1983009808
        %v2594 = vunpack.c.0.s8 %v2593
        %v2595 = vlaneseq
        %v2596 = vshrl.u32 %v2595, 7
        %v2597 = vsub.s32 %v2594, %v2596
        %v2598 = vrot.slane %v2584, %v2597
        %v2599 = vcombine.low %v2418, %v2510
        %v2600 = vcombine.high %v2418, %v2510
        %v2602 = vunpack.c.l.s4 1983009808
        %v2603 = vunpack.c.0.s8 %v2602
        %v2604 = vlaneseq
        %v2605 = vshrl.u32 %v2604, 7
        %v2606 = vsub.s32 %v2603, %v2605
        %v2607 = vrot.slane %v2599, %v2606
        %v2609 = vunpack.c.l.s4 1983009808
        %v2610 = vunpack.c.0.s8 %v2609
        %v2611 = vlaneseq
        %v2612 = vshrl.u32 %v2611, 7
        %v2613 = vsub.s32 %v2610, %v2612
        %v2614 = vrot.slane %v2600, %v2613
        %v2615 = vcombine.low %v2591, %v2607
        %v2616 = vcombine.high %v2591, %v2607
        %v2618 = vunpack.c.l.s4 1934713408
        %v2619 = vunpack.c.0.s8 %v2618
        %v2620 = vlaneseq
        %v2621 = vshrl.u32 %v2620, 7
        %v2622 = vsub.s32 %v2619, %v2621
        %v2623 = vrot.slane %v2615, %v2622
        %v2625 = vunpack.c.l.s4 1934713408
        %v2626 = vunpack.c.0.s8 %v2625
        %v2627 = vlaneseq
        %v2628 = vshrl.u32 %v2627, 7
        %v2629 = vsub.s32 %v2626, %v2628
        %v2630 = vrot.slane %v2616, %v2629
        %v2631 = vcombine.low %v2598, %v2614
        %v2632 = vcombine.high %v2598, %v2614
        %v2634 = vunpack.c.l.s4 1934713408
        %v2635 = vunpack.c.0.s8 %v2634
        %v2636 = vlaneseq
        %v2637 = vshrl.u32 %v2636, 7
        %v2638 = vsub.s32 %v2635, %v2637
        %v2639 = vrot.slane %v2631, %v2638
        %v2641 = vunpack.c.l.s4 1934713408
        %v2642 = vunpack.c.0.s8 %v2641
        %v2643 = vlaneseq
        %v2644 = vshrl.u32 %v2643, 7
        %v2645 = vsub.s32 %v2642, %v2644
        %v2646 = vrot.slane %v2632, %v2645
        %v2647 = vcombine.high %v2623, 0.0
        %v2648 = vcombine.high %v2630, 0.0
        %v2649 = vcombine.high %v2639, 0.0
        %v2650 = vcombine.high %v2646, 0.0
        %v2651 = vcombine.low %v2555, %v2562
        %v2653 = vunpack.c.l.s4 1983009808
        %v2654 = vunpack.c.0.s8 %v2653
        %v2655 = vlaneseq
        %v2656 = vshrl.u32 %v2655, 7
        %v2657 = vsub.s32 %v2654, %v2656
        %v2658 = vrot.slane %v2651, %v2657
        %v2659 = vcombine.low %v2579, %v2580
        %v2661 = vunpack.c.l.s4 1983009808
        %v2662 = vunpack.c.0.s8 %v2661
        %v2663 = vlaneseq
        %v2664 = vshrl.u32 %v2663, 7
        %v2665 = vsub.s32 %v2662, %v2664
        %v2666 = vrot.slane %v2659, %v2665
        %v2667 = vcombine.low %v2571, %v2578
        %v2669 = vunpack.c.l.s4 1983009808
        %v2670 = vunpack.c.0.s8 %v2669
        %v2671 = vlaneseq
        %v2672 = vshrl.u32 %v2671, 7
        %v2673 = vsub.s32 %v2670, %v2672
        %v2674 = vrot.slane %v2667, %v2673
        %v2675 = vcombine.low %v2581, %v2582
        %v2677 = vunpack.c.l.s4 1983009808
        %v2678 = vunpack.c.0.s8 %v2677
        %v2679 = vlaneseq
        %v2680 = vshrl.u32 %v2679, 7
        %v2681 = vsub.s32 %v2678, %v2680
        %v2682 = vrot.slane %v2675, %v2681
        %v2683 = vcombine.low %v2658, %v2666
        %v2684 = vcombine.high %v2658, %v2666
        %v2686 = vunpack.c.l.s4 1934713408
        %v2687 = vunpack.c.0.s8 %v2686
        %v2688 = vlaneseq
        %v2689 = vshrl.u32 %v2688, 7
        %v2690 = vsub.s32 %v2687, %v2689
        %v2691 = vrot.slane %v2683, %v2690
        %v2693 = vunpack.c.l.s4 1934713408
        %v2694 = vunpack.c.0.s8 %v2693
        %v2695 = vlaneseq
        %v2696 = vshrl.u32 %v2695, 7
        %v2697 = vsub.s32 %v2694, %v2696
        %v2698 = vrot.slane %v2684, %v2697
        %v2699 = vcombine.low %v2674, %v2682
        %v2700 = vcombine.high %v2674, %v2682
        %v2702 = vunpack.c.l.s4 1934713408
        %v2703 = vunpack.c.0.s8 %v2702
        %v2704 = vlaneseq
        %v2705 = vshrl.u32 %v2704, 7
        %v2706 = vsub.s32 %v2703, %v2705
        %v2707 = vrot.slane %v2699, %v2706
        %v2709 = vunpack.c.l.s4 1934713408
        %v2710 = vunpack.c.0.s8 %v2709
        %v2711 = vlaneseq
        %v2712 = vshrl.u32 %v2711, 7
        %v2713 = vsub.s32 %v2710, %v2712
        %v2714 = vrot.slane %v2700, %v2713
        %v2715 = vcombine.low %v2691, %v2707
        %v2716 = vcombine.high %v2691, %v2707
        %v2717 = vcombine.low %v2698, %v2714
        %v2718 = vcombine.high %v2698, %v2714
        %v2719 = vcombine.low %v2623, %v2630
        %v2721 = vunpack.c.l.s4 1983009808
        %v2722 = vunpack.c.0.s8 %v2721
        %v2723 = vlaneseq
        %v2724 = vshrl.u32 %v2723, 7
        %v2725 = vsub.s32 %v2722, %v2724
        %v2726 = vrot.slane %v2719, %v2725
        %v2727 = vcombine.low %v2647, %v2648
        %v2729 = vunpack.c.l.s4 1983009808
        %v2730 = vunpack.c.0.s8 %v2729
        %v2731 = vlaneseq
        %v2732 = vshrl.u32 %v2731, 7
        %v2733 = vsub.s32 %v2730, %v2732
        %v2734 = vrot.slane %v2727, %v2733
        %v2735 = vcombine.low %v2639, %v2646
        %v2737 = vunpack.c.l.s4 1983009808
        %v2738 = vunpack.c.0.s8 %v2737
        %v2739 = vlaneseq
        %v2740 = vshrl.u32 %v2739, 7
        %v2741 = vsub.s32 %v2738, %v2740
        %v2742 = vrot.slane %v2735, %v2741
        %v2743 = vcombine.low %v2649, %v2650
        %v2745 = vunpack.c.l.s4 1983009808
        %v2746 = vunpack.c.0.s8 %v2745
        %v2747 = vlaneseq
        %v2748 = vshrl.u32 %v2747, 7
        %v2749 = vsub.s32 %v2746, %v2748
        %v2750 = vrot.slane %v2743, %v2749
        %v2751 = vcombine.low %v2726, %v2734
        %v2752 = vcombine.high %v2726, %v2734
        %v2754 = vunpack.c.l.s4 1934713408
        %v2755 = vunpack.c.0.s8 %v2754
        %v2756 = vlaneseq
        %v2757 = vshrl.u32 %v2756, 7
        %v2758 = vsub.s32 %v2755, %v2757
        %v2759 = vrot.slane %v2751, %v2758
        %v2761 = vunpack.c.l.s4 1934713408
        %v2762 = vunpack.c.0.s8 %v2761
        %v2763 = vlaneseq
        %v2764 = vshrl.u32 %v2763, 7
        %v2765 = vsub.s32 %v2762, %v2764
        %v2766 = vrot.slane %v2752, %v2765
        %v2767 = vcombine.low %v2742, %v2750
        %v2768 = vcombine.high %v2742, %v2750
        %v2770 = vunpack.c.l.s4 1934713408
        %v2771 = vunpack.c.0.s8 %v2770
        %v2772 = vlaneseq
        %v2773 = vshrl.u32 %v2772, 7
        %v2774 = vsub.s32 %v2771, %v2773
        %v2775 = vrot.slane %v2767, %v2774
        %v2777 = vunpack.c.l.s4 1934713408
        %v2778 = vunpack.c.0.s8 %v2777
        %v2779 = vlaneseq
        %v2780 = vshrl.u32 %v2779, 7
        %v2781 = vsub.s32 %v2778, %v2780
        %v2782 = vrot.slane %v2768, %v2781
        %v2783 = vcombine.low %v2759, %v2775
        %v2784 = vcombine.high %v2759, %v2775
        %v2785 = vcombine.low %v2766, %v2782
        %v2786 = vcombine.high %v2766, %v2782
        %2789 = vrot.lane.b32.xlu0 %v2716, 8
        %v2790 = vpop.permute.xlu0 %2789
        %2791 = vrot.lane.b32.xlu0 %v2784, 8
        %v2792 = vpop.permute.xlu0 %2791
        %2797 = vrot.lane.b32.xlu0 %v2717, 16
        %v2798 = vpop.permute.xlu0 %2797
        %2799 = vrot.lane.b32.xlu0 %v2785, 16
        %v2800 = vpop.permute.xlu0 %2799
        %2805 = vrot.lane.b32.xlu0 %v2718, 24
        %v2806 = vpop.permute.xlu0 %2805
        %2807 = vrot.lane.b32.xlu0 %v2786, 24
        %v2808 = vpop.permute.xlu0 %2807
        %v2811 = vsel %vm1681, %v2715, %v2790
        %v2812 = vsel %vm1681, %v2783, %v2792
        %vm2813 = vcmask 130048
        %v2814 = vsel %vm2813, %v2811, %v2798
        %v2815 = vsel %vm2813, %v2812, %v2800
        %vm2816 = vcmask 195584
        %v2817 = vsel %vm2816, %v2814, %v2806
        %v2818 = vsel %vm2816, %v2815, %v2808
        %v2819 = vpack.c.bf16 %v2818, %v2817
        %v2820 = vld [vmem:[%s627] sm:$0xf]
        %v2821 = vld [vmem:[%s627 + $0x4] sm:$0xf]
        %v2822 = vld [vmem:[%s627 + $0x8] sm:$0xf]
        %v2823 = vld [vmem:[%s627 + $0xc] sm:$0xf]
        %v2824 = vld [vmem:[%s630] sm:$0x1]
        %v2826 = vlaneseq
        %v2827 = vshrl.u32 %v2826, 7
        %v2828 = vsub.s32 0, %v2827
        %v2829 = vrot.slane %v2824, %v2828
        %v2835 = vunpack.c.l.b16 %v2820
        %v2836 = vunpack.c.l.b16 %v2821
        %v2837 = vunpack.c.l.b16 %v2822
        %v2838 = vunpack.c.l.b16 %v2823
        %v2839 = vpack.c.b16 %v2836, %v2835
        %v2840 = vpack.c.b16 %v2838, %v2837
        %v2844 = vsel %vm668, %v2819, 0
        %2846 = vmatprep.subr.bf16.mxu0 0
        %2847 = vmatpush1.bf16.msra.mxu0 %v2839
        %2848 = vmatprep.subr.bf16.mxu0 0
        %2849 = vmatpush1.bf16.msra.mxu0 %v2840
        %2850 = vmatprep.subr.bf16.mxu0 0
        %2851 = vmatpush1.bf16.msra.mxu0 0
        %2852 = vmatprep.subr.bf16.mxu0 0
        %2853 = vmatpush1.bf16.msra.mxu0 0
        %2854 = vmatprep.subr.bf16.mxu0 0
        %2855 = vmatpush1.bf16.msra.mxu0 0
        %2856 = vmatprep.subr.bf16.mxu0 0
        %2857 = vmatpush1.bf16.msra.mxu0 0
        %2858 = vmatprep.subr.bf16.mxu0 0
        %2859 = vmatpush1.bf16.msra.mxu0 0
        %2860 = vmatprep.subr.bf16.mxu0 0
        %2861 = vmatpush1.bf16.msra.mxu0 0
        %2862 = vmatprep.subr.bf16.mxu0 0
        %2863 = vmatpush1.bf16.msra.mxu0 0
        %2864 = vmatprep.subr.bf16.mxu0 0
        %2865 = vmatpush1.bf16.msra.mxu0 0
        %2866 = vmatprep.subr.bf16.mxu0 0
        %2867 = vmatpush1.bf16.msra.mxu0 0
        %2868 = vmatprep.subr.bf16.mxu0 0
        %2869 = vmatpush1.bf16.msra.mxu0 0
        %2870 = vmatprep.subr.bf16.mxu0 0
        %2871 = vmatpush1.bf16.msra.mxu0 0
        %2872 = vmatprep.subr.bf16.mxu0 0
        %2873 = vmatpush1.bf16.msra.mxu0 0
        %2874 = vmatprep.subr.bf16.mxu0 0
        %2875 = vmatpush1.bf16.msra.mxu0 0
        %2876 = vmatprep.subr.bf16.mxu0 0
        %2877 = vmatpush1.bf16.msra.mxu0 0
        %2878 = vmatprep.mubr.bf16.mxu0 0
        %2879 = vmatmul.mubr.bf16.gmra.mrb[0].mxu0 %v2844
        %v2880 = vpop.f32.mrb[0].mxu0
        %v2881 = vadd.f32 %v2829, %v2880
        %v2882 = vpop.f32.mrb[0].mxu0
        %v2883 = vpop.f32.mrb[0].mxu0
        %v2884 = vadd.f32 %v2829, %v2883
        %v2885 = vpop.f32.mrb[0].mxu0
        %2886 = vdwg.mxu0
        %v2887 = vadd.f32 %v664, %v2881
        %v2888 = vadd.f32 %v665, %v2884
        %v2889 = vld [vmem:[%s633] sm:$0x1]
        %v2890 = vld [vmem:[%s636] sm:$0x1]
        %v2891 = vsel %vm668, %v2887, 0.0
        %2892 = vadd.xlane.f32.xlu0 %v2891
        %v2893 = vpop.xlane.xlu0 %2892
        %v2894 = vsel %vm668, %v2888, 0.0
        %2895 = vadd.xlane.f32.xlu0 %v2894
        %v2896 = vpop.xlane.xlu0 %2895
        %v2897 = vmul.f32 %v2893, %v675
        %v2898 = vmul.f32 %v2896, %v675
        %v2899 = vsub.f32 %v2887, %v2897
        %v2900 = vsub.f32 %v2888, %v2898
        %v2901 = vmul.f32 %v2899, %v2899
        %v2902 = vmul.f32 %v2900, %v2900
        %v2903 = vsel %vm668, %v2901, 0.0
        %2904 = vadd.xlane.f32.xlu0 %v2903
        %v2905 = vpop.xlane.xlu0 %2904
        %v2906 = vsel %vm668, %v2902, 0.0
        %2907 = vadd.xlane.f32.xlu0 %v2906
        %v2908 = vpop.xlane.xlu0 %2907
        %v2909 = vmul.f32 %v2905, %v675
        %v2910 = vmul.f32 %v2908, %v675
        %v2911 = vadd.f32 %v2909, 1e-05
        %v2912 = vadd.f32 %v2910, 1e-05
        %v2913 = vrsqrt.pop %v2911
        %v2914 = vrsqrt.pop %v2912
        %v2915 = vmul.f32 %v2899, %v2913
        %v2916 = vmul.f32 %v2900, %v2914
        %v2918 = vlaneseq
        %v2919 = vshrl.u32 %v2918, 7
        %v2920 = vsub.s32 0, %v2919
        %v2921 = vrot.slane %v2889, %v2920
        %v2923 = vmul.f32 %v2915, %v2921
        %v2924 = vmul.f32 %v2916, %v2921
        %v2926 = vlaneseq
        %v2927 = vshrl.u32 %v2926, 7
        %v2928 = vsub.s32 0, %v2927
        %v2929 = vrot.slane %v2890, %v2928
        %v2931 = vadd.f32 %v2923, %v2929
        %v2932 = vadd.f32 %v2924, %v2929
        %v2933 = vpack.c.bf16 %v2932, %v2931
        %v2934 = vld [vmem:[%s641] sm:$0xf]
        %v2935 = vld [vmem:[%s641 + $0x4] sm:$0xf]
        %v2936 = vld [vmem:[%s641 + $0x8] sm:$0xf]
        %v2937 = vld [vmem:[%s641 + $0xc] sm:$0xf]
        %v2938 = vld [vmem:[%s644] sm:$0x1]
        %v2940 = vlaneseq
        %v2941 = vshrl.u32 %v2940, 7
        %v2942 = vsub.s32 0, %v2941
        %v2943 = vrot.slane %v2938, %v2942
        %v2949 = vunpack.c.l.b16 %v2934
        %v2950 = vunpack.c.l.b16 %v2935
        %v2951 = vunpack.c.l.b16 %v2936
        %v2952 = vunpack.c.l.b16 %v2937
        %v2953 = vpack.c.b16 %v2950, %v2949
        %v2954 = vpack.c.b16 %v2952, %v2951
        %v2958 = vsel %vm668, %v2933, 0
        %2960 = vmatprep.subr.bf16.mxu0 0
        %2961 = vmatpush1.bf16.msra.mxu0 %v2953
        %2962 = vmatprep.subr.bf16.mxu0 0
        %2963 = vmatpush1.bf16.msra.mxu0 %v2954
        %2964 = vmatprep.subr.bf16.mxu0 0
        %2965 = vmatpush1.bf16.msra.mxu0 0
        %2966 = vmatprep.subr.bf16.mxu0 0
        %2967 = vmatpush1.bf16.msra.mxu0 0
        %2968 = vmatprep.subr.bf16.mxu0 0
        %2969 = vmatpush1.bf16.msra.mxu0 0
        %2970 = vmatprep.subr.bf16.mxu0 0
        %2971 = vmatpush1.bf16.msra.mxu0 0
        %2972 = vmatprep.subr.bf16.mxu0 0
        %2973 = vmatpush1.bf16.msra.mxu0 0
        %2974 = vmatprep.subr.bf16.mxu0 0
        %2975 = vmatpush1.bf16.msra.mxu0 0
        %2976 = vmatprep.subr.bf16.mxu0 0
        %2977 = vmatpush1.bf16.msra.mxu0 0
        %2978 = vmatprep.subr.bf16.mxu0 0
        %2979 = vmatpush1.bf16.msra.mxu0 0
        %2980 = vmatprep.subr.bf16.mxu0 0
        %2981 = vmatpush1.bf16.msra.mxu0 0
        %2982 = vmatprep.subr.bf16.mxu0 0
        %2983 = vmatpush1.bf16.msra.mxu0 0
        %2984 = vmatprep.subr.bf16.mxu0 0
        %2985 = vmatpush1.bf16.msra.mxu0 0
        %2986 = vmatprep.subr.bf16.mxu0 0
        %2987 = vmatpush1.bf16.msra.mxu0 0
        %2988 = vmatprep.subr.bf16.mxu0 0
        %2989 = vmatpush1.bf16.msra.mxu0 0
        %2990 = vmatprep.subr.bf16.mxu0 0
        %2991 = vmatpush1.bf16.msra.mxu0 0
        %2992 = vmatprep.mubr.bf16.mxu0 0
        %2993 = vmatmul.mubr.bf16.gmra.mrb[0].mxu0 %v2958
        %v2994 = vpop.f32.mrb[0].mxu0
        %v2995 = vadd.f32 %v2943, %v2994
        %v2996 = vpop.f32.mrb[0].mxu0
        %v2997 = vpop.f32.mrb[0].mxu0
        %v2998 = vadd.f32 %v2943, %v2997
        %v2999 = vpop.f32.mrb[0].mxu0
        %3000 = vdwg.mxu0
        %v3001 = vmul.f32 %v2995, %v2995
        %v3002 = vmul.f32 %v2998, %v2998
        %v3003 = vmul.f32 %v2995, %v3001
        %v3004 = vmul.f32 %v2998, %v3002
        %v3005 = vmul.f32 %v3003, 0.044715
        %v3006 = vmul.f32 %v3004, 0.044715
        %v3007 = vadd.f32 %v2995, %v3005
        %v3008 = vadd.f32 %v2998, %v3006
        %v3009 = vmul.f32 %v3007, 0.7978846
        %v3010 = vmul.f32 %v3008, 0.7978846
        %v3011 = vtanh.pop %v3009
        %v3012 = vtanh.pop %v3010
        %v3013 = vadd.f32 %v3011, 1.0
        %v3014 = vadd.f32 %v3012, 1.0
        %v3015 = vmul.f32 %v3013, 0.5
        %v3016 = vmul.f32 %v3014, 0.5
        %v3017 = vmul.f32 %v2995, %v3015
        %v3018 = vmul.f32 %v2998, %v3016
        %v3019 = vpack.c.bf16 %v3018, %v3017
        %v3020 = vld [vmem:[%s649] sm:$0xf]
        %v3021 = vld [vmem:[%s649 + $0x4] sm:$0xf]
        %v3022 = vld [vmem:[%s649 + $0x8] sm:$0xf]
        %v3023 = vld [vmem:[%s649 + $0xc] sm:$0xf]
        %v3024 = vld [vmem:[%s649 + $0x10] sm:$0xf]
        %v3025 = vld [vmem:[%s649 + $0x14] sm:$0xf]
        %v3026 = vld [vmem:[%s649 + $0x18] sm:$0xf]
        %v3027 = vld [vmem:[%s649 + $0x1c] sm:$0xf]
        %v3028 = vld [vmem:[%s652] sm:$0x1]
        %v3030 = vlaneseq
        %v3031 = vshrl.u32 %v3030, 7
        %v3032 = vsub.s32 0, %v3031
        %v3033 = vrot.slane %v3028, %v3032
        %v3043 = vunpack.c.l.b16 %v3020
        %v3044 = vunpack.c.l.b16 %v3021
        %v3045 = vunpack.c.l.b16 %v3022
        %v3046 = vunpack.c.l.b16 %v3023
        %v3047 = vunpack.c.l.b16 %v3024
        %v3048 = vunpack.c.l.b16 %v3025
        %v3049 = vunpack.c.l.b16 %v3026
        %v3050 = vunpack.c.l.b16 %v3027
        %v3051 = vpack.c.b16 %v3044, %v3043
        %v3052 = vpack.c.b16 %v3046, %v3045
        %v3053 = vpack.c.b16 %v3048, %v3047
        %v3054 = vpack.c.b16 %v3050, %v3049
        %vm3059 = vcmask 523264
        %v3061 = vsel %vm3059, %v3019, 0
        %3063 = vmatprep.subr.bf16.mxu0 0
        %3064 = vmatpush1.bf16.msra.mxu0 %v3051
        %3065 = vmatprep.subr.bf16.mxu0 0
        %3066 = vmatpush1.bf16.msra.mxu0 %v3052
        %3067 = vmatprep.subr.bf16.mxu0 0
        %3068 = vmatpush1.bf16.msra.mxu0 %v3053
        %3069 = vmatprep.subr.bf16.mxu0 0
        %3070 = vmatpush1.bf16.msra.mxu0 %v3054
        %3071 = vmatprep.subr.bf16.mxu0 0
        %3072 = vmatpush1.bf16.msra.mxu0 0
        %3073 = vmatprep.subr.bf16.mxu0 0
        %3074 = vmatpush1.bf16.msra.mxu0 0
        %3075 = vmatprep.subr.bf16.mxu0 0
        %3076 = vmatpush1.bf16.msra.mxu0 0
        %3077 = vmatprep.subr.bf16.mxu0 0
        %3078 = vmatpush1.bf16.msra.mxu0 0
        %3079 = vmatprep.subr.bf16.mxu0 0
        %3080 = vmatpush1.bf16.msra.mxu0 0
        %3081 = vmatprep.subr.bf16.mxu0 0
        %3082 = vmatpush1.bf16.msra.mxu0 0
        %3083 = vmatprep.subr.bf16.mxu0 0
        %3084 = vmatpush1.bf16.msra.mxu0 0
        %3085 = vmatprep.subr.bf16.mxu0 0
        %3086 = vmatpush1.bf16.msra.mxu0 0
        %3087 = vmatprep.subr.bf16.mxu0 0
        %3088 = vmatpush1.bf16.msra.mxu0 0
        %3089 = vmatprep.subr.bf16.mxu0 0
        %3090 = vmatpush1.bf16.msra.mxu0 0
        %3091 = vmatprep.subr.bf16.mxu0 0
        %3092 = vmatpush1.bf16.msra.mxu0 0
        %3093 = vmatprep.subr.bf16.mxu0 0
        %3094 = vmatpush1.bf16.msra.mxu0 0
        %3095 = vmatprep.mubr.bf16.mxu0 0
        %3096 = vmatmul.mubr.bf16.gmra.mrb[0].mxu0 %v3061
        %v3097 = vpop.f32.mrb[0].mxu0
        %v3098 = vadd.f32 %v3033, %v3097
        %v3099 = vpop.f32.mrb[0].mxu0
        %v3100 = vpop.f32.mrb[0].mxu0
        %v3101 = vadd.f32 %v3033, %v3100
        %v3102 = vpop.f32.mrb[0].mxu0
        %3103 = vdwg.mxu0
        %v3104 = vadd.f32 %v2887, %v3098
        %v3105 = vadd.f32 %v2888, %v3101
        %p3106 = scmp.lt.s32.totalorder %s32, 1
        // Predicated region
        $region85: #{transformer_forward.1} parent=75 // pred_check
          %p3107 = pneg %p3106
        $region86: #{transformer_forward.1} parent=75 // pred_check_branch
          %3109 = sbr.rel (%p3107) target = $region88
        $region87: #{transformer_forward.1} parent=75 // pred_region
          %3110 = vst.msk [vmem:[#allocation5] sm:$0xff] %vm668, %v3104
          %3111 = vst.msk [vmem:[#allocation5 + $0x8] sm:$0xff] %vm668, %v3105
        $region88: #{transformer_forward.1} parent=75 // pred_fallthru
          _
        %p3112 = scmp.eq.s32.totalorder %s32, 1
        // Predicated region
        $region89: #{transformer_forward.1} parent=75 // pred_check
          %p3113 = pneg %p3112
        $region90: #{transformer_forward.1} parent=75 // pred_check_branch
          %3115 = sbr.rel (%p3113) target = $region92
        $region91: #{transformer_forward.1} parent=75 // pred_region
          %v3116 = vld [vmem:[%s12] sm:$0x1]
          %v3117 = vld [vmem:[%s13] sm:$0x1]
          %v3118 = vsel %vm668, %v3104, 0.0
          %3119 = vadd.xlane.f32.xlu0 %v3118
          %v3120 = vpop.xlane.xlu0 %3119
          %v3121 = vsel %vm668, %v3105, 0.0
          %3122 = vadd.xlane.f32.xlu0 %v3121
          %v3123 = vpop.xlane.xlu0 %3122
          %v3124 = vmul.f32 %v3120, %v675
          %v3125 = vmul.f32 %v3123, %v675
          %v3126 = vsub.f32 %v3104, %v3124
          %v3127 = vsub.f32 %v3105, %v3125
          %v3128 = vmul.f32 %v3126, %v3126
          %v3129 = vmul.f32 %v3127, %v3127
          %v3130 = vsel %vm668, %v3128, 0.0
          %3131 = vadd.xlane.f32.xlu0 %v3130
          %v3132 = vpop.xlane.xlu0 %3131
          %v3133 = vsel %vm668, %v3129, 0.0
          %3134 = vadd.xlane.f32.xlu0 %v3133
          %v3135 = vpop.xlane.xlu0 %3134
          %v3136 = vmul.f32 %v3132, %v675
          %v3137 = vmul.f32 %v3135, %v675
          %v3138 = vadd.f32 %v3136, 1e-05
          %v3139 = vadd.f32 %v3137, 1e-05
          %v3140 = vrsqrt.pop %v3138
          %v3141 = vrsqrt.pop %v3139
          %v3142 = vmul.f32 %v3126, %v3140
          %v3143 = vmul.f32 %v3127, %v3141
          %v3145 = vlaneseq
          %v3146 = vshrl.u32 %v3145, 7
          %v3147 = vsub.s32 0, %v3146
          %v3148 = vrot.slane %v3116, %v3147
          %v3150 = vmul.f32 %v3142, %v3148
          %v3151 = vmul.f32 %v3143, %v3148
          %v3153 = vlaneseq
          %v3154 = vshrl.u32 %v3153, 7
          %v3155 = vsub.s32 0, %v3154
          %v3156 = vrot.slane %v3117, %v3155
          %v3158 = vadd.f32 %v3150, %v3156
          %v3159 = vadd.f32 %v3151, %v3156
          %3160 = vst.msk [vmem:[#allocation5] sm:$0xff] %vm668, %v3158
          %3161 = vst.msk [vmem:[#allocation5 + $0x8] sm:$0xff] %vm668, %v3159
        $region92: #{transformer_forward.1} parent=75 // pred_fallthru
          _
        // Predicated region
        $region93: #{transformer_forward.1} parent=75 // pred_check
          %p3162 = pneg %p411
        $region94: #{transformer_forward.1} parent=75 // pred_check_branch
          %3164 = sbr.rel (%p3162) target = $region96
        $region95: #{transformer_forward.1} parent=75 // pred_region
          %s3165 = smul.u32 2, %s31
          %s3167 = ssub.s32 256, 256
          %3168 = vsyncadd [#allocation4], %s3167
          %s3169 = smul.addr %s3165, 128
          %s3170 = scalar_lea.hbm %s14, %s3169
          %s3171 = sshll.u32 [#allocation5], 4
          %s3172 = int_to_ptr.vmem [resolvable:$true] %s3171
          %3177 = dma.vmem_to_hbm [thread:$0]  %s3172, 256, %s3170, [#allocation4], 128, 128, 8
        $region96: #{transformer_forward.1} parent=75 // pred_fallthru
          _
        // Predicated region
        $region97: #{transformer_forward.1} parent=75 // pred_check
          %p3178 = pneg %p411
        $region98: #{transformer_forward.1} parent=75 // pred_check_branch
          %3180 = sbr.rel (%p3178) target = $region100
        $region99: #{transformer_forward.1} parent=75 // pred_region
          %3181 = dma.done [#allocation4], 256
        $region100: #{transformer_forward.1} parent=75 // pred_fallthru
          _
      $region76: #{transformer_forward.1} parent=5 // pred_fallthru
        _
      %p3182 = scmp.le.s32.totalorder 2, %s22
      // Predicated region
      $region101: #{transformer_forward.1} parent=5 // pred_check
        %p3183 = pneg %p3182
      $region102: #{transformer_forward.1} parent=5 // pred_check_branch
        %3185 = sbr.rel (%p3183) target = $region104
      $region103: #{transformer_forward.1} parent=5 // pred_region
        %s3186 = ssub.s32 %s22, 2
      $region104: #{transformer_forward.1} parent=5 // pred_fallthru
        _
    $region6: #{transformer_forward.1} parent=1 // loop_footer
      %s26 = sadd.s32 1, %s22
    $region7: #{transformer_forward.1} parent=1 // loop_footer_branch
      %21 = sbr.rel target = $region3
    $region8: #{transformer_forward.1} parent=1 // loop_exit
      _
    %3187 = vsyncpa [#allocation3], 1
    %s3188 = scalar_lea.sflag [#allocation3], 1
    %3189 = vsyncpa %s3188, 1
    %3190 = vsyncpa [#allocation4], 1
    %s3191 = scalar_lea.sflag [#allocation4], 1
    %3192 = vsyncpa %s3191, 1

</llo_original>
